<compile_context>
chip_gen: v5e
topology: v5e:2x2
jax: 0.10.0
libtpu: 0.0.40
codegen_flags: <defaults>
</compile_context>

<pallas_src>
import functools

import jax
import jax.numpy as jnp
from jax.experimental import pallas as pl
from jax.experimental.pallas import tpu as pltpu


def _round_up(x, m):
    return (x + m - 1) // m * m


def _sigmoid(x):
    # one EUP push (tanh) instead of exp + divide on the serial critical path
    return 0.5 * (jnp.tanh(0.5 * x) + 1.0)


# ----------------------------------------------------------------------------
# Fused  out = A @ W + bias  matmul kernel, tiled over M (MXU, bf16 in,
# f32 accumulation, configurable output dtype).  Used for init_hc, the hoisted
# per-timestep input projections, and the post-recurrence vocab projection.
# ----------------------------------------------------------------------------
def _mm_bias_kernel(a_ref, w_ref, b_ref, o_ref):
    acc = jnp.dot(a_ref[...], w_ref[...], preferred_element_type=jnp.float32)
    o_ref[...] = (acc + b_ref[...]).astype(o_ref.dtype)


def matmul_bias(a_bf16, w_bf16, b_f32, *, tm=256, out_dtype=jnp.float32):
    """a: (M, K) bf16, w: (K, N) bf16 (K, N already 128-padded), b: (1, N) f32."""
    M, K = a_bf16.shape
    _, N = w_bf16.shape
    Mp = _round_up(max(M, 16), 16)          # bf16 packs 2 rows / sublane
    tm = min(_round_up(tm, 16), Mp)
    Mp = _round_up(Mp, tm)
    a_p = a_bf16 if Mp == M else jnp.pad(a_bf16, ((0, Mp - M), (0, 0)))
    out = pl.pallas_call(
        _mm_bias_kernel,
        out_shape=jax.ShapeDtypeStruct((Mp, N), out_dtype),
        grid=(Mp // tm,),
        in_specs=[pl.BlockSpec((tm, K), lambda i: (i, 0)),
                  pl.BlockSpec((K, N), lambda i: (0, 0)),
                  pl.BlockSpec((1, N), lambda i: (0, 0))],
        out_specs=pl.BlockSpec((tm, N), lambda i: (i, 0)),
        compiler_params=pltpu.CompilerParams(
            dimension_semantics=("parallel",)),     # dual-TC on v7x
    )(a_p, w_bf16, b_f32)
    return out if Mp == M else out[:M]


# ----------------------------------------------------------------------------
# Recurrent LSTM kernel: grid over T-chunks, static unrolled loop over the
# chunk, h/c carried in VMEM scratch, W_hh / (h0|c0) resident (constant index
# maps).  Emits h_t (bf16) only; the vocab FC happens outside.
# ----------------------------------------------------------------------------
def _lstm_recurrence_kernel(xp_ref, whh_ref, hc0_ref, h_out_ref, h_sc, c_sc):
    Hp = h_sc.shape[-1]
    t_chunk = xp_ref.shape[0]

    @pl.when(pl.program_id(0) == 0)
    def _():
        h_sc[...] = hc0_ref[:, :Hp]
        c_sc[...] = hc0_ref[:, Hp:]

    h = h_sc[...]
    c = c_sc[...]
    for t in range(t_chunk):                         # static, fully unrolled
        # gates layout: [i | f | g | o], each Hp wide (PyTorch LSTMCell order)
        gates = xp_ref[t].astype(jnp.float32) + jnp.dot(
            h.astype(jnp.bfloat16), whh_ref[...],
            preferred_element_type=jnp.float32)
        i_g = _sigmoid(gates[:, 0 * Hp:1 * Hp])
        f_g = _sigmoid(gates[:, 1 * Hp:2 * Hp])
        g_g = jnp.tanh(gates[:, 2 * Hp:3 * Hp])
        o_g = _sigmoid(gates[:, 3 * Hp:4 * Hp])
        c = f_g * c + i_g * g_g
        h = o_g * jnp.tanh(c)
        h_out_ref[t] = h.astype(jnp.bfloat16)
    h_sc[...] = h                                    # carry across chunks
    c_sc[...] = c


def lstm_recurrence(xproj, w_hh_t, hc0, *, t_chunk):
    """xproj: (Tp, Bp, 4Hp) bf16; w_hh_t: (Hp, 4Hp) bf16; hc0: (Bp, 2Hp) f32
    -> h_all (Tp, Bp, Hp) bf16."""
    Tp, Bp, G4 = xproj.shape
    Hp = w_hh_t.shape[0]
    n_chunks = Tp // t_chunk

    # explicit scoped-VMEM sizing (resident weights + double-buffered streams)
    resident = (2 * t_chunk * Bp * G4 * 2      # xproj chunk, bf16, 2 buffers
                + 2 * Hp * G4 * 2              # W_hh bf16
                + 2 * Bp * 2 * Hp * 4          # hc0 f32
                + 2 * t_chunk * Bp * Hp * 2    # h_out chunk bf16, 2 buffers
                + 2 * Bp * Hp * 4)             # h/c scratch
    vmem_limit = int(min(max(4 * resident, 16 << 20), 64 << 20))

    return pl.pallas_call(
        _lstm_recurrence_kernel,
        out_shape=jax.ShapeDtypeStruct((Tp, Bp, Hp), jnp.bfloat16),
        grid_spec=pltpu.PrefetchScalarGridSpec(
            num_scalar_prefetch=0,
            grid=(n_chunks,),
            in_specs=[
                pl.BlockSpec((t_chunk, Bp, G4), lambda c: (c, 0, 0)),  # xproj
                pl.BlockSpec((Hp, G4), lambda c: (0, 0)),      # W_hh (resident)
                pl.BlockSpec((Bp, 2 * Hp), lambda c: (0, 0)),  # (h0 | c0)
            ],
            out_specs=pl.BlockSpec((t_chunk, Bp, Hp), lambda c: (c, 0, 0)),
            scratch_shapes=[pltpu.VMEM((Bp, Hp), jnp.float32),  # h carry
                            pltpu.VMEM((Bp, Hp), jnp.float32)]),  # c carry
        compiler_params=pltpu.CompilerParams(
            dimension_semantics=("arbitrary",),                 # sequential
            vmem_limit_bytes=vmem_limit),
    )(xproj, w_hh_t, hc0)


# ----------------------------------------------------------------------------
# Parameters: raw (PyTorch-layout, deterministic synthetic init) + one-time
# prepack (weight_norm fold, transpose, 128-pad, bf16 cast).
# ----------------------------------------------------------------------------
def init_rnn_raw_params(key, fea_dim, embed_dim, hid_dim, vocab_size):
    ks = jax.random.split(key, 13)
    inv_h = 1.0 / (hid_dim ** 0.5)
    inv_f = 1.0 / (fea_dim ** 0.5)

    def u(k, shape, lo, hi):
        return jax.random.uniform(k, shape, jnp.float32, lo, hi)

    return {
        # nn.Embedding, init_weight(): uniform_(-0.1, 0.1)
        "embed": u(ks[0], (vocab_size, embed_dim), -0.1, 0.1),
        # nn.LSTMCell default init: U(-1/sqrt(H), 1/sqrt(H))
        "w_ih": u(ks[1], (4 * hid_dim, embed_dim), -inv_h, inv_h),
        "w_hh": u(ks[2], (4 * hid_dim, hid_dim), -inv_h, inv_h),
        "b_ih": u(ks[3], (4 * hid_dim,), -inv_h, inv_h),
        "b_hh": u(ks[4], (4 * hid_dim,), -inv_h, inv_h),
        # weight_norm(nn.Linear(hid, vocab)): stored as (v, g), folded in prepack
        "fc_v": u(ks[5], (vocab_size, hid_dim), -0.1, 0.1),
        "fc_g": u(ks[6], (vocab_size, 1), 0.5, 1.5),
        "fc_b": jnp.zeros((vocab_size,), jnp.float32),
        # weight_norm(nn.Linear(fea, hid)) x2 for init_h / init_c
        "init_h_v": u(ks[7], (hid_dim, fea_dim), -inv_f, inv_f),
        "init_h_g": u(ks[8], (hid_dim, 1), 0.5, 1.5),
        "init_h_b": u(ks[9], (hid_dim,), -inv_f, inv_f),
        "init_c_v": u(ks[10], (hid_dim, fea_dim), -inv_f, inv_f),
        "init_c_g": u(ks[11], (hid_dim, 1), 0.5, 1.5),
        "init_c_b": u(ks[12], (hid_dim,), -inv_f, inv_f),
    }


def _wn_fold(v, g):
    """weight_norm forward: W = g * v / ||v||_2 (per output row, dim=0)."""
    return g * v / jnp.sqrt(jnp.sum(v * v, axis=1, keepdims=True))


def prepack_params(raw, fea_dim, embed_dim, hid_dim, vocab_size):
    H, E, F, V = hid_dim, embed_dim, fea_dim, vocab_size
    Hp, Ep, Fp, Vp = (_round_up(d, 128) for d in (H, E, F, V))

    def pad2(x, r, c):
        return jnp.pad(x, ((0, r - x.shape[0]), (0, c - x.shape[1])))

    def pad_gates_t(w, in_p):
        # w: (4H, in_dim) -> (in_p, 4*Hp), each gate chunk padded to Hp cols.
        return jnp.concatenate(
            [pad2(w[j * H:(j + 1) * H].T, in_p, Hp) for j in range(4)], axis=1)

    b_g = raw["b_ih"] + raw["b_hh"]
    b_gates = jnp.concatenate(
        [jnp.pad(b_g[j * H:(j + 1) * H], (0, Hp - H)) for j in range(4)]
    ).reshape(1, 4 * Hp)

    w_fc = _wn_fold(raw["fc_v"], raw["fc_g"])          # (V, H)
    w_h = _wn_fold(raw["init_h_v"], raw["init_h_g"])   # (H, F)
    w_c = _wn_fold(raw["init_c_v"], raw["init_c_g"])   # (H, F)

    return {
        "embed": pad2(raw["embed"], V, Ep),                               # f32
        "w_ih_t": pad_gates_t(raw["w_ih"], Ep).astype(jnp.bfloat16),      # (Ep,4Hp)
        "w_hh_t": pad_gates_t(raw["w_hh"], Hp).astype(jnp.bfloat16),      # (Hp,4Hp)
        "b_gates": b_gates,                                               # (1,4Hp)
        "w_fc_t": pad2(w_fc.T, Hp, Vp).astype(jnp.bfloat16),              # (Hp,Vp)
        "b_fc": jnp.pad(raw["fc_b"], (0, Vp - V)).reshape(1, Vp),         # (1,Vp)
        "w_init": jnp.concatenate([pad2(w_h.T, Fp, Hp),
                                   pad2(w_c.T, Fp, Hp)],
                                  axis=1).astype(jnp.bfloat16),           # (Fp,2Hp)
        "b_init": jnp.concatenate([jnp.pad(raw["init_h_b"], (0, Hp - H)),
                                   jnp.pad(raw["init_c_b"], (0, Hp - H))]
                                  ).reshape(1, 2 * Hp),                   # (1,2Hp)
    }


# ----------------------------------------------------------------------------
# Forward pass == RNN.forward  (eval-mode dropout)
# ----------------------------------------------------------------------------
def rnn_forward(params, fea_maps, caption, *, vocab_size, t_chunk=8):
    B, _, F = fea_maps.shape
    Tm1 = caption.shape[1] - 1                 # max_sen_len - 1
    Hp, G4 = params["w_hh_t"].shape
    Fp = params["w_init"].shape[0]
    Ep = params["embed"].shape[1]
    Vp = params["w_fc_t"].shape[1]
    Bp = _round_up(max(B, 16), 16)             # bf16 sublane packing
    Tp = _round_up(Tm1, t_chunk)

    # h, c = init_hc(fea_maps.mean(1)) -- both weight-normed linears fused.
    fea_mean = jnp.mean(fea_maps, axis=1)                                 # (B,F)
    fea_mean = jnp.pad(fea_mean, ((0, Bp - B), (0, Fp - F)))
    hc0 = matmul_bias(fea_mean.astype(jnp.bfloat16), params["w_init"],
                      params["b_init"], tm=Bp)                            # (Bp,2Hp)

    # Time-major, batch-padded token gather (pads the tiny int caption, not the
    # large f32 activation) + hoisted input projections for all decode steps.
    cap_tm = jnp.pad(caption[:, :Tm1].T, ((0, Tp - Tm1), (0, Bp - B)))    # (Tp,Bp)
    emb = jnp.take(params["embed"], cap_tm, axis=0)                       # (Tp,Bp,Ep)
    xproj = matmul_bias(emb.reshape(Tp * Bp, Ep).astype(jnp.bfloat16),
                        params["w_ih_t"], params["b_gates"],
                        tm=256, out_dtype=jnp.bfloat16)                   # (Tp*Bp,4Hp)
    xproj = xproj.reshape(Tp, Bp, G4)

    # Recurrence: gates + LSTM update only; emits h_t for every step.
    h_all = lstm_recurrence(xproj, params["w_hh_t"], hc0, t_chunk=t_chunk)

    # fc(dropout(h)) with eval-mode dropout == fc(h): one big batched matmul.
    logits = matmul_bias(h_all.reshape(Tp * Bp, Hp), params["w_fc_t"],
                         params["b_fc"], tm=256)                          # (Tp*Bp,Vp)
    logits = logits.reshape(Tp, Bp, Vp)[:Tm1, :B, :vocab_size]
    return logits.transpose(1, 0, 2)                                      # (B,Tm1,V)


# ----------------------------------------------------------------------------
# Pure-JAX f32 reference (straight transcription of the PyTorch math).
# ----------------------------------------------------------------------------
def rnn_forward_ref(raw, fea_maps, caption):
    Tm1 = caption.shape[1] - 1
    fea = jnp.mean(fea_maps, axis=1)
    h = fea @ _wn_fold(raw["init_h_v"], raw["init_h_g"]).T + raw["init_h_b"]
    c = fea @ _wn_fold(raw["init_c_v"], raw["init_c_g"]).T + raw["init_c_b"]
    w_fc = _wn_fold(raw["fc_v"], raw["fc_g"])
    emb = raw["embed"][caption]
    outs = []
    for t in range(Tm1):
        gates = (emb[:, t, :] @ raw["w_ih"].T + raw["b_ih"]
                 + h @ raw["w_hh"].T + raw["b_hh"])
        i_g, f_g, g_g, o_g = jnp.split(gates, 4, axis=1)
        i_g, f_g, o_g = jax.nn.sigmoid(i_g), jax.nn.sigmoid(f_g), jax.nn.sigmoid(o_g)
        g_g = jnp.tanh(g_g)
        c = f_g * c + i_g * g_g
        h = o_g * jnp.tanh(c)
        outs.append(h @ w_fc.T + raw["fc_b"])
    return jnp.stack(outs, axis=1)


if __name__ == "__main__":
    B, REGIONS = 2, 49
    FEA_DIM, EMBED_DIM, HID_DIM = 256, 128, 128
    MAX_SEN_LEN, VOCAB_SIZE = 8, 512

    key = jax.random.PRNGKey(0)
    kparam, kfea, kcap = jax.random.split(key, 3)
    raw = init_rnn_raw_params(kparam, FEA_DIM, EMBED_DIM, HID_DIM, VOCAB_SIZE)
    params = prepack_params(raw, FEA_DIM, EMBED_DIM, HID_DIM, VOCAB_SIZE)

    fea_maps = jax.random.normal(kfea, (B, REGIONS, FEA_DIM), jnp.float32)
    caption = jax.random.randint(kcap, (B, MAX_SEN_LEN), 0, VOCAB_SIZE)

    fwd = jax.jit(functools.partial(rnn_forward, vocab_size=VOCAB_SIZE))
    out = jax.block_until_ready(fwd(params, fea_maps, caption))

    assert out.shape == (B, MAX_SEN_LEN - 1, VOCAB_SIZE), out.shape
    assert bool(jnp.all(jnp.isfinite(out)))
    ref = rnn_forward_ref(raw, fea_maps, caption)
    max_err = float(jnp.max(jnp.abs(out - ref)))
    assert max_err < 0.1, f"max abs err vs f32 reference: {max_err}"
    print("KERNEL_OK")
</pallas_src>

<mosaic_0001>
module attributes {stable_mosaic.version = 11 : i64} {
  func.func @_mm_bias_kernel(%arg0: i32, %arg1: memref<16x256xbf16, #tpu.memory_space<vmem>>, %arg2: memref<256x256xbf16, #tpu.memory_space<vmem>>, %arg3: memref<1x256xf32, #tpu.memory_space<vmem>>, %arg4: memref<16x256xf32, #tpu.memory_space<vmem>>) attributes {dimension_semantics = [#tpu.dimension_semantics<parallel>], iteration_bounds = array<i64: 1>, scalar_prefetch = 0 : i64, scratch_operands = 0 : i64, tpu.core_type = #tpu.core_type<tc>, window_params = [{transform_indices = @transform_0, window_bounds = array<i64: 16, 256>}, {pipeline_mode = #tpu.pipeline_mode<synchronous>, transform_indices = @transform_1, window_bounds = array<i64: 256, 256>}, {pipeline_mode = #tpu.pipeline_mode<synchronous>, transform_indices = @transform_2, window_bounds = array<i64: 1, 256>}, {transform_indices = @transform_3, window_bounds = array<i64: 16, 256>}]} {
    %c0 = arith.constant 0 : index
    %c0_0 = arith.constant 0 : index
    %0 = vector.load %arg1[%c0, %c0_0] : memref<16x256xbf16, #tpu.memory_space<vmem>>, vector<16x256xbf16>
    %c0_1 = arith.constant 0 : index
    %c0_2 = arith.constant 0 : index
    %1 = vector.load %arg2[%c0_1, %c0_2] : memref<256x256xbf16, #tpu.memory_space<vmem>>, vector<256x256xbf16>
    %cst = arith.constant dense<0.000000e+00> : vector<16x256xf32>
    %2 = tpu.matmul %0, %1, %cst {dimension_numbers = #tpu.dot_dimension_numbers<[1], [0], [0], [1], [0, 0, 1, 1], [], []>} : vector<16x256xbf16>, vector<256x256xbf16>, vector<16x256xf32> -> vector<16x256xf32>
    %c0_3 = arith.constant 0 : index
    %c0_4 = arith.constant 0 : index
    %3 = vector.load %arg3[%c0_3, %c0_4] : memref<1x256xf32, #tpu.memory_space<vmem>>, vector<1x256xf32>
    %4 = vector.broadcast %3 : vector<1x256xf32> to vector<16x256xf32>
    %5 = arith.addf %2, %4 : vector<16x256xf32>
    %c0_5 = arith.constant 0 : index
    %c0_6 = arith.constant 0 : index
    %6 = vector.load %arg4[%c0_5, %c0_6] : memref<16x256xf32, #tpu.memory_space<vmem>>, vector<16x256xf32>
    tpu.vector_store %arg4[%c0_5, %c0_6], %5 {strides = array<i32>} : memref<16x256xf32, #tpu.memory_space<vmem>>, vector<16x256xf32>,
    return
  }
  func.func @transform_0(%arg0: i32) -> (i32, i32) {
    %c0_i32 = arith.constant 0 : i32
    %c0_i32_0 = arith.constant 0 : i32
    return %arg0, %c0_i32 : i32, i32
  }
  func.func @transform_1(%arg0: i32) -> (i32, i32) {
    %c0_i32 = arith.constant 0 : i32
    %c0_i32_0 = arith.constant 0 : i32
    %c0_i32_1 = arith.constant 0 : i32
    return %c0_i32, %c0_i32_0 : i32, i32
  }
  func.func @transform_2(%arg0: i32) -> (i32, i32) {
    %c0_i32 = arith.constant 0 : i32
    %c0_i32_0 = arith.constant 0 : i32
    %c0_i32_1 = arith.constant 0 : i32
    return %c0_i32, %c0_i32_0 : i32, i32
  }
  func.func @transform_3(%arg0: i32) -> (i32, i32) {
    %c0_i32 = arith.constant 0 : i32
    %c0_i32_0 = arith.constant 0 : i32
    return %arg0, %c0_i32 : i32, i32
  }
}

module attributes {stable_mosaic.version = 11 : i64} {
  func.func @_mm_bias_kernel(%arg0: i32, %arg1: memref<128x128xbf16, #tpu.memory_space<vmem>>, %arg2: memref<128x512xbf16, #tpu.memory_space<vmem>>, %arg3: memref<1x512xf32, #tpu.memory_space<vmem>>, %arg4: memref<128x512xbf16, #tpu.memory_space<vmem>>) attributes {dimension_semantics = [#tpu.dimension_semantics<parallel>], iteration_bounds = array<i64: 1>, scalar_prefetch = 0 : i64, scratch_operands = 0 : i64, tpu.core_type = #tpu.core_type<tc>, window_params = [{transform_indices = @transform_0, window_bounds = array<i64: 128, 128>}, {pipeline_mode = #tpu.pipeline_mode<synchronous>, transform_indices = @transform_1, window_bounds = array<i64: 128, 512>}, {pipeline_mode = #tpu.pipeline_mode<synchronous>, transform_indices = @transform_2, window_bounds = array<i64: 1, 512>}, {transform_indices = @transform_3, window_bounds = array<i64: 128, 512>}]} {
    %c0 = arith.constant 0 : index
    %c0_0 = arith.constant 0 : index
    %0 = vector.load %arg1[%c0, %c0_0] : memref<128x128xbf16, #tpu.memory_space<vmem>>, vector<128x128xbf16>
    %c0_1 = arith.constant 0 : index
    %c0_2 = arith.constant 0 : index
    %1 = vector.load %arg2[%c0_1, %c0_2] : memref<128x512xbf16, #tpu.memory_space<vmem>>, vector<128x512xbf16>
    %cst = arith.constant dense<0.000000e+00> : vector<128x512xf32>
    %2 = tpu.matmul %0, %1, %cst {dimension_numbers = #tpu.dot_dimension_numbers<[1], [0], [0], [1], [0, 0, 1, 1], [], []>} : vector<128x128xbf16>, vector<128x512xbf16>, vector<128x512xf32> -> vector<128x512xf32>
    %c0_3 = arith.constant 0 : index
    %c0_4 = arith.constant 0 : index
    %3 = vector.load %arg3[%c0_3, %c0_4] : memref<1x512xf32, #tpu.memory_space<vmem>>, vector<1x512xf32>
    %4 = vector.broadcast %3 : vector<1x512xf32> to vector<128x512xf32>
    %5 = arith.addf %2, %4 : vector<128x512xf32>
    %6 = arith.truncf %5 : vector<128x512xf32> to vector<128x512xbf16>
    %c0_5 = arith.constant 0 : index
    %c0_6 = arith.constant 0 : index
    %7 = vector.load %arg4[%c0_5, %c0_6] : memref<128x512xbf16, #tpu.memory_space<vmem>>, vector<128x512xbf16>
    tpu.vector_store %arg4[%c0_5, %c0_6], %6 {strides = array<i32>} : memref<128x512xbf16, #tpu.memory_space<vmem>>, vector<128x512xbf16>,
    return
  }
  func.func @transform_0(%arg0: i32) -> (i32, i32) {
    %c0_i32 = arith.constant 0 : i32
    %c0_i32_0 = arith.constant 0 : i32
    return %arg0, %c0_i32 : i32, i32
  }
  func.func @transform_1(%arg0: i32) -> (i32, i32) {
    %c0_i32 = arith.constant 0 : i32
    %c0_i32_0 = arith.constant 0 : i32
    %c0_i32_1 = arith.constant 0 : i32
    return %c0_i32, %c0_i32_0 : i32, i32
  }
  func.func @transform_2(%arg0: i32) -> (i32, i32) {
    %c0_i32 = arith.constant 0 : i32
    %c0_i32_0 = arith.constant 0 : i32
    %c0_i32_1 = arith.constant 0 : i32
    return %c0_i32, %c0_i32_0 : i32, i32
  }
  func.func @transform_3(%arg0: i32) -> (i32, i32) {
    %c0_i32 = arith.constant 0 : i32
    %c0_i32_0 = arith.constant 0 : i32
    return %arg0, %c0_i32 : i32, i32
  }
}

module attributes {stable_mosaic.version = 11 : i64} {
  func.func @_lstm_recurrence_kernel(%arg0: i32, %arg1: memref<8x16x512xbf16, #tpu.memory_space<vmem>>, %arg2: memref<128x512xbf16, #tpu.memory_space<vmem>>, %arg3: memref<16x256xf32, #tpu.memory_space<vmem>>, %arg4: memref<8x16x128xbf16, #tpu.memory_space<vmem>>, %arg5: memref<16x128xf32, #tpu.memory_space<vmem>>, %arg6: memref<16x128xf32, #tpu.memory_space<vmem>>) attributes {dimension_semantics = [#tpu.dimension_semantics<arbitrary>], iteration_bounds = array<i64: 1>, scalar_prefetch = 0 : i64, scratch_operands = 2 : i64, tpu.core_type = #tpu.core_type<tc>, window_params = [{transform_indices = @transform_0, window_bounds = array<i64: 8, 16, 512>}, {pipeline_mode = #tpu.pipeline_mode<synchronous>, transform_indices = @transform_1, window_bounds = array<i64: 128, 512>}, {pipeline_mode = #tpu.pipeline_mode<synchronous>, transform_indices = @transform_2, window_bounds = array<i64: 16, 256>}, {transform_indices = @transform_3, window_bounds = array<i64: 8, 16, 128>}]} {
    %c0_i32 = arith.constant 0 : i32
    %0 = arith.cmpi eq, %arg0, %c0_i32 : i32
    %1 = arith.extui %0 : i1 to i32
    %c0_i32_0 = arith.constant 0 : i32
    %2 = arith.cmpi ne, %1, %c0_i32_0 : i32
    scf.if %2 {
      %c0_144 = arith.constant 0 : index
      %c0_145 = arith.constant 0 : index
      %343 = vector.load %arg3[%c0_144, %c0_145] : memref<16x256xf32, #tpu.memory_space<vmem>>, vector<16x128xf32>
      %c0_146 = arith.constant 0 : index
      %c0_147 = arith.constant 0 : index
      %344 = vector.load %arg5[%c0_146, %c0_147] : memref<16x128xf32, #tpu.memory_space<vmem>>, vector<16x128xf32>
      tpu.vector_store %arg5[%c0_146, %c0_147], %343 {strides = array<i32>} : memref<16x128xf32, #tpu.memory_space<vmem>>, vector<16x128xf32>,
      %c0_148 = arith.constant 0 : index
      %c128 = arith.constant 128 : index
      %345 = vector.load %arg3[%c0_148, %c128] : memref<16x256xf32, #tpu.memory_space<vmem>>, vector<16x128xf32>
      %c0_149 = arith.constant 0 : index
      %c0_150 = arith.constant 0 : index
      %346 = vector.load %arg6[%c0_149, %c0_150] : memref<16x128xf32, #tpu.memory_space<vmem>>, vector<16x128xf32>
      tpu.vector_store %arg6[%c0_149, %c0_150], %345 {strides = array<i32>} : memref<16x128xf32, #tpu.memory_space<vmem>>, vector<16x128xf32>,
    } else {
    }
    %c0 = arith.constant 0 : index
    %c0_1 = arith.constant 0 : index
    %3 = vector.load %arg5[%c0, %c0_1] : memref<16x128xf32, #tpu.memory_space<vmem>>, vector<16x128xf32>
    %c0_2 = arith.constant 0 : index
    %c0_3 = arith.constant 0 : index
    %4 = vector.load %arg6[%c0_2, %c0_3] : memref<16x128xf32, #tpu.memory_space<vmem>>, vector<16x128xf32>
    %c0_4 = arith.constant 0 : index
    %c0_5 = arith.constant 0 : index
    %c0_6 = arith.constant 0 : index
    %5 = vector.load %arg1[%c0_4, %c0_5, %c0_6] : memref<8x16x512xbf16, #tpu.memory_space<vmem>>, vector<1x16x512xbf16>
    %6 = vector.shape_cast %5 : vector<1x16x512xbf16> to vector<16x512xbf16>
    %7 = arith.extf %6 : vector<16x512xbf16> to vector<16x512xf32>
    %8 = arith.truncf %3 : vector<16x128xf32> to vector<16x128xbf16>
    %c0_7 = arith.constant 0 : index
    %c0_8 = arith.constant 0 : index
    %9 = vector.load %arg2[%c0_7, %c0_8] : memref<128x512xbf16, #tpu.memory_space<vmem>>, vector<128x512xbf16>
    %cst = arith.constant dense<0.000000e+00> : vector<16x512xf32>
    %10 = tpu.matmul %8, %9, %cst {dimension_numbers = #tpu.dot_dimension_numbers<[1], [0], [0], [1], [0, 0, 1, 1], [], []>} : vector<16x128xbf16>, vector<128x512xbf16>, vector<16x512xf32> -> vector<16x512xf32>
    %11 = arith.addf %7, %10 : vector<16x512xf32>
    %12 = vector.extract_strided_slice %11 {offsets = [0, 0], sizes = [16, 128], strides = [1, 1]} : vector<16x512xf32> to vector<16x128xf32>
    %cst_9 = arith.constant 5.000000e-01 : f32
    %13 = vector.broadcast %cst_9 : f32 to vector<16x128xf32>
    %14 = arith.mulf %13, %12 : vector<16x128xf32>
    %15 = math.tanh %14 : vector<16x128xf32>
    %cst_10 = arith.constant 1.000000e+00 : f32
    %16 = vector.broadcast %cst_10 : f32 to vector<16x128xf32>
    %17 = arith.addf %15, %16 : vector<16x128xf32>
    %cst_11 = arith.constant 5.000000e-01 : f32
    %18 = vector.broadcast %cst_11 : f32 to vector<16x128xf32>
    %19 = arith.mulf %18, %17 : vector<16x128xf32>
    %20 = vector.extract_strided_slice %11 {offsets = [0, 128], sizes = [16, 128], strides = [1, 1]} : vector<16x512xf32> to vector<16x128xf32>
    %cst_12 = arith.constant 5.000000e-01 : f32
    %21 = vector.broadcast %cst_12 : f32 to vector<16x128xf32>
    %22 = arith.mulf %21, %20 : vector<16x128xf32>
    %23 = math.tanh %22 : vector<16x128xf32>
    %cst_13 = arith.constant 1.000000e+00 : f32
    %24 = vector.broadcast %cst_13 : f32 to vector<16x128xf32>
    %25 = arith.addf %23, %24 : vector<16x128xf32>
    %cst_14 = arith.constant 5.000000e-01 : f32
    %26 = vector.broadcast %cst_14 : f32 to vector<16x128xf32>
    %27 = arith.mulf %26, %25 : vector<16x128xf32>
    %28 = vector.extract_strided_slice %11 {offsets = [0, 256], sizes = [16, 128], strides = [1, 1]} : vector<16x512xf32> to vector<16x128xf32>
    %29 = math.tanh %28 : vector<16x128xf32>
    %30 = vector.extract_strided_slice %11 {offsets = [0, 384], sizes = [16, 128], strides = [1, 1]} : vector<16x512xf32> to vector<16x128xf32>
    %cst_15 = arith.constant 5.000000e-01 : f32
    %31 = vector.broadcast %cst_15 : f32 to vector<16x128xf32>
    %32 = arith.mulf %31, %30 : vector<16x128xf32>
    %33 = math.tanh %32 : vector<16x128xf32>
    %cst_16 = arith.constant 1.000000e+00 : f32
    %34 = vector.broadcast %cst_16 : f32 to vector<16x128xf32>
    %35 = arith.addf %33, %34 : vector<16x128xf32>
    %cst_17 = arith.constant 5.000000e-01 : f32
    %36 = vector.broadcast %cst_17 : f32 to vector<16x128xf32>
    %37 = arith.mulf %36, %35 : vector<16x128xf32>
    %38 = arith.mulf %27, %4 : vector<16x128xf32>
    %39 = arith.mulf %19, %29 : vector<16x128xf32>
    %40 = arith.addf %38, %39 : vector<16x128xf32>
    %41 = math.tanh %40 : vector<16x128xf32>
    %42 = arith.mulf %37, %41 : vector<16x128xf32>
    %43 = arith.truncf %42 : vector<16x128xf32> to vector<16x128xbf16>
    %c0_18 = arith.constant 0 : index
    %c0_19 = arith.constant 0 : index
    %c0_20 = arith.constant 0 : index
    %44 = vector.load %arg4[%c0_18, %c0_19, %c0_20] : memref<8x16x128xbf16, #tpu.memory_space<vmem>>, vector<1x16x128xbf16>
    %45 = vector.shape_cast %44 : vector<1x16x128xbf16> to vector<16x128xbf16>
    %46 = vector.shape_cast %43 : vector<16x128xbf16> to vector<1x16x128xbf16>
    tpu.vector_store %arg4[%c0_18, %c0_19, %c0_20], %46 {strides = array<i32>} : memref<8x16x128xbf16, #tpu.memory_space<vmem>>, vector<1x16x128xbf16>,
    %c1 = arith.constant 1 : index
    %c0_21 = arith.constant 0 : index
    %c0_22 = arith.constant 0 : index
    %47 = vector.load %arg1[%c1, %c0_21, %c0_22] : memref<8x16x512xbf16, #tpu.memory_space<vmem>>, vector<1x16x512xbf16>
    %48 = vector.shape_cast %47 : vector<1x16x512xbf16> to vector<16x512xbf16>
    %49 = arith.extf %48 : vector<16x512xbf16> to vector<16x512xf32>
    %50 = arith.truncf %42 : vector<16x128xf32> to vector<16x128xbf16>
    %c0_23 = arith.constant 0 : index
    %c0_24 = arith.constant 0 : index
    %51 = vector.load %arg2[%c0_23, %c0_24] : memref<128x512xbf16, #tpu.memory_space<vmem>>, vector<128x512xbf16>
    %cst_25 = arith.constant dense<0.000000e+00> : vector<16x512xf32>
    %52 = tpu.matmul %50, %51, %cst_25 {dimension_numbers = #tpu.dot_dimension_numbers<[1], [0], [0], [1], [0, 0, 1, 1], [], []>} : vector<16x128xbf16>, vector<128x512xbf16>, vector<16x512xf32> -> vector<16x512xf32>
    %53 = arith.addf %49, %52 : vector<16x512xf32>
    %54 = vector.extract_strided_slice %53 {offsets = [0, 0], sizes = [16, 128], strides = [1, 1]} : vector<16x512xf32> to vector<16x128xf32>
    %cst_26 = arith.constant 5.000000e-01 : f32
    %55 = vector.broadcast %cst_26 : f32 to vector<16x128xf32>
    %56 = arith.mulf %55, %54 : vector<16x128xf32>
    %57 = math.tanh %56 : vector<16x128xf32>
    %cst_27 = arith.constant 1.000000e+00 : f32
    %58 = vector.broadcast %cst_27 : f32 to vector<16x128xf32>
    %59 = arith.addf %57, %58 : vector<16x128xf32>
    %cst_28 = arith.constant 5.000000e-01 : f32
    %60 = vector.broadcast %cst_28 : f32 to vector<16x128xf32>
    %61 = arith.mulf %60, %59 : vector<16x128xf32>
    %62 = vector.extract_strided_slice %53 {offsets = [0, 128], sizes = [16, 128], strides = [1, 1]} : vector<16x512xf32> to vector<16x128xf32>
    %cst_29 = arith.constant 5.000000e-01 : f32
    %63 = vector.broadcast %cst_29 : f32 to vector<16x128xf32>
    %64 = arith.mulf %63, %62 : vector<16x128xf32>
    %65 = math.tanh %64 : vector<16x128xf32>
    %cst_30 = arith.constant 1.000000e+00 : f32
    %66 = vector.broadcast %cst_30 : f32 to vector<16x128xf32>
    %67 = arith.addf %65, %66 : vector<16x128xf32>
    %cst_31 = arith.constant 5.000000e-01 : f32
    %68 = vector.broadcast %cst_31 : f32 to vector<16x128xf32>
    %69 = arith.mulf %68, %67 : vector<16x128xf32>
    %70 = vector.extract_strided_slice %53 {offsets = [0, 256], sizes = [16, 128], strides = [1, 1]} : vector<16x512xf32> to vector<16x128xf32>
    %71 = math.tanh %70 : vector<16x128xf32>
    %72 = vector.extract_strided_slice %53 {offsets = [0, 384], sizes = [16, 128], strides = [1, 1]} : vector<16x512xf32> to vector<16x128xf32>
    %cst_32 = arith.constant 5.000000e-01 : f32
    %73 = vector.broadcast %cst_32 : f32 to vector<16x128xf32>
    %74 = arith.mulf %73, %72 : vector<16x128xf32>
    %75 = math.tanh %74 : vector<16x128xf32>
    %cst_33 = arith.constant 1.000000e+00 : f32
    %76 = vector.broadcast %cst_33 : f32 to vector<16x128xf32>
    %77 = arith.addf %75, %76 : vector<16x128xf32>
    %cst_34 = arith.constant 5.000000e-01 : f32
    %78 = vector.broadcast %cst_34 : f32 to vector<16x128xf32>
    %79 = arith.mulf %78, %77 : vector<16x128xf32>
    %80 = arith.mulf %69, %40 : vector<16x128xf32>
    %81 = arith.mulf %61, %71 : vector<16x128xf32>
    %82 = arith.addf %80, %81 : vector<16x128xf32>
    %83 = math.tanh %82 : vector<16x128xf32>
    %84 = arith.mulf %79, %83 : vector<16x128xf32>
    %85 = arith.truncf %84 : vector<16x128xf32> to vector<16x128xbf16>
    %c1_35 = arith.constant 1 : index
    %c0_36 = arith.constant 0 : index
    %c0_37 = arith.constant 0 : index
    %86 = vector.load %arg4[%c1_35, %c0_36, %c0_37] : memref<8x16x128xbf16, #tpu.memory_space<vmem>>, vector<1x16x128xbf16>
    %87 = vector.shape_cast %86 : vector<1x16x128xbf16> to vector<16x128xbf16>
    %88 = vector.shape_cast %85 : vector<16x128xbf16> to vector<1x16x128xbf16>
    tpu.vector_store %arg4[%c1_35, %c0_36, %c0_37], %88 {strides = array<i32>} : memref<8x16x128xbf16, #tpu.memory_space<vmem>>, vector<1x16x128xbf16>,
    %c2 = arith.constant 2 : index
    %c0_38 = arith.constant 0 : index
    %c0_39 = arith.constant 0 : index
    %89 = vector.load %arg1[%c2, %c0_38, %c0_39] : memref<8x16x512xbf16, #tpu.memory_space<vmem>>, vector<1x16x512xbf16>
    %90 = vector.shape_cast %89 : vector<1x16x512xbf16> to vector<16x512xbf16>
    %91 = arith.extf %90 : vector<16x512xbf16> to vector<16x512xf32>
    %92 = arith.truncf %84 : vector<16x128xf32> to vector<16x128xbf16>
    %c0_40 = arith.constant 0 : index
    %c0_41 = arith.constant 0 : index
    %93 = vector.load %arg2[%c0_40, %c0_41] : memref<128x512xbf16, #tpu.memory_space<vmem>>, vector<128x512xbf16>
    %cst_42 = arith.constant dense<0.000000e+00> : vector<16x512xf32>
    %94 = tpu.matmul %92, %93, %cst_42 {dimension_numbers = #tpu.dot_dimension_numbers<[1], [0], [0], [1], [0, 0, 1, 1], [], []>} : vector<16x128xbf16>, vector<128x512xbf16>, vector<16x512xf32> -> vector<16x512xf32>
    %95 = arith.addf %91, %94 : vector<16x512xf32>
    %96 = vector.extract_strided_slice %95 {offsets = [0, 0], sizes = [16, 128], strides = [1, 1]} : vector<16x512xf32> to vector<16x128xf32>
    %cst_43 = arith.constant 5.000000e-01 : f32
    %97 = vector.broadcast %cst_43 : f32 to vector<16x128xf32>
    %98 = arith.mulf %97, %96 : vector<16x128xf32>
    %99 = math.tanh %98 : vector<16x128xf32>
    %cst_44 = arith.constant 1.000000e+00 : f32
    %100 = vector.broadcast %cst_44 : f32 to vector<16x128xf32>
    %101 = arith.addf %99, %100 : vector<16x128xf32>
    %cst_45 = arith.constant 5.000000e-01 : f32
    %102 = vector.broadcast %cst_45 : f32 to vector<16x128xf32>
    %103 = arith.mulf %102, %101 : vector<16x128xf32>
    %104 = vector.extract_strided_slice %95 {offsets = [0, 128], sizes = [16, 128], strides = [1, 1]} : vector<16x512xf32> to vector<16x128xf32>
    %cst_46 = arith.constant 5.000000e-01 : f32
    %105 = vector.broadcast %cst_46 : f32 to vector<16x128xf32>
    %106 = arith.mulf %105, %104 : vector<16x128xf32>
    %107 = math.tanh %106 : vector<16x128xf32>
    %cst_47 = arith.constant 1.000000e+00 : f32
    %108 = vector.broadcast %cst_47 : f32 to vector<16x128xf32>
    %109 = arith.addf %107, %108 : vector<16x128xf32>
    %cst_48 = arith.constant 5.000000e-01 : f32
    %110 = vector.broadcast %cst_48 : f32 to vector<16x128xf32>
    %111 = arith.mulf %110, %109 : vector<16x128xf32>
    %112 = vector.extract_strided_slice %95 {offsets = [0, 256], sizes = [16, 128], strides = [1, 1]} : vector<16x512xf32> to vector<16x128xf32>
    %113 = math.tanh %112 : vector<16x128xf32>
    %114 = vector.extract_strided_slice %95 {offsets = [0, 384], sizes = [16, 128], strides = [1, 1]} : vector<16x512xf32> to vector<16x128xf32>
    %cst_49 = arith.constant 5.000000e-01 : f32
    %115 = vector.broadcast %cst_49 : f32 to vector<16x128xf32>
    %116 = arith.mulf %115, %114 : vector<16x128xf32>
    %117 = math.tanh %116 : vector<16x128xf32>
    %cst_50 = arith.constant 1.000000e+00 : f32
    %118 = vector.broadcast %cst_50 : f32 to vector<16x128xf32>
    %119 = arith.addf %117, %118 : vector<16x128xf32>
    %cst_51 = arith.constant 5.000000e-01 : f32
    %120 = vector.broadcast %cst_51 : f32 to vector<16x128xf32>
    %121 = arith.mulf %120, %119 : vector<16x128xf32>
    %122 = arith.mulf %111, %82 : vector<16x128xf32>
    %123 = arith.mulf %103, %113 : vector<16x128xf32>
    %124 = arith.addf %122, %123 : vector<16x128xf32>
    %125 = math.tanh %124 : vector<16x128xf32>
    %126 = arith.mulf %121, %125 : vector<16x128xf32>
    %127 = arith.truncf %126 : vector<16x128xf32> to vector<16x128xbf16>
    %c2_52 = arith.constant 2 : index
    %c0_53 = arith.constant 0 : index
    %c0_54 = arith.constant 0 : index
    %128 = vector.load %arg4[%c2_52, %c0_53, %c0_54] : memref<8x16x128xbf16, #tpu.memory_space<vmem>>, vector<1x16x128xbf16>
    %129 = vector.shape_cast %128 : vector<1x16x128xbf16> to vector<16x128xbf16>
    %130 = vector.shape_cast %127 : vector<16x128xbf16> to vector<1x16x128xbf16>
    tpu.vector_store %arg4[%c2_52, %c0_53, %c0_54], %130 {strides = array<i32>} : memref<8x16x128xbf16, #tpu.memory_space<vmem>>, vector<1x16x128xbf16>,
    %c3 = arith.constant 3 : index
    %c0_55 = arith.constant 0 : index
    %c0_56 = arith.constant 0 : index
    %131 = vector.load %arg1[%c3, %c0_55, %c0_56] : memref<8x16x512xbf16, #tpu.memory_space<vmem>>, vector<1x16x512xbf16>
    %132 = vector.shape_cast %131 : vector<1x16x512xbf16> to vector<16x512xbf16>
    %133 = arith.extf %132 : vector<16x512xbf16> to vector<16x512xf32>
    %134 = arith.truncf %126 : vector<16x128xf32> to vector<16x128xbf16>
    %c0_57 = arith.constant 0 : index
    %c0_58 = arith.constant 0 : index
    %135 = vector.load %arg2[%c0_57, %c0_58] : memref<128x512xbf16, #tpu.memory_space<vmem>>, vector<128x512xbf16>
    %cst_59 = arith.constant dense<0.000000e+00> : vector<16x512xf32>
    %136 = tpu.matmul %134, %135, %cst_59 {dimension_numbers = #tpu.dot_dimension_numbers<[1], [0], [0], [1], [0, 0, 1, 1], [], []>} : vector<16x128xbf16>, vector<128x512xbf16>, vector<16x512xf32> -> vector<16x512xf32>
    %137 = arith.addf %133, %136 : vector<16x512xf32>
    %138 = vector.extract_strided_slice %137 {offsets = [0, 0], sizes = [16, 128], strides = [1, 1]} : vector<16x512xf32> to vector<16x128xf32>
    %cst_60 = arith.constant 5.000000e-01 : f32
    %139 = vector.broadcast %cst_60 : f32 to vector<16x128xf32>
    %140 = arith.mulf %139, %138 : vector<16x128xf32>
    %141 = math.tanh %140 : vector<16x128xf32>
    %cst_61 = arith.constant 1.000000e+00 : f32
    %142 = vector.broadcast %cst_61 : f32 to vector<16x128xf32>
    %143 = arith.addf %141, %142 : vector<16x128xf32>
    %cst_62 = arith.constant 5.000000e-01 : f32
    %144 = vector.broadcast %cst_62 : f32 to vector<16x128xf32>
    %145 = arith.mulf %144, %143 : vector<16x128xf32>
    %146 = vector.extract_strided_slice %137 {offsets = [0, 128], sizes = [16, 128], strides = [1, 1]} : vector<16x512xf32> to vector<16x128xf32>
    %cst_63 = arith.constant 5.000000e-01 : f32
    %147 = vector.broadcast %cst_63 : f32 to vector<16x128xf32>
    %148 = arith.mulf %147, %146 : vector<16x128xf32>
    %149 = math.tanh %148 : vector<16x128xf32>
    %cst_64 = arith.constant 1.000000e+00 : f32
    %150 = vector.broadcast %cst_64 : f32 to vector<16x128xf32>
    %151 = arith.addf %149, %150 : vector<16x128xf32>
    %cst_65 = arith.constant 5.000000e-01 : f32
    %152 = vector.broadcast %cst_65 : f32 to vector<16x128xf32>
    %153 = arith.mulf %152, %151 : vector<16x128xf32>
    %154 = vector.extract_strided_slice %137 {offsets = [0, 256], sizes = [16, 128], strides = [1, 1]} : vector<16x512xf32> to vector<16x128xf32>
    %155 = math.tanh %154 : vector<16x128xf32>
    %156 = vector.extract_strided_slice %137 {offsets = [0, 384], sizes = [16, 128], strides = [1, 1]} : vector<16x512xf32> to vector<16x128xf32>
    %cst_66 = arith.constant 5.000000e-01 : f32
    %157 = vector.broadcast %cst_66 : f32 to vector<16x128xf32>
    %158 = arith.mulf %157, %156 : vector<16x128xf32>
    %159 = math.tanh %158 : vector<16x128xf32>
    %cst_67 = arith.constant 1.000000e+00 : f32
    %160 = vector.broadcast %cst_67 : f32 to vector<16x128xf32>
    %161 = arith.addf %159, %160 : vector<16x128xf32>
    %cst_68 = arith.constant 5.000000e-01 : f32
    %162 = vector.broadcast %cst_68 : f32 to vector<16x128xf32>
    %163 = arith.mulf %162, %161 : vector<16x128xf32>
    %164 = arith.mulf %153, %124 : vector<16x128xf32>
    %165 = arith.mulf %145, %155 : vector<16x128xf32>
    %166 = arith.addf %164, %165 : vector<16x128xf32>
    %167 = math.tanh %166 : vector<16x128xf32>
    %168 = arith.mulf %163, %167 : vector<16x128xf32>
    %169 = arith.truncf %168 : vector<16x128xf32> to vector<16x128xbf16>
    %c3_69 = arith.constant 3 : index
    %c0_70 = arith.constant 0 : index
    %c0_71 = arith.constant 0 : index
    %170 = vector.load %arg4[%c3_69, %c0_70, %c0_71] : memref<8x16x128xbf16, #tpu.memory_space<vmem>>, vector<1x16x128xbf16>
    %171 = vector.shape_cast %170 : vector<1x16x128xbf16> to vector<16x128xbf16>
    %172 = vector.shape_cast %169 : vector<16x128xbf16> to vector<1x16x128xbf16>
    tpu.vector_store %arg4[%c3_69, %c0_70, %c0_71], %172 {strides = array<i32>} : memref<8x16x128xbf16, #tpu.memory_space<vmem>>, vector<1x16x128xbf16>,
    %c4 = arith.constant 4 : index
    %c0_72 = arith.constant 0 : index
    %c0_73 = arith.constant 0 : index
    %173 = vector.load %arg1[%c4, %c0_72, %c0_73] : memref<8x16x512xbf16, #tpu.memory_space<vmem>>, vector<1x16x512xbf16>
    %174 = vector.shape_cast %173 : vector<1x16x512xbf16> to vector<16x512xbf16>
    %175 = arith.extf %174 : vector<16x512xbf16> to vector<16x512xf32>
    %176 = arith.truncf %168 : vector<16x128xf32> to vector<16x128xbf16>
    %c0_74 = arith.constant 0 : index
    %c0_75 = arith.constant 0 : index
    %177 = vector.load %arg2[%c0_74, %c0_75] : memref<128x512xbf16, #tpu.memory_space<vmem>>, vector<128x512xbf16>
    %cst_76 = arith.constant dense<0.000000e+00> : vector<16x512xf32>
    %178 = tpu.matmul %176, %177, %cst_76 {dimension_numbers = #tpu.dot_dimension_numbers<[1], [0], [0], [1], [0, 0, 1, 1], [], []>} : vector<16x128xbf16>, vector<128x512xbf16>, vector<16x512xf32> -> vector<16x512xf32>
    %179 = arith.addf %175, %178 : vector<16x512xf32>
    %180 = vector.extract_strided_slice %179 {offsets = [0, 0], sizes = [16, 128], strides = [1, 1]} : vector<16x512xf32> to vector<16x128xf32>
    %cst_77 = arith.constant 5.000000e-01 : f32
    %181 = vector.broadcast %cst_77 : f32 to vector<16x128xf32>
    %182 = arith.mulf %181, %180 : vector<16x128xf32>
    %183 = math.tanh %182 : vector<16x128xf32>
    %cst_78 = arith.constant 1.000000e+00 : f32
    %184 = vector.broadcast %cst_78 : f32 to vector<16x128xf32>
    %185 = arith.addf %183, %184 : vector<16x128xf32>
    %cst_79 = arith.constant 5.000000e-01 : f32
    %186 = vector.broadcast %cst_79 : f32 to vector<16x128xf32>
    %187 = arith.mulf %186, %185 : vector<16x128xf32>
    %188 = vector.extract_strided_slice %179 {offsets = [0, 128], sizes = [16, 128], strides = [1, 1]} : vector<16x512xf32> to vector<16x128xf32>
    %cst_80 = arith.constant 5.000000e-01 : f32
    %189 = vector.broadcast %cst_80 : f32 to vector<16x128xf32>
    %190 = arith.mulf %189, %188 : vector<16x128xf32>
    %191 = math.tanh %190 : vector<16x128xf32>
    %cst_81 = arith.constant 1.000000e+00 : f32
    %192 = vector.broadcast %cst_81 : f32 to vector<16x128xf32>
    %193 = arith.addf %191, %192 : vector<16x128xf32>
    %cst_82 = arith.constant 5.000000e-01 : f32
    %194 = vector.broadcast %cst_82 : f32 to vector<16x128xf32>
    %195 = arith.mulf %194, %193 : vector<16x128xf32>
    %196 = vector.extract_strided_slice %179 {offsets = [0, 256], sizes = [16, 128], strides = [1, 1]} : vector<16x512xf32> to vector<16x128xf32>
    %197 = math.tanh %196 : vector<16x128xf32>
    %198 = vector.extract_strided_slice %179 {offsets = [0, 384], sizes = [16, 128], strides = [1, 1]} : vector<16x512xf32> to vector<16x128xf32>
    %cst_83 = arith.constant 5.000000e-01 : f32
    %199 = vector.broadcast %cst_83 : f32 to vector<16x128xf32>
    %200 = arith.mulf %199, %198 : vector<16x128xf32>
    %201 = math.tanh %200 : vector<16x128xf32>
    %cst_84 = arith.constant 1.000000e+00 : f32
    %202 = vector.broadcast %cst_84 : f32 to vector<16x128xf32>
    %203 = arith.addf %201, %202 : vector<16x128xf32>
    %cst_85 = arith.constant 5.000000e-01 : f32
    %204 = vector.broadcast %cst_85 : f32 to vector<16x128xf32>
    %205 = arith.mulf %204, %203 : vector<16x128xf32>
    %206 = arith.mulf %195, %166 : vector<16x128xf32>
    %207 = arith.mulf %187, %197 : vector<16x128xf32>
    %208 = arith.addf %206, %207 : vector<16x128xf32>
    %209 = math.tanh %208 : vector<16x128xf32>
    %210 = arith.mulf %205, %209 : vector<16x128xf32>
    %211 = arith.truncf %210 : vector<16x128xf32> to vector<16x128xbf16>
    %c4_86 = arith.constant 4 : index
    %c0_87 = arith.constant 0 : index
    %c0_88 = arith.constant 0 : index
    %212 = vector.load %arg4[%c4_86, %c0_87, %c0_88] : memref<8x16x128xbf16, #tpu.memory_space<vmem>>, vector<1x16x128xbf16>
    %213 = vector.shape_cast %212 : vector<1x16x128xbf16> to vector<16x128xbf16>
    %214 = vector.shape_cast %211 : vector<16x128xbf16> to vector<1x16x128xbf16>
    tpu.vector_store %arg4[%c4_86, %c0_87, %c0_88], %214 {strides = array<i32>} : memref<8x16x128xbf16, #tpu.memory_space<vmem>>, vector<1x16x128xbf16>,
    %c5 = arith.constant 5 : index
    %c0_89 = arith.constant 0 : index
    %c0_90 = arith.constant 0 : index
    %215 = vector.load %arg1[%c5, %c0_89, %c0_90] : memref<8x16x512xbf16, #tpu.memory_space<vmem>>, vector<1x16x512xbf16>
    %216 = vector.shape_cast %215 : vector<1x16x512xbf16> to vector<16x512xbf16>
    %217 = arith.extf %216 : vector<16x512xbf16> to vector<16x512xf32>
    %218 = arith.truncf %210 : vector<16x128xf32> to vector<16x128xbf16>
    %c0_91 = arith.constant 0 : index
    %c0_92 = arith.constant 0 : index
    %219 = vector.load %arg2[%c0_91, %c0_92] : memref<128x512xbf16, #tpu.memory_space<vmem>>, vector<128x512xbf16>
    %cst_93 = arith.constant dense<0.000000e+00> : vector<16x512xf32>
    %220 = tpu.matmul %218, %219, %cst_93 {dimension_numbers = #tpu.dot_dimension_numbers<[1], [0], [0], [1], [0, 0, 1, 1], [], []>} : vector<16x128xbf16>, vector<128x512xbf16>, vector<16x512xf32> -> vector<16x512xf32>
    %221 = arith.addf %217, %220 : vector<16x512xf32>
    %222 = vector.extract_strided_slice %221 {offsets = [0, 0], sizes = [16, 128], strides = [1, 1]} : vector<16x512xf32> to vector<16x128xf32>
    %cst_94 = arith.constant 5.000000e-01 : f32
    %223 = vector.broadcast %cst_94 : f32 to vector<16x128xf32>
    %224 = arith.mulf %223, %222 : vector<16x128xf32>
    %225 = math.tanh %224 : vector<16x128xf32>
    %cst_95 = arith.constant 1.000000e+00 : f32
    %226 = vector.broadcast %cst_95 : f32 to vector<16x128xf32>
    %227 = arith.addf %225, %226 : vector<16x128xf32>
    %cst_96 = arith.constant 5.000000e-01 : f32
    %228 = vector.broadcast %cst_96 : f32 to vector<16x128xf32>
    %229 = arith.mulf %228, %227 : vector<16x128xf32>
    %230 = vector.extract_strided_slice %221 {offsets = [0, 128], sizes = [16, 128], strides = [1, 1]} : vector<16x512xf32> to vector<16x128xf32>
    %cst_97 = arith.constant 5.000000e-01 : f32
    %231 = vector.broadcast %cst_97 : f32 to vector<16x128xf32>
    %232 = arith.mulf %231, %230 : vector<16x128xf32>
    %233 = math.tanh %232 : vector<16x128xf32>
    %cst_98 = arith.constant 1.000000e+00 : f32
    %234 = vector.broadcast %cst_98 : f32 to vector<16x128xf32>
    %235 = arith.addf %233, %234 : vector<16x128xf32>
    %cst_99 = arith.constant 5.000000e-01 : f32
    %236 = vector.broadcast %cst_99 : f32 to vector<16x128xf32>
    %237 = arith.mulf %236, %235 : vector<16x128xf32>
    %238 = vector.extract_strided_slice %221 {offsets = [0, 256], sizes = [16, 128], strides = [1, 1]} : vector<16x512xf32> to vector<16x128xf32>
    %239 = math.tanh %238 : vector<16x128xf32>
    %240 = vector.extract_strided_slice %221 {offsets = [0, 384], sizes = [16, 128], strides = [1, 1]} : vector<16x512xf32> to vector<16x128xf32>
    %cst_100 = arith.constant 5.000000e-01 : f32
    %241 = vector.broadcast %cst_100 : f32 to vector<16x128xf32>
    %242 = arith.mulf %241, %240 : vector<16x128xf32>
    %243 = math.tanh %242 : vector<16x128xf32>
    %cst_101 = arith.constant 1.000000e+00 : f32
    %244 = vector.broadcast %cst_101 : f32 to vector<16x128xf32>
    %245 = arith.addf %243, %244 : vector<16x128xf32>
    %cst_102 = arith.constant 5.000000e-01 : f32
    %246 = vector.broadcast %cst_102 : f32 to vector<16x128xf32>
    %247 = arith.mulf %246, %245 : vector<16x128xf32>
    %248 = arith.mulf %237, %208 : vector<16x128xf32>
    %249 = arith.mulf %229, %239 : vector<16x128xf32>
    %250 = arith.addf %248, %249 : vector<16x128xf32>
    %251 = math.tanh %250 : vector<16x128xf32>
    %252 = arith.mulf %247, %251 : vector<16x128xf32>
    %253 = arith.truncf %252 : vector<16x128xf32> to vector<16x128xbf16>
    %c5_103 = arith.constant 5 : index
    %c0_104 = arith.constant 0 : index
    %c0_105 = arith.constant 0 : index
    %254 = vector.load %arg4[%c5_103, %c0_104, %c0_105] : memref<8x16x128xbf16, #tpu.memory_space<vmem>>, vector<1x16x128xbf16>
    %255 = vector.shape_cast %254 : vector<1x16x128xbf16> to vector<16x128xbf16>
    %256 = vector.shape_cast %253 : vector<16x128xbf16> to vector<1x16x128xbf16>
    tpu.vector_store %arg4[%c5_103, %c0_104, %c0_105], %256 {strides = array<i32>} : memref<8x16x128xbf16, #tpu.memory_space<vmem>>, vector<1x16x128xbf16>,
    %c6 = arith.constant 6 : index
    %c0_106 = arith.constant 0 : index
    %c0_107 = arith.constant 0 : index
    %257 = vector.load %arg1[%c6, %c0_106, %c0_107] : memref<8x16x512xbf16, #tpu.memory_space<vmem>>, vector<1x16x512xbf16>
    %258 = vector.shape_cast %257 : vector<1x16x512xbf16> to vector<16x512xbf16>
    %259 = arith.extf %258 : vector<16x512xbf16> to vector<16x512xf32>
    %260 = arith.truncf %252 : vector<16x128xf32> to vector<16x128xbf16>
    %c0_108 = arith.constant 0 : index
    %c0_109 = arith.constant 0 : index
    %261 = vector.load %arg2[%c0_108, %c0_109] : memref<128x512xbf16, #tpu.memory_space<vmem>>, vector<128x512xbf16>
    %cst_110 = arith.constant dense<0.000000e+00> : vector<16x512xf32>
    %262 = tpu.matmul %260, %261, %cst_110 {dimension_numbers = #tpu.dot_dimension_numbers<[1], [0], [0], [1], [0, 0, 1, 1], [], []>} : vector<16x128xbf16>, vector<128x512xbf16>, vector<16x512xf32> -> vector<16x512xf32>
    %263 = arith.addf %259, %262 : vector<16x512xf32>
    %264 = vector.extract_strided_slice %263 {offsets = [0, 0], sizes = [16, 128], strides = [1, 1]} : vector<16x512xf32> to vector<16x128xf32>
    %cst_111 = arith.constant 5.000000e-01 : f32
    %265 = vector.broadcast %cst_111 : f32 to vector<16x128xf32>
    %266 = arith.mulf %265, %264 : vector<16x128xf32>
    %267 = math.tanh %266 : vector<16x128xf32>
    %cst_112 = arith.constant 1.000000e+00 : f32
    %268 = vector.broadcast %cst_112 : f32 to vector<16x128xf32>
    %269 = arith.addf %267, %268 : vector<16x128xf32>
    %cst_113 = arith.constant 5.000000e-01 : f32
    %270 = vector.broadcast %cst_113 : f32 to vector<16x128xf32>
    %271 = arith.mulf %270, %269 : vector<16x128xf32>
    %272 = vector.extract_strided_slice %263 {offsets = [0, 128], sizes = [16, 128], strides = [1, 1]} : vector<16x512xf32> to vector<16x128xf32>
    %cst_114 = arith.constant 5.000000e-01 : f32
    %273 = vector.broadcast %cst_114 : f32 to vector<16x128xf32>
    %274 = arith.mulf %273, %272 : vector<16x128xf32>
    %275 = math.tanh %274 : vector<16x128xf32>
    %cst_115 = arith.constant 1.000000e+00 : f32
    %276 = vector.broadcast %cst_115 : f32 to vector<16x128xf32>
    %277 = arith.addf %275, %276 : vector<16x128xf32>
    %cst_116 = arith.constant 5.000000e-01 : f32
    %278 = vector.broadcast %cst_116 : f32 to vector<16x128xf32>
    %279 = arith.mulf %278, %277 : vector<16x128xf32>
    %280 = vector.extract_strided_slice %263 {offsets = [0, 256], sizes = [16, 128], strides = [1, 1]} : vector<16x512xf32> to vector<16x128xf32>
    %281 = math.tanh %280 : vector<16x128xf32>
    %282 = vector.extract_strided_slice %263 {offsets = [0, 384], sizes = [16, 128], strides = [1, 1]} : vector<16x512xf32> to vector<16x128xf32>
    %cst_117 = arith.constant 5.000000e-01 : f32
    %283 = vector.broadcast %cst_117 : f32 to vector<16x128xf32>
    %284 = arith.mulf %283, %282 : vector<16x128xf32>
    %285 = math.tanh %284 : vector<16x128xf32>
    %cst_118 = arith.constant 1.000000e+00 : f32
    %286 = vector.broadcast %cst_118 : f32 to vector<16x128xf32>
    %287 = arith.addf %285, %286 : vector<16x128xf32>
    %cst_119 = arith.constant 5.000000e-01 : f32
    %288 = vector.broadcast %cst_119 : f32 to vector<16x128xf32>
    %289 = arith.mulf %288, %287 : vector<16x128xf32>
    %290 = arith.mulf %279, %250 : vector<16x128xf32>
    %291 = arith.mulf %271, %281 : vector<16x128xf32>
    %292 = arith.addf %290, %291 : vector<16x128xf32>
    %293 = math.tanh %292 : vector<16x128xf32>
    %294 = arith.mulf %289, %293 : vector<16x128xf32>
    %295 = arith.truncf %294 : vector<16x128xf32> to vector<16x128xbf16>
    %c6_120 = arith.constant 6 : index
    %c0_121 = arith.constant 0 : index
    %c0_122 = arith.constant 0 : index
    %296 = vector.load %arg4[%c6_120, %c0_121, %c0_122] : memref<8x16x128xbf16, #tpu.memory_space<vmem>>, vector<1x16x128xbf16>
    %297 = vector.shape_cast %296 : vector<1x16x128xbf16> to vector<16x128xbf16>
    %298 = vector.shape_cast %295 : vector<16x128xbf16> to vector<1x16x128xbf16>
    tpu.vector_store %arg4[%c6_120, %c0_121, %c0_122], %298 {strides = array<i32>} : memref<8x16x128xbf16, #tpu.memory_space<vmem>>, vector<1x16x128xbf16>,
    %c7 = arith.constant 7 : index
    %c0_123 = arith.constant 0 : index
    %c0_124 = arith.constant 0 : index
    %299 = vector.load %arg1[%c7, %c0_123, %c0_124] : memref<8x16x512xbf16, #tpu.memory_space<vmem>>, vector<1x16x512xbf16>
    %300 = vector.shape_cast %299 : vector<1x16x512xbf16> to vector<16x512xbf16>
    %301 = arith.extf %300 : vector<16x512xbf16> to vector<16x512xf32>
    %302 = arith.truncf %294 : vector<16x128xf32> to vector<16x128xbf16>
    %c0_125 = arith.constant 0 : index
    %c0_126 = arith.constant 0 : index
    %303 = vector.load %arg2[%c0_125, %c0_126] : memref<128x512xbf16, #tpu.memory_space<vmem>>, vector<128x512xbf16>
    %cst_127 = arith.constant dense<0.000000e+00> : vector<16x512xf32>
    %304 = tpu.matmul %302, %303, %cst_127 {dimension_numbers = #tpu.dot_dimension_numbers<[1], [0], [0], [1], [0, 0, 1, 1], [], []>} : vector<16x128xbf16>, vector<128x512xbf16>, vector<16x512xf32> -> vector<16x512xf32>
    %305 = arith.addf %301, %304 : vector<16x512xf32>
    %306 = vector.extract_strided_slice %305 {offsets = [0, 0], sizes = [16, 128], strides = [1, 1]} : vector<16x512xf32> to vector<16x128xf32>
    %cst_128 = arith.constant 5.000000e-01 : f32
    %307 = vector.broadcast %cst_128 : f32 to vector<16x128xf32>
    %308 = arith.mulf %307, %306 : vector<16x128xf32>
    %309 = math.tanh %308 : vector<16x128xf32>
    %cst_129 = arith.constant 1.000000e+00 : f32
    %310 = vector.broadcast %cst_129 : f32 to vector<16x128xf32>
    %311 = arith.addf %309, %310 : vector<16x128xf32>
    %cst_130 = arith.constant 5.000000e-01 : f32
    %312 = vector.broadcast %cst_130 : f32 to vector<16x128xf32>
    %313 = arith.mulf %312, %311 : vector<16x128xf32>
    %314 = vector.extract_strided_slice %305 {offsets = [0, 128], sizes = [16, 128], strides = [1, 1]} : vector<16x512xf32> to vector<16x128xf32>
    %cst_131 = arith.constant 5.000000e-01 : f32
    %315 = vector.broadcast %cst_131 : f32 to vector<16x128xf32>
    %316 = arith.mulf %315, %314 : vector<16x128xf32>
    %317 = math.tanh %316 : vector<16x128xf32>
    %cst_132 = arith.constant 1.000000e+00 : f32
    %318 = vector.broadcast %cst_132 : f32 to vector<16x128xf32>
    %319 = arith.addf %317, %318 : vector<16x128xf32>
    %cst_133 = arith.constant 5.000000e-01 : f32
    %320 = vector.broadcast %cst_133 : f32 to vector<16x128xf32>
    %321 = arith.mulf %320, %319 : vector<16x128xf32>
    %322 = vector.extract_strided_slice %305 {offsets = [0, 256], sizes = [16, 128], strides = [1, 1]} : vector<16x512xf32> to vector<16x128xf32>
    %323 = math.tanh %322 : vector<16x128xf32>
    %324 = vector.extract_strided_slice %305 {offsets = [0, 384], sizes = [16, 128], strides = [1, 1]} : vector<16x512xf32> to vector<16x128xf32>
    %cst_134 = arith.constant 5.000000e-01 : f32
    %325 = vector.broadcast %cst_134 : f32 to vector<16x128xf32>
    %326 = arith.mulf %325, %324 : vector<16x128xf32>
    %327 = math.tanh %326 : vector<16x128xf32>
    %cst_135 = arith.constant 1.000000e+00 : f32
    %328 = vector.broadcast %cst_135 : f32 to vector<16x128xf32>
    %329 = arith.addf %327, %328 : vector<16x128xf32>
    %cst_136 = arith.constant 5.000000e-01 : f32
    %330 = vector.broadcast %cst_136 : f32 to vector<16x128xf32>
    %331 = arith.mulf %330, %329 : vector<16x128xf32>
    %332 = arith.mulf %321, %292 : vector<16x128xf32>
    %333 = arith.mulf %313, %323 : vector<16x128xf32>
    %334 = arith.addf %332, %333 : vector<16x128xf32>
    %335 = math.tanh %334 : vector<16x128xf32>
    %336 = arith.mulf %331, %335 : vector<16x128xf32>
    %337 = arith.truncf %336 : vector<16x128xf32> to vector<16x128xbf16>
    %c7_137 = arith.constant 7 : index
    %c0_138 = arith.constant 0 : index
    %c0_139 = arith.constant 0 : index
    %338 = vector.load %arg4[%c7_137, %c0_138, %c0_139] : memref<8x16x128xbf16, #tpu.memory_space<vmem>>, vector<1x16x128xbf16>
    %339 = vector.shape_cast %338 : vector<1x16x128xbf16> to vector<16x128xbf16>
    %340 = vector.shape_cast %337 : vector<16x128xbf16> to vector<1x16x128xbf16>
    tpu.vector_store %arg4[%c7_137, %c0_138, %c0_139], %340 {strides = array<i32>} : memref<8x16x128xbf16, #tpu.memory_space<vmem>>, vector<1x16x128xbf16>,
    %c0_140 = arith.constant 0 : index
    %c0_141 = arith.constant 0 : index
    %341 = vector.load %arg5[%c0_140, %c0_141] : memref<16x128xf32, #tpu.memory_space<vmem>>, vector<16x128xf32>
    tpu.vector_store %arg5[%c0_140, %c0_141], %336 {strides = array<i32>} : memref<16x128xf32, #tpu.memory_space<vmem>>, vector<16x128xf32>,
    %c0_142 = arith.constant 0 : index
    %c0_143 = arith.constant 0 : index
    %342 = vector.load %arg6[%c0_142, %c0_143] : memref<16x128xf32, #tpu.memory_space<vmem>>, vector<16x128xf32>
    tpu.vector_store %arg6[%c0_142, %c0_143], %334 {strides = array<i32>} : memref<16x128xf32, #tpu.memory_space<vmem>>, vector<16x128xf32>,
    return
  }
  func.func @transform_0(%arg0: i32) -> (i32, i32, i32) {
    %c0_i32 = arith.constant 0 : i32
    %c0_i32_0 = arith.constant 0 : i32
    %c0_i32_1 = arith.constant 0 : i32
    return %arg0, %c0_i32, %c0_i32_0 : i32, i32, i32
  }
  func.func @transform_1(%arg0: i32) -> (i32, i32) {
    %c0_i32 = arith.constant 0 : i32
    %c0_i32_0 = arith.constant 0 : i32
    %c0_i32_1 = arith.constant 0 : i32
    return %c0_i32, %c0_i32_0 : i32, i32
  }
  func.func @transform_2(%arg0: i32) -> (i32, i32) {
    %c0_i32 = arith.constant 0 : i32
    %c0_i32_0 = arith.constant 0 : i32
    %c0_i32_1 = arith.constant 0 : i32
    return %c0_i32, %c0_i32_0 : i32, i32
  }
  func.func @transform_3(%arg0: i32) -> (i32, i32, i32) {
    %c0_i32 = arith.constant 0 : i32
    %c0_i32_0 = arith.constant 0 : i32
    %c0_i32_1 = arith.constant 0 : i32
    return %arg0, %c0_i32, %c0_i32_0 : i32, i32, i32
  }
}

module attributes {stable_mosaic.version = 11 : i64} {
  func.func @_mm_bias_kernel(%arg0: i32, %arg1: memref<128x128xbf16, #tpu.memory_space<vmem>>, %arg2: memref<128x512xbf16, #tpu.memory_space<vmem>>, %arg3: memref<1x512xf32, #tpu.memory_space<vmem>>, %arg4: memref<128x512xf32, #tpu.memory_space<vmem>>) attributes {dimension_semantics = [#tpu.dimension_semantics<parallel>], iteration_bounds = array<i64: 1>, scalar_prefetch = 0 : i64, scratch_operands = 0 : i64, tpu.core_type = #tpu.core_type<tc>, window_params = [{transform_indices = @transform_0, window_bounds = array<i64: 128, 128>}, {pipeline_mode = #tpu.pipeline_mode<synchronous>, transform_indices = @transform_1, window_bounds = array<i64: 128, 512>}, {pipeline_mode = #tpu.pipeline_mode<synchronous>, transform_indices = @transform_2, window_bounds = array<i64: 1, 512>}, {transform_indices = @transform_3, window_bounds = array<i64: 128, 512>}]} {
    %c0 = arith.constant 0 : index
    %c0_0 = arith.constant 0 : index
    %0 = vector.load %arg1[%c0, %c0_0] : memref<128x128xbf16, #tpu.memory_space<vmem>>, vector<128x128xbf16>
    %c0_1 = arith.constant 0 : index
    %c0_2 = arith.constant 0 : index
    %1 = vector.load %arg2[%c0_1, %c0_2] : memref<128x512xbf16, #tpu.memory_space<vmem>>, vector<128x512xbf16>
    %cst = arith.constant dense<0.000000e+00> : vector<128x512xf32>
    %2 = tpu.matmul %0, %1, %cst {dimension_numbers = #tpu.dot_dimension_numbers<[1], [0], [0], [1], [0, 0, 1, 1], [], []>} : vector<128x128xbf16>, vector<128x512xbf16>, vector<128x512xf32> -> vector<128x512xf32>
    %c0_3 = arith.constant 0 : index
    %c0_4 = arith.constant 0 : index
    %3 = vector.load %arg3[%c0_3, %c0_4] : memref<1x512xf32, #tpu.memory_space<vmem>>, vector<1x512xf32>
    %4 = vector.broadcast %3 : vector<1x512xf32> to vector<128x512xf32>
    %5 = arith.addf %2, %4 : vector<128x512xf32>
    %c0_5 = arith.constant 0 : index
    %c0_6 = arith.constant 0 : index
    %6 = vector.load %arg4[%c0_5, %c0_6] : memref<128x512xf32, #tpu.memory_space<vmem>>, vector<128x512xf32>
    tpu.vector_store %arg4[%c0_5, %c0_6], %5 {strides = array<i32>} : memref<128x512xf32, #tpu.memory_space<vmem>>, vector<128x512xf32>,
    return
  }
  func.func @transform_0(%arg0: i32) -> (i32, i32) {
    %c0_i32 = arith.constant 0 : i32
    %c0_i32_0 = arith.constant 0 : i32
    return %arg0, %c0_i32 : i32, i32
  }
  func.func @transform_1(%arg0: i32) -> (i32, i32) {
    %c0_i32 = arith.constant 0 : i32
    %c0_i32_0 = arith.constant 0 : i32
    %c0_i32_1 = arith.constant 0 : i32
    return %c0_i32, %c0_i32_0 : i32, i32
  }
  func.func @transform_2(%arg0: i32) -> (i32, i32) {
    %c0_i32 = arith.constant 0 : i32
    %c0_i32_0 = arith.constant 0 : i32
    %c0_i32_1 = arith.constant 0 : i32
    return %c0_i32, %c0_i32_0 : i32, i32
  }
  func.func @transform_3(%arg0: i32) -> (i32, i32) {
    %c0_i32 = arith.constant 0 : i32
    %c0_i32_0 = arith.constant 0 : i32
    return %arg0, %c0_i32 : i32, i32
  }
}

</mosaic_0001>

<llo_original>
// kernel: rnn_forward.5
$region0: #{rnn_forward.5}
  #allocation0 [shape = 'u32[]', space=smem, size = 0x4, offset = 0x4, fixed_abs, tag = 'smem constant byte address 0x4 - core index']
  #allocation1 [shape = 'u32[72,128]{1,0:T(1,128)}', space=vmem, size = 0x9000, scoped, tag = 'internal scratch']
  %s0 = inlined_call_operand.vmem [shape: bf16[128,128], index: 0, kind: input, shape index: {}]
  %s1 = inlined_call_operand.vmem [shape: bf16[128,512], index: 1, kind: input, shape index: {}]
  %s2 = inlined_call_operand.vmem [shape: f32[1,512], index: 2, kind: input, shape index: {}]
  %s3 = inlined_call_operand.vmem [shape: bf16[128,512], index: 3, kind: output, shape index: {}]
  %s4 = sld [smem:[#allocation0]]
  $region22: #{rnn_forward.5} parent=0
    _
  %s6 = ssub.s32 1, %s4
  %s7 = scalar_select 0, %s6, %s4
  // Predicated region
  $region2: #{rnn_forward.5} parent=0 // pred_check
    _
  $region3: #{rnn_forward.5} parent=0 // pred_check_branch
    %9 = sbr.rel (0) target = $region5
  $region4: #{rnn_forward.5} parent=0 // pred_region
    _
  $region5: #{rnn_forward.5} parent=0 // pred_fallthru
    _
  // Predicated region
  $region6: #{rnn_forward.5} parent=0 // pred_check
    _
  $region7: #{rnn_forward.5} parent=0 // pred_check_branch
    %11 = sbr.rel (0) target = $region9
  $region8: #{rnn_forward.5} parent=0 // pred_region
    _
  $region9: #{rnn_forward.5} parent=0 // pred_fallthru
    _
  // Predicated region
  $region10: #{rnn_forward.5} parent=0 // pred_check
    _
  $region11: #{rnn_forward.5} parent=0 // pred_check_branch
    %13 = sbr.rel (0) target = $region13
  $region12: #{rnn_forward.5} parent=0 // pred_region
    _
  $region13: #{rnn_forward.5} parent=0 // pred_fallthru
    _
  %v14 = vld [vmem:[%s0] sm:$0xf]
  %v15 = vld [vmem:[%s0 + $0x4] sm:$0xf]
  %v16 = vld [vmem:[%s0 + $0x8] sm:$0xf]
  %v17 = vld [vmem:[%s0 + $0xc] sm:$0xf]
  %v18 = vld [vmem:[%s0 + $0x10] sm:$0xf]
  %v19 = vld [vmem:[%s0 + $0x14] sm:$0xf]
  %v20 = vld [vmem:[%s0 + $0x18] sm:$0xf]
  %v21 = vld [vmem:[%s0 + $0x1c] sm:$0xf]
  %v22 = vld [vmem:[%s0 + $0x20] sm:$0xf]
  %v23 = vld [vmem:[%s0 + $0x24] sm:$0xf]
  %v24 = vld [vmem:[%s0 + $0x28] sm:$0xf]
  %v25 = vld [vmem:[%s0 + $0x2c] sm:$0xf]
  %v26 = vld [vmem:[%s0 + $0x30] sm:$0xf]
  %v27 = vld [vmem:[%s0 + $0x34] sm:$0xf]
  %v28 = vld [vmem:[%s0 + $0x38] sm:$0xf]
  %v29 = vld [vmem:[%s0 + $0x3c] sm:$0xf]
  %v30 = vld [vmem:[%s1] sm:$0xff]
  %v31 = vld [vmem:[%s1 + $0x8] sm:$0xff]
  %v32 = vld [vmem:[%s1 + $0x10] sm:$0xff]
  %v33 = vld [vmem:[%s1 + $0x18] sm:$0xff]
  %v34 = vld [vmem:[%s1 + $0x20] sm:$0xff]
  %v35 = vld [vmem:[%s1 + $0x28] sm:$0xff]
  %v36 = vld [vmem:[%s1 + $0x30] sm:$0xff]
  %v37 = vld [vmem:[%s1 + $0x38] sm:$0xff]
  %v38 = vld [vmem:[%s1 + $0x40] sm:$0xff]
  %v39 = vld [vmem:[%s1 + $0x48] sm:$0xff]
  %v40 = vld [vmem:[%s1 + $0x50] sm:$0xff]
  %v41 = vld [vmem:[%s1 + $0x58] sm:$0xff]
  %v42 = vld [vmem:[%s1 + $0x60] sm:$0xff]
  %v43 = vld [vmem:[%s1 + $0x68] sm:$0xff]
  %v44 = vld [vmem:[%s1 + $0x70] sm:$0xff]
  %v45 = vld [vmem:[%s1 + $0x78] sm:$0xff]
  %v46 = vld [vmem:[%s1 + $0x80] sm:$0xff]
  %v47 = vld [vmem:[%s1 + $0x88] sm:$0xff]
  %v48 = vld [vmem:[%s1 + $0x90] sm:$0xff]
  %v49 = vld [vmem:[%s1 + $0x98] sm:$0xff]
  %v50 = vld [vmem:[%s1 + $0xa0] sm:$0xff]
  %v51 = vld [vmem:[%s1 + $0xa8] sm:$0xff]
  %v52 = vld [vmem:[%s1 + $0xb0] sm:$0xff]
  %v53 = vld [vmem:[%s1 + $0xb8] sm:$0xff]
  %v54 = vld [vmem:[%s1 + $0xc0] sm:$0xff]
  %v55 = vld [vmem:[%s1 + $0xc8] sm:$0xff]
  %v56 = vld [vmem:[%s1 + $0xd0] sm:$0xff]
  %v57 = vld [vmem:[%s1 + $0xd8] sm:$0xff]
  %v58 = vld [vmem:[%s1 + $0xe0] sm:$0xff]
  %v59 = vld [vmem:[%s1 + $0xe8] sm:$0xff]
  %v60 = vld [vmem:[%s1 + $0xf0] sm:$0xff]
  %v61 = vld [vmem:[%s1 + $0xf8] sm:$0xff]
  %v62 = vld [vmem:[%s2] sm:$0xf]
  %v64 = vperm.slane %v62, 0
  %v65 = vperm.slane %v62, 1
  %v66 = vperm.slane %v62, 2
  %v67 = vperm.slane %v62, 3
  %v88 = vunpack.c.l.b16 %v14
  %v89 = vunpack.c.l.b16 %v15
  %v90 = vunpack.c.l.b16 %v16
  %v91 = vunpack.c.l.b16 %v17
  %v92 = vunpack.c.l.b16 %v18
  %v93 = vunpack.c.l.b16 %v19
  %v94 = vunpack.c.l.b16 %v20
  %v95 = vunpack.c.l.b16 %v21
  %v96 = vunpack.c.l.b16 %v22
  %v97 = vunpack.c.l.b16 %v23
  %v98 = vunpack.c.l.b16 %v24
  %v99 = vunpack.c.l.b16 %v25
  %v100 = vunpack.c.l.b16 %v26
  %v101 = vunpack.c.l.b16 %v27
  %v102 = vunpack.c.l.b16 %v28
  %v103 = vunpack.c.l.b16 %v29
  %v104 = vpack.c.b16 %v89, %v88
  %v105 = vpack.c.b16 %v91, %v90
  %v106 = vpack.c.b16 %v93, %v92
  %v107 = vpack.c.b16 %v95, %v94
  %v108 = vpack.c.b16 %v97, %v96
  %v109 = vpack.c.b16 %v99, %v98
  %v110 = vpack.c.b16 %v101, %v100
  %v111 = vpack.c.b16 %v103, %v102
  %v152 = vunpack.c.l.b16 %v30
  %v153 = vunpack.c.h.b16 %v30
  %v154 = vunpack.c.l.b16 %v31
  %v155 = vunpack.c.h.b16 %v31
  %v156 = vunpack.c.l.b16 %v32
  %v157 = vunpack.c.h.b16 %v32
  %v158 = vunpack.c.l.b16 %v33
  %v159 = vunpack.c.h.b16 %v33
  %v160 = vunpack.c.l.b16 %v34
  %v161 = vunpack.c.h.b16 %v34
  %v162 = vunpack.c.l.b16 %v35
  %v163 = vunpack.c.h.b16 %v35
  %v164 = vunpack.c.l.b16 %v36
  %v165 = vunpack.c.h.b16 %v36
  %v166 = vunpack.c.l.b16 %v37
  %v167 = vunpack.c.h.b16 %v37
  %v168 = vunpack.c.l.b16 %v38
  %v169 = vunpack.c.h.b16 %v38
  %v170 = vunpack.c.l.b16 %v39
  %v171 = vunpack.c.h.b16 %v39
  %v172 = vunpack.c.l.b16 %v40
  %v173 = vunpack.c.h.b16 %v40
  %v174 = vunpack.c.l.b16 %v41
  %v175 = vunpack.c.h.b16 %v41
  %v176 = vunpack.c.l.b16 %v42
  %v177 = vunpack.c.h.b16 %v42
  %v178 = vunpack.c.l.b16 %v43
  %v179 = vunpack.c.h.b16 %v43
  %v180 = vunpack.c.l.b16 %v44
  %v181 = vunpack.c.h.b16 %v44
  %v182 = vunpack.c.l.b16 %v45
  %v183 = vunpack.c.h.b16 %v45
  %v184 = vunpack.c.l.b16 %v46
  %v185 = vunpack.c.h.b16 %v46
  %v186 = vunpack.c.l.b16 %v47
  %v187 = vunpack.c.h.b16 %v47
  %v188 = vunpack.c.l.b16 %v48
  %v189 = vunpack.c.h.b16 %v48
  %v190 = vunpack.c.l.b16 %v49
  %v191 = vunpack.c.h.b16 %v49
  %v192 = vunpack.c.l.b16 %v50
  %v193 = vunpack.c.h.b16 %v50
  %v194 = vunpack.c.l.b16 %v51
  %v195 = vunpack.c.h.b16 %v51
  %v196 = vunpack.c.l.b16 %v52
  %v197 = vunpack.c.h.b16 %v52
  %v198 = vunpack.c.l.b16 %v53
  %v199 = vunpack.c.h.b16 %v53
  %v200 = vunpack.c.l.b16 %v54
  %v201 = vunpack.c.h.b16 %v54
  %v202 = vunpack.c.l.b16 %v55
  %v203 = vunpack.c.h.b16 %v55
  %v204 = vunpack.c.l.b16 %v56
  %v205 = vunpack.c.h.b16 %v56
  %v206 = vunpack.c.l.b16 %v57
  %v207 = vunpack.c.h.b16 %v57
  %v208 = vunpack.c.l.b16 %v58
  %v209 = vunpack.c.h.b16 %v58
  %v210 = vunpack.c.l.b16 %v59
  %v211 = vunpack.c.h.b16 %v59
  %v212 = vunpack.c.l.b16 %v60
  %v213 = vunpack.c.h.b16 %v60
  %v214 = vunpack.c.l.b16 %v61
  %v215 = vunpack.c.h.b16 %v61
  %v216 = vpack.c.b16 %v156, %v152
  %v217 = vpack.c.b16 %v157, %v153
  %v218 = vpack.c.b16 %v158, %v154
  %v219 = vpack.c.b16 %v159, %v155
  %v220 = vpack.c.b16 %v164, %v160
  %v221 = vpack.c.b16 %v165, %v161
  %v222 = vpack.c.b16 %v166, %v162
  %v223 = vpack.c.b16 %v167, %v163
  %v224 = vpack.c.b16 %v172, %v168
  %v225 = vpack.c.b16 %v173, %v169
  %v226 = vpack.c.b16 %v174, %v170
  %v227 = vpack.c.b16 %v175, %v171
  %v228 = vpack.c.b16 %v180, %v176
  %v229 = vpack.c.b16 %v181, %v177
  %v230 = vpack.c.b16 %v182, %v178
  %v231 = vpack.c.b16 %v183, %v179
  %v232 = vpack.c.b16 %v188, %v184
  %v233 = vpack.c.b16 %v189, %v185
  %v234 = vpack.c.b16 %v190, %v186
  %v235 = vpack.c.b16 %v191, %v187
  %v236 = vpack.c.b16 %v196, %v192
  %v237 = vpack.c.b16 %v197, %v193
  %v238 = vpack.c.b16 %v198, %v194
  %v239 = vpack.c.b16 %v199, %v195
  %v240 = vpack.c.b16 %v204, %v200
  %v241 = vpack.c.b16 %v205, %v201
  %v242 = vpack.c.b16 %v206, %v202
  %v243 = vpack.c.b16 %v207, %v203
  %v244 = vpack.c.b16 %v212, %v208
  %v245 = vpack.c.b16 %v213, %v209
  %v246 = vpack.c.b16 %v214, %v210
  %v247 = vpack.c.b16 %v215, %v211
  %280 = vmatpush.bf16.msra.mxu0 %v244
  %281 = vmatpush.bf16.msra.mxu0 %v240
  %282 = vmatpush.bf16.msra.mxu0 %v236
  %283 = vmatpush.bf16.msra.mxu0 %v232
  %284 = vmatpush.bf16.msra.mxu0 %v228
  %285 = vmatpush.bf16.msra.mxu0 %v224
  %286 = vmatpush.bf16.msra.mxu0 %v220
  %287 = vmatpush.bf16.msra.mxu0 %v216
  %288 = vmatmul.bf16.gmra.mxu0 %v104
  %v289 = vpop.f32.mrf.mxu0
  %v290 = vadd.f32 %v64, %v289
  %v291 = vpop.f32.mrf.mxu0
  %v292 = vadd.f32 %v64, %v291
  %293 = vmatmul.bf16.gmra.mxu0 %v105
  %v294 = vpop.f32.mrf.mxu0
  %v295 = vadd.f32 %v64, %v294
  %v296 = vpop.f32.mrf.mxu0
  %v297 = vadd.f32 %v64, %v296
  %298 = vmatmul.bf16.gmra.mxu0 %v106
  %v299 = vpop.f32.mrf.mxu0
  %v300 = vadd.f32 %v64, %v299
  %v301 = vpop.f32.mrf.mxu0
  %v302 = vadd.f32 %v64, %v301
  %303 = vmatmul.bf16.gmra.mxu0 %v107
  %v304 = vpop.f32.mrf.mxu0
  %v305 = vadd.f32 %v64, %v304
  %v306 = vpop.f32.mrf.mxu0
  %v307 = vadd.f32 %v64, %v306
  %308 = vmatmul.bf16.gmra.mxu0 %v108
  %v309 = vpop.f32.mrf.mxu0
  %v310 = vadd.f32 %v64, %v309
  %v311 = vpop.f32.mrf.mxu0
  %v312 = vadd.f32 %v64, %v311
  %313 = vmatmul.bf16.gmra.mxu0 %v109
  %v314 = vpop.f32.mrf.mxu0
  %v315 = vadd.f32 %v64, %v314
  %v316 = vpop.f32.mrf.mxu0
  %v317 = vadd.f32 %v64, %v316
  %318 = vmatmul.bf16.gmra.mxu0 %v110
  %v319 = vpop.f32.mrf.mxu0
  %v320 = vadd.f32 %v64, %v319
  %v321 = vpop.f32.mrf.mxu0
  %v322 = vadd.f32 %v64, %v321
  %323 = vmatmul.bf16.gmra.mxu0 %v111
  %v324 = vpop.f32.mrf.mxu0
  %v325 = vadd.f32 %v64, %v324
  %v326 = vpop.f32.mrf.mxu0
  %v327 = vadd.f32 %v64, %v326
  %328 = vdwg.mxu0
  %329 = vmatpush.bf16.msra.mxu0 %v245
  %330 = vmatpush.bf16.msra.mxu0 %v241
  %331 = vmatpush.bf16.msra.mxu0 %v237
  %332 = vmatpush.bf16.msra.mxu0 %v233
  %333 = vmatpush.bf16.msra.mxu0 %v229
  %334 = vmatpush.bf16.msra.mxu0 %v225
  %335 = vmatpush.bf16.msra.mxu0 %v221
  %336 = vmatpush.bf16.msra.mxu0 %v217
  %337 = vmatmul.bf16.gmra.mxu0 %v104
  %v338 = vpop.f32.mrf.mxu0
  %v339 = vadd.f32 %v65, %v338
  %v340 = vpop.f32.mrf.mxu0
  %v341 = vadd.f32 %v65, %v340
  %342 = vmatmul.bf16.gmra.mxu0 %v105
  %v343 = vpop.f32.mrf.mxu0
  %v344 = vadd.f32 %v65, %v343
  %v345 = vpop.f32.mrf.mxu0
  %v346 = vadd.f32 %v65, %v345
  %347 = vmatmul.bf16.gmra.mxu0 %v106
  %v348 = vpop.f32.mrf.mxu0
  %v349 = vadd.f32 %v65, %v348
  %v350 = vpop.f32.mrf.mxu0
  %v351 = vadd.f32 %v65, %v350
  %352 = vmatmul.bf16.gmra.mxu0 %v107
  %v353 = vpop.f32.mrf.mxu0
  %v354 = vadd.f32 %v65, %v353
  %v355 = vpop.f32.mrf.mxu0
  %v356 = vadd.f32 %v65, %v355
  %357 = vmatmul.bf16.gmra.mxu0 %v108
  %v358 = vpop.f32.mrf.mxu0
  %v359 = vadd.f32 %v65, %v358
  %v360 = vpop.f32.mrf.mxu0
  %v361 = vadd.f32 %v65, %v360
  %362 = vmatmul.bf16.gmra.mxu0 %v109
  %v363 = vpop.f32.mrf.mxu0
  %v364 = vadd.f32 %v65, %v363
  %v365 = vpop.f32.mrf.mxu0
  %v366 = vadd.f32 %v65, %v365
  %367 = vmatmul.bf16.gmra.mxu0 %v110
  %v368 = vpop.f32.mrf.mxu0
  %v369 = vadd.f32 %v65, %v368
  %v370 = vpop.f32.mrf.mxu0
  %v371 = vadd.f32 %v65, %v370
  %372 = vmatmul.bf16.gmra.mxu0 %v111
  %v373 = vpop.f32.mrf.mxu0
  %v374 = vadd.f32 %v65, %v373
  %v375 = vpop.f32.mrf.mxu0
  %v376 = vadd.f32 %v65, %v375
  %377 = vdwg.mxu0
  %378 = vmatpush.bf16.msra.mxu0 %v246
  %379 = vmatpush.bf16.msra.mxu0 %v242
  %380 = vmatpush.bf16.msra.mxu0 %v238
  %381 = vmatpush.bf16.msra.mxu0 %v234
  %382 = vmatpush.bf16.msra.mxu0 %v230
  %383 = vmatpush.bf16.msra.mxu0 %v226
  %384 = vmatpush.bf16.msra.mxu0 %v222
  %385 = vmatpush.bf16.msra.mxu0 %v218
  %386 = vmatmul.bf16.gmra.mxu0 %v104
  %v387 = vpop.f32.mrf.mxu0
  %v388 = vadd.f32 %v66, %v387
  %v389 = vpop.f32.mrf.mxu0
  %v390 = vadd.f32 %v66, %v389
  %391 = vmatmul.bf16.gmra.mxu0 %v105
  %v392 = vpop.f32.mrf.mxu0
  %v393 = vadd.f32 %v66, %v392
  %v394 = vpop.f32.mrf.mxu0
  %v395 = vadd.f32 %v66, %v394
  %396 = vmatmul.bf16.gmra.mxu0 %v106
  %v397 = vpop.f32.mrf.mxu0
  %v398 = vadd.f32 %v66, %v397
  %v399 = vpop.f32.mrf.mxu0
  %v400 = vadd.f32 %v66, %v399
  %401 = vmatmul.bf16.gmra.mxu0 %v107
  %v402 = vpop.f32.mrf.mxu0
  %v403 = vadd.f32 %v66, %v402
  %v404 = vpop.f32.mrf.mxu0
  %v405 = vadd.f32 %v66, %v404
  %406 = vmatmul.bf16.gmra.mxu0 %v108
  %v407 = vpop.f32.mrf.mxu0
  %v408 = vadd.f32 %v66, %v407
  %v409 = vpop.f32.mrf.mxu0
  %v410 = vadd.f32 %v66, %v409
  %411 = vmatmul.bf16.gmra.mxu0 %v109
  %v412 = vpop.f32.mrf.mxu0
  %v413 = vadd.f32 %v66, %v412
  %v414 = vpop.f32.mrf.mxu0
  %v415 = vadd.f32 %v66, %v414
  %416 = vmatmul.bf16.gmra.mxu0 %v110
  %v417 = vpop.f32.mrf.mxu0
  %v418 = vadd.f32 %v66, %v417
  %v419 = vpop.f32.mrf.mxu0
  %v420 = vadd.f32 %v66, %v419
  %421 = vmatmul.bf16.gmra.mxu0 %v111
  %v422 = vpop.f32.mrf.mxu0
  %v423 = vadd.f32 %v66, %v422
  %v424 = vpop.f32.mrf.mxu0
  %v425 = vadd.f32 %v66, %v424
  %426 = vdwg.mxu0
  %427 = vmatpush.bf16.msra.mxu0 %v247
  %428 = vmatpush.bf16.msra.mxu0 %v243
  %429 = vmatpush.bf16.msra.mxu0 %v239
  %430 = vmatpush.bf16.msra.mxu0 %v235
  %431 = vmatpush.bf16.msra.mxu0 %v231
  %432 = vmatpush.bf16.msra.mxu0 %v227
  %433 = vmatpush.bf16.msra.mxu0 %v223
  %434 = vmatpush.bf16.msra.mxu0 %v219
  %435 = vmatmul.bf16.gmra.mxu0 %v104
  %v436 = vpop.f32.mrf.mxu0
  %v437 = vadd.f32 %v67, %v436
  %v438 = vpop.f32.mrf.mxu0
  %v439 = vadd.f32 %v67, %v438
  %440 = vmatmul.bf16.gmra.mxu0 %v105
  %v441 = vpop.f32.mrf.mxu0
  %v442 = vadd.f32 %v67, %v441
  %v443 = vpop.f32.mrf.mxu0
  %v444 = vadd.f32 %v67, %v443
  %445 = vmatmul.bf16.gmra.mxu0 %v106
  %v446 = vpop.f32.mrf.mxu0
  %v447 = vadd.f32 %v67, %v446
  %v448 = vpop.f32.mrf.mxu0
  %v449 = vadd.f32 %v67, %v448
  %450 = vmatmul.bf16.gmra.mxu0 %v107
  %v451 = vpop.f32.mrf.mxu0
  %v452 = vadd.f32 %v67, %v451
  %v453 = vpop.f32.mrf.mxu0
  %v454 = vadd.f32 %v67, %v453
  %455 = vmatmul.bf16.gmra.mxu0 %v108
  %v456 = vpop.f32.mrf.mxu0
  %v457 = vadd.f32 %v67, %v456
  %v458 = vpop.f32.mrf.mxu0
  %v459 = vadd.f32 %v67, %v458
  %460 = vmatmul.bf16.gmra.mxu0 %v109
  %v461 = vpop.f32.mrf.mxu0
  %v462 = vadd.f32 %v67, %v461
  %v463 = vpop.f32.mrf.mxu0
  %v464 = vadd.f32 %v67, %v463
  %465 = vmatmul.bf16.gmra.mxu0 %v110
  %v466 = vpop.f32.mrf.mxu0
  %v467 = vadd.f32 %v67, %v466
  %v468 = vpop.f32.mrf.mxu0
  %v469 = vadd.f32 %v67, %v468
  %470 = vmatmul.bf16.gmra.mxu0 %v111
  %v471 = vpop.f32.mrf.mxu0
  %v472 = vadd.f32 %v67, %v471
  %v473 = vpop.f32.mrf.mxu0
  %v474 = vadd.f32 %v67, %v473
  %475 = vdwg.mxu0
  %v476 = vpack.c.bf16 %v339, %v290
  %v477 = vpack.c.bf16 %v437, %v388
  %v478 = vpack.c.bf16 %v341, %v292
  %v479 = vpack.c.bf16 %v439, %v390
  %v480 = vpack.c.bf16 %v344, %v295
  %v481 = vpack.c.bf16 %v442, %v393
  %v482 = vpack.c.bf16 %v346, %v297
  %v483 = vpack.c.bf16 %v444, %v395
  %v484 = vpack.c.bf16 %v349, %v300
  %v485 = vpack.c.bf16 %v447, %v398
  %v486 = vpack.c.bf16 %v351, %v302
  %v487 = vpack.c.bf16 %v449, %v400
  %v488 = vpack.c.bf16 %v354, %v305
  %v489 = vpack.c.bf16 %v452, %v403
  %v490 = vpack.c.bf16 %v356, %v307
  %v491 = vpack.c.bf16 %v454, %v405
  %v492 = vpack.c.bf16 %v359, %v310
  %v493 = vpack.c.bf16 %v457, %v408
  %v494 = vpack.c.bf16 %v361, %v312
  %v495 = vpack.c.bf16 %v459, %v410
  %v496 = vpack.c.bf16 %v364, %v315
  %v497 = vpack.c.bf16 %v462, %v413
  %v498 = vpack.c.bf16 %v366, %v317
  %v499 = vpack.c.bf16 %v464, %v415
  %v500 = vpack.c.bf16 %v369, %v320
  %v501 = vpack.c.bf16 %v467, %v418
  %v502 = vpack.c.bf16 %v371, %v322
  %v503 = vpack.c.bf16 %v469, %v420
  %v504 = vpack.c.bf16 %v374, %v325
  %v505 = vpack.c.bf16 %v472, %v423
  %v506 = vpack.c.bf16 %v376, %v327
  %v507 = vpack.c.bf16 %v474, %v425
  %508 = vst [vmem:[%s3] sm:$0xff] %v476
  %509 = vst [vmem:[%s3 + $0x8] sm:$0xff] %v477
  %510 = vst [vmem:[%s3 + $0x10] sm:$0xff] %v478
  %511 = vst [vmem:[%s3 + $0x18] sm:$0xff] %v479
  %512 = vst [vmem:[%s3 + $0x20] sm:$0xff] %v480
  %513 = vst [vmem:[%s3 + $0x28] sm:$0xff] %v481
  %514 = vst [vmem:[%s3 + $0x30] sm:$0xff] %v482
  %515 = vst [vmem:[%s3 + $0x38] sm:$0xff] %v483
  %516 = vst [vmem:[%s3 + $0x40] sm:$0xff] %v484
  %517 = vst [vmem:[%s3 + $0x48] sm:$0xff] %v485
  %518 = vst [vmem:[%s3 + $0x50] sm:$0xff] %v486
  %519 = vst [vmem:[%s3 + $0x58] sm:$0xff] %v487
  %520 = vst [vmem:[%s3 + $0x60] sm:$0xff] %v488
  %521 = vst [vmem:[%s3 + $0x68] sm:$0xff] %v489
  %522 = vst [vmem:[%s3 + $0x70] sm:$0xff] %v490
  %523 = vst [vmem:[%s3 + $0x78] sm:$0xff] %v491
  %524 = vst [vmem:[%s3 + $0x80] sm:$0xff] %v492
  %525 = vst [vmem:[%s3 + $0x88] sm:$0xff] %v493
  %526 = vst [vmem:[%s3 + $0x90] sm:$0xff] %v494
  %527 = vst [vmem:[%s3 + $0x98] sm:$0xff] %v495
  %528 = vst [vmem:[%s3 + $0xa0] sm:$0xff] %v496
  %529 = vst [vmem:[%s3 + $0xa8] sm:$0xff] %v497
  %530 = vst [vmem:[%s3 + $0xb0] sm:$0xff] %v498
  %531 = vst [vmem:[%s3 + $0xb8] sm:$0xff] %v499
  %532 = vst [vmem:[%s3 + $0xc0] sm:$0xff] %v500
  %533 = vst [vmem:[%s3 + $0xc8] sm:$0xff] %v501
  %534 = vst [vmem:[%s3 + $0xd0] sm:$0xff] %v502
  %535 = vst [vmem:[%s3 + $0xd8] sm:$0xff] %v503
  %536 = vst [vmem:[%s3 + $0xe0] sm:$0xff] %v504
  %537 = vst [vmem:[%s3 + $0xe8] sm:$0xff] %v505
  %538 = vst [vmem:[%s3 + $0xf0] sm:$0xff] %v506
  %539 = vst [vmem:[%s3 + $0xf8] sm:$0xff] %v507
  // Predicated region
  $region14: #{rnn_forward.5} parent=0 // pred_check
    _
  $region15: #{rnn_forward.5} parent=0 // pred_check_branch
    %541 = sbr.rel (0) target = $region17
  $region16: #{rnn_forward.5} parent=0 // pred_region
    _
  $region17: #{rnn_forward.5} parent=0 // pred_fallthru
    _
  // Predicated region
  $region18: #{rnn_forward.5} parent=0 // pred_check
    _
  $region19: #{rnn_forward.5} parent=0 // pred_check_branch
    %543 = sbr.rel (0) target = $region21
  $region20: #{rnn_forward.5} parent=0 // pred_region
    _
  $region21: #{rnn_forward.5} parent=0 // pred_fallthru
    _

// kernel: rnn_forward.4
$region0: #{rnn_forward.4}
  #allocation0 [shape = 'u32[]', space=smem, size = 0x4, offset = 0x4, fixed_abs, tag = 'smem constant byte address 0x4 - core index']
  #allocation1 [shape = 'u32[72,128]{1,0:T(1,128)}', space=vmem, size = 0x9000, scoped, tag = 'internal scratch']
  %s0 = inlined_call_operand.vmem [shape: bf16[16,256], index: 0, kind: input, shape index: {}]
  %s1 = inlined_call_operand.vmem [shape: bf16[256,256], index: 1, kind: input, shape index: {}]
  %s2 = inlined_call_operand.vmem [shape: f32[1,256], index: 2, kind: input, shape index: {}]
  %s3 = inlined_call_operand.vmem [shape: f32[16,256], index: 3, kind: output, shape index: {}]
  %s4 = sld [smem:[#allocation0]]
  $region22: #{rnn_forward.4} parent=0
    _
  %s6 = ssub.s32 1, %s4
  %s7 = scalar_select 0, %s6, %s4
  // Predicated region
  $region2: #{rnn_forward.4} parent=0 // pred_check
    _
  $region3: #{rnn_forward.4} parent=0 // pred_check_branch
    %9 = sbr.rel (0) target = $region5
  $region4: #{rnn_forward.4} parent=0 // pred_region
    _
  $region5: #{rnn_forward.4} parent=0 // pred_fallthru
    _
  // Predicated region
  $region6: #{rnn_forward.4} parent=0 // pred_check
    _
  $region7: #{rnn_forward.4} parent=0 // pred_check_branch
    %11 = sbr.rel (0) target = $region9
  $region8: #{rnn_forward.4} parent=0 // pred_region
    _
  $region9: #{rnn_forward.4} parent=0 // pred_fallthru
    _
  // Predicated region
  $region10: #{rnn_forward.4} parent=0 // pred_check
    _
  $region11: #{rnn_forward.4} parent=0 // pred_check_branch
    %13 = sbr.rel (0) target = $region13
  $region12: #{rnn_forward.4} parent=0 // pred_region
    _
  $region13: #{rnn_forward.4} parent=0 // pred_fallthru
    _
  %v14 = vld [vmem:[%s0] sm:$0xff]
  %v15 = vld [vmem:[%s0 + $0x8] sm:$0xff]
  %v16 = vld [vmem:[%s1] sm:$0xff]
  %v17 = vld [vmem:[%s1 + $0x8] sm:$0xff]
  %v18 = vld [vmem:[%s1 + $0x10] sm:$0xff]
  %v19 = vld [vmem:[%s1 + $0x18] sm:$0xff]
  %v20 = vld [vmem:[%s1 + $0x20] sm:$0xff]
  %v21 = vld [vmem:[%s1 + $0x28] sm:$0xff]
  %v22 = vld [vmem:[%s1 + $0x30] sm:$0xff]
  %v23 = vld [vmem:[%s1 + $0x38] sm:$0xff]
  %v24 = vld [vmem:[%s1 + $0x40] sm:$0xff]
  %v25 = vld [vmem:[%s1 + $0x48] sm:$0xff]
  %v26 = vld [vmem:[%s1 + $0x50] sm:$0xff]
  %v27 = vld [vmem:[%s1 + $0x58] sm:$0xff]
  %v28 = vld [vmem:[%s1 + $0x60] sm:$0xff]
  %v29 = vld [vmem:[%s1 + $0x68] sm:$0xff]
  %v30 = vld [vmem:[%s1 + $0x70] sm:$0xff]
  %v31 = vld [vmem:[%s1 + $0x78] sm:$0xff]
  %v32 = vld [vmem:[%s1 + $0x80] sm:$0xff]
  %v33 = vld [vmem:[%s1 + $0x88] sm:$0xff]
  %v34 = vld [vmem:[%s1 + $0x90] sm:$0xff]
  %v35 = vld [vmem:[%s1 + $0x98] sm:$0xff]
  %v36 = vld [vmem:[%s1 + $0xa0] sm:$0xff]
  %v37 = vld [vmem:[%s1 + $0xa8] sm:$0xff]
  %v38 = vld [vmem:[%s1 + $0xb0] sm:$0xff]
  %v39 = vld [vmem:[%s1 + $0xb8] sm:$0xff]
  %v40 = vld [vmem:[%s1 + $0xc0] sm:$0xff]
  %v41 = vld [vmem:[%s1 + $0xc8] sm:$0xff]
  %v42 = vld [vmem:[%s1 + $0xd0] sm:$0xff]
  %v43 = vld [vmem:[%s1 + $0xd8] sm:$0xff]
  %v44 = vld [vmem:[%s1 + $0xe0] sm:$0xff]
  %v45 = vld [vmem:[%s1 + $0xe8] sm:$0xff]
  %v46 = vld [vmem:[%s1 + $0xf0] sm:$0xff]
  %v47 = vld [vmem:[%s1 + $0xf8] sm:$0xff]
  %v48 = vld [vmem:[%s2] sm:$0x3]
  %v50 = vperm.slane %v48, 0
  %v51 = vperm.slane %v48, 1
  %v56 = vunpack.c.l.b16 %v14
  %v57 = vunpack.c.h.b16 %v14
  %v58 = vunpack.c.l.b16 %v15
  %v59 = vunpack.c.h.b16 %v15
  %v60 = vpack.c.b16 %v58, %v56
  %v61 = vpack.c.b16 %v59, %v57
  %v96 = vunpack.c.l.b16 %v16
  %v97 = vunpack.c.h.b16 %v16
  %v98 = vunpack.c.l.b16 %v17
  %v99 = vunpack.c.h.b16 %v17
  %v100 = vunpack.c.l.b16 %v18
  %v101 = vunpack.c.h.b16 %v18
  %v102 = vunpack.c.l.b16 %v19
  %v103 = vunpack.c.h.b16 %v19
  %v104 = vunpack.c.l.b16 %v20
  %v105 = vunpack.c.h.b16 %v20
  %v106 = vunpack.c.l.b16 %v21
  %v107 = vunpack.c.h.b16 %v21
  %v108 = vunpack.c.l.b16 %v22
  %v109 = vunpack.c.h.b16 %v22
  %v110 = vunpack.c.l.b16 %v23
  %v111 = vunpack.c.h.b16 %v23
  %v112 = vunpack.c.l.b16 %v24
  %v113 = vunpack.c.h.b16 %v24
  %v114 = vunpack.c.l.b16 %v25
  %v115 = vunpack.c.h.b16 %v25
  %v116 = vunpack.c.l.b16 %v26
  %v117 = vunpack.c.h.b16 %v26
  %v118 = vunpack.c.l.b16 %v27
  %v119 = vunpack.c.h.b16 %v27
  %v120 = vunpack.c.l.b16 %v28
  %v121 = vunpack.c.h.b16 %v28
  %v122 = vunpack.c.l.b16 %v29
  %v123 = vunpack.c.h.b16 %v29
  %v124 = vunpack.c.l.b16 %v30
  %v125 = vunpack.c.h.b16 %v30
  %v126 = vunpack.c.l.b16 %v31
  %v127 = vunpack.c.h.b16 %v31
  %v128 = vunpack.c.l.b16 %v32
  %v129 = vunpack.c.h.b16 %v32
  %v130 = vunpack.c.l.b16 %v33
  %v131 = vunpack.c.h.b16 %v33
  %v132 = vunpack.c.l.b16 %v34
  %v133 = vunpack.c.h.b16 %v34
  %v134 = vunpack.c.l.b16 %v35
  %v135 = vunpack.c.h.b16 %v35
  %v136 = vunpack.c.l.b16 %v36
  %v137 = vunpack.c.h.b16 %v36
  %v138 = vunpack.c.l.b16 %v37
  %v139 = vunpack.c.h.b16 %v37
  %v140 = vunpack.c.l.b16 %v38
  %v141 = vunpack.c.h.b16 %v38
  %v142 = vunpack.c.l.b16 %v39
  %v143 = vunpack.c.h.b16 %v39
  %v144 = vunpack.c.l.b16 %v40
  %v145 = vunpack.c.h.b16 %v40
  %v146 = vunpack.c.l.b16 %v41
  %v147 = vunpack.c.h.b16 %v41
  %v148 = vunpack.c.l.b16 %v42
  %v149 = vunpack.c.h.b16 %v42
  %v150 = vunpack.c.l.b16 %v43
  %v151 = vunpack.c.h.b16 %v43
  %v152 = vunpack.c.l.b16 %v44
  %v153 = vunpack.c.h.b16 %v44
  %v154 = vunpack.c.l.b16 %v45
  %v155 = vunpack.c.h.b16 %v45
  %v156 = vunpack.c.l.b16 %v46
  %v157 = vunpack.c.h.b16 %v46
  %v158 = vunpack.c.l.b16 %v47
  %v159 = vunpack.c.h.b16 %v47
  %v160 = vpack.c.b16 %v98, %v96
  %v161 = vpack.c.b16 %v99, %v97
  %v162 = vpack.c.b16 %v102, %v100
  %v163 = vpack.c.b16 %v103, %v101
  %v164 = vpack.c.b16 %v106, %v104
  %v165 = vpack.c.b16 %v107, %v105
  %v166 = vpack.c.b16 %v110, %v108
  %v167 = vpack.c.b16 %v111, %v109
  %v168 = vpack.c.b16 %v114, %v112
  %v169 = vpack.c.b16 %v115, %v113
  %v170 = vpack.c.b16 %v118, %v116
  %v171 = vpack.c.b16 %v119, %v117
  %v172 = vpack.c.b16 %v122, %v120
  %v173 = vpack.c.b16 %v123, %v121
  %v174 = vpack.c.b16 %v126, %v124
  %v175 = vpack.c.b16 %v127, %v125
  %v176 = vpack.c.b16 %v130, %v128
  %v177 = vpack.c.b16 %v131, %v129
  %v178 = vpack.c.b16 %v134, %v132
  %v179 = vpack.c.b16 %v135, %v133
  %v180 = vpack.c.b16 %v138, %v136
  %v181 = vpack.c.b16 %v139, %v137
  %v182 = vpack.c.b16 %v142, %v140
  %v183 = vpack.c.b16 %v143, %v141
  %v184 = vpack.c.b16 %v146, %v144
  %v185 = vpack.c.b16 %v147, %v145
  %v186 = vpack.c.b16 %v150, %v148
  %v187 = vpack.c.b16 %v151, %v149
  %v188 = vpack.c.b16 %v154, %v152
  %v189 = vpack.c.b16 %v155, %v153
  %v190 = vpack.c.b16 %v158, %v156
  %v191 = vpack.c.b16 %v159, %v157
  %224 = vmatpush.bf16.msra.mxu0 %v174
  %225 = vmatpush.bf16.msra.mxu0 %v172
  %226 = vmatpush.bf16.msra.mxu0 %v170
  %227 = vmatpush.bf16.msra.mxu0 %v168
  %228 = vmatpush.bf16.msra.mxu0 %v166
  %229 = vmatpush.bf16.msra.mxu0 %v164
  %230 = vmatpush.bf16.msra.mxu0 %v162
  %231 = vmatpush.bf16.msra.mxu0 %v160
  %232 = vmatmul.bf16.gmra.mxu0 %v60
  %v233 = vpop.f32.mrf.mxu0
  %v234 = vadd.f32 %v50, %v233
  %v235 = vpop.f32.mrf.mxu0
  %v236 = vadd.f32 %v50, %v235
  %237 = vdwg.mxu0
  %238 = vmatpush.bf16.msra.mxu0 %v190
  %239 = vmatpush.bf16.msra.mxu0 %v188
  %240 = vmatpush.bf16.msra.mxu0 %v186
  %241 = vmatpush.bf16.msra.mxu0 %v184
  %242 = vmatpush.bf16.msra.mxu0 %v182
  %243 = vmatpush.bf16.msra.mxu0 %v180
  %244 = vmatpush.bf16.msra.mxu0 %v178
  %245 = vmatpush.bf16.msra.mxu0 %v176
  %246 = vmatmul.bf16.gmra.mxu0 %v61
  %v247 = vpop.f32.mrf.mxu0
  %v248 = vadd.f32 %v234, %v247
  %v249 = vpop.f32.mrf.mxu0
  %v250 = vadd.f32 %v236, %v249
  %251 = vdwg.mxu0
  %252 = vmatpush.bf16.msra.mxu0 %v175
  %253 = vmatpush.bf16.msra.mxu0 %v173
  %254 = vmatpush.bf16.msra.mxu0 %v171
  %255 = vmatpush.bf16.msra.mxu0 %v169
  %256 = vmatpush.bf16.msra.mxu0 %v167
  %257 = vmatpush.bf16.msra.mxu0 %v165
  %258 = vmatpush.bf16.msra.mxu0 %v163
  %259 = vmatpush.bf16.msra.mxu0 %v161
  %260 = vmatmul.bf16.gmra.mxu0 %v60
  %v261 = vpop.f32.mrf.mxu0
  %v262 = vadd.f32 %v51, %v261
  %v263 = vpop.f32.mrf.mxu0
  %v264 = vadd.f32 %v51, %v263
  %265 = vdwg.mxu0
  %266 = vmatpush.bf16.msra.mxu0 %v191
  %267 = vmatpush.bf16.msra.mxu0 %v189
  %268 = vmatpush.bf16.msra.mxu0 %v187
  %269 = vmatpush.bf16.msra.mxu0 %v185
  %270 = vmatpush.bf16.msra.mxu0 %v183
  %271 = vmatpush.bf16.msra.mxu0 %v181
  %272 = vmatpush.bf16.msra.mxu0 %v179
  %273 = vmatpush.bf16.msra.mxu0 %v177
  %274 = vmatmul.bf16.gmra.mxu0 %v61
  %v275 = vpop.f32.mrf.mxu0
  %v276 = vadd.f32 %v262, %v275
  %v277 = vpop.f32.mrf.mxu0
  %v278 = vadd.f32 %v264, %v277
  %279 = vdwg.mxu0
  %280 = vst [vmem:[%s3] sm:$0xff] %v248
  %281 = vst [vmem:[%s3 + $0x8] sm:$0xff] %v276
  %282 = vst [vmem:[%s3 + $0x10] sm:$0xff] %v250
  %283 = vst [vmem:[%s3 + $0x18] sm:$0xff] %v278
  // Predicated region
  $region14: #{rnn_forward.4} parent=0 // pred_check
    _
  $region15: #{rnn_forward.4} parent=0 // pred_check_branch
    %285 = sbr.rel (0) target = $region17
  $region16: #{rnn_forward.4} parent=0 // pred_region
    _
  $region17: #{rnn_forward.4} parent=0 // pred_fallthru
    _
  // Predicated region
  $region18: #{rnn_forward.4} parent=0 // pred_check
    _
  $region19: #{rnn_forward.4} parent=0 // pred_check_branch
    %287 = sbr.rel (0) target = $region21
  $region20: #{rnn_forward.4} parent=0 // pred_region
    _
  $region21: #{rnn_forward.4} parent=0 // pred_fallthru
    _

// kernel: rnn_forward.7
$region0: #{rnn_forward.7}
  #allocation0 [shape = 'u32[]', space=smem, size = 0x4, offset = 0x4, fixed_abs, tag = 'smem constant byte address 0x4 - core index']
  #allocation1 [shape = 'u32[72,128]{1,0:T(1,128)}', space=vmem, size = 0x9000, scoped, tag = 'internal scratch']
  %s0 = inlined_call_operand.vmem [shape: bf16[128,128], index: 0, kind: input, shape index: {}]
  %s1 = inlined_call_operand.hbm [shape: bf16[128,512], index: 1, kind: input, shape index: {}]
  %s2 = inlined_call_operand.vmem [shape: f32[1,512], index: 2, kind: input, shape index: {}]
  %s3 = inlined_call_operand.vmem [shape: f32[128,512], index: 3, kind: output, shape index: {}]
  %s4 = sld [smem:[#allocation0]]
  $region26: #{rnn_forward.7} parent=0
    _
  %s6 = ssub.s32 1, %s4
  %s7 = scalar_select 0, %s6, %s4
  $region1: #{rnn_forward.7} parent=0
    #allocation2 [shape = 'u8[131072]{0}', space=vmem, size = 0x20000, scoped, tag = 'input window, operand 1, single buffered']
    #allocation3 [shape = 's32[1]{0}', space=sflag, size = 0x4, scoped, tag = 'scoped memory for rnn_forward.7']
    %8 = vsyncpa [#allocation3], 0
    // Predicated region
    $region2: #{rnn_forward.7} parent=1 // pred_check
      _
    $region3: #{rnn_forward.7} parent=1 // pred_check_branch
      %10 = sbr.rel (0) target = $region5
    $region4: #{rnn_forward.7} parent=1 // pred_region
      _
    $region5: #{rnn_forward.7} parent=1 // pred_fallthru
      _
    // Predicated region
    $region6: #{rnn_forward.7} parent=1 // pred_check
      _
    $region7: #{rnn_forward.7} parent=1 // pred_check_branch
      %12 = sbr.rel (0) target = $region9
    $region8: #{rnn_forward.7} parent=1 // pred_region
      %14 = vsyncadd [#allocation3], 0
      %s15 = sshll.u32 %s1, 4
      %s16 = int_to_ptr.hbm [resolvable:$true] %s15
      %s17 = sshll.u32 [#allocation2], 4
      %s18 = int_to_ptr.vmem [resolvable:$true] %s17
      %23 = dma.hbm_to_vmem [thread:$0]  %s16, 4096, %s18, [#allocation3], 256, 256, 16
    $region9: #{rnn_forward.7} parent=1 // pred_fallthru
      _
    // Predicated region
    $region10: #{rnn_forward.7} parent=1 // pred_check
      _
    $region11: #{rnn_forward.7} parent=1 // pred_check_branch
      %25 = sbr.rel (0) target = $region13
    $region12: #{rnn_forward.7} parent=1 // pred_region
      _
    $region13: #{rnn_forward.7} parent=1 // pred_fallthru
      _
    // Predicated region
    $region14: #{rnn_forward.7} parent=1 // pred_check
      _
    $region15: #{rnn_forward.7} parent=1 // pred_check_branch
      %27 = sbr.rel (0) target = $region17
    $region16: #{rnn_forward.7} parent=1 // pred_region
      %29 = dma.done [#allocation3], 4096
    $region17: #{rnn_forward.7} parent=1 // pred_fallthru
      _
    %v30 = vld [vmem:[%s0] sm:$0xf]
    %v31 = vld [vmem:[%s0 + $0x4] sm:$0xf]
    %v32 = vld [vmem:[%s0 + $0x8] sm:$0xf]
    %v33 = vld [vmem:[%s0 + $0xc] sm:$0xf]
    %v34 = vld [vmem:[%s0 + $0x10] sm:$0xf]
    %v35 = vld [vmem:[%s0 + $0x14] sm:$0xf]
    %v36 = vld [vmem:[%s0 + $0x18] sm:$0xf]
    %v37 = vld [vmem:[%s0 + $0x1c] sm:$0xf]
    %v38 = vld [vmem:[%s0 + $0x20] sm:$0xf]
    %v39 = vld [vmem:[%s0 + $0x24] sm:$0xf]
    %v40 = vld [vmem:[%s0 + $0x28] sm:$0xf]
    %v41 = vld [vmem:[%s0 + $0x2c] sm:$0xf]
    %v42 = vld [vmem:[%s0 + $0x30] sm:$0xf]
    %v43 = vld [vmem:[%s0 + $0x34] sm:$0xf]
    %v44 = vld [vmem:[%s0 + $0x38] sm:$0xf]
    %v45 = vld [vmem:[%s0 + $0x3c] sm:$0xf]
    %v46 = vld [vmem:[#allocation2] sm:$0xff]
    %v47 = vld [vmem:[#allocation2 + $0x8] sm:$0xff]
    %v48 = vld [vmem:[#allocation2 + $0x10] sm:$0xff]
    %v49 = vld [vmem:[#allocation2 + $0x18] sm:$0xff]
    %v50 = vld [vmem:[#allocation2 + $0x20] sm:$0xff]
    %v51 = vld [vmem:[#allocation2 + $0x28] sm:$0xff]
    %v52 = vld [vmem:[#allocation2 + $0x30] sm:$0xff]
    %v53 = vld [vmem:[#allocation2 + $0x38] sm:$0xff]
    %v54 = vld [vmem:[#allocation2 + $0x40] sm:$0xff]
    %v55 = vld [vmem:[#allocation2 + $0x48] sm:$0xff]
    %v56 = vld [vmem:[#allocation2 + $0x50] sm:$0xff]
    %v57 = vld [vmem:[#allocation2 + $0x58] sm:$0xff]
    %v58 = vld [vmem:[#allocation2 + $0x60] sm:$0xff]
    %v59 = vld [vmem:[#allocation2 + $0x68] sm:$0xff]
    %v60 = vld [vmem:[#allocation2 + $0x70] sm:$0xff]
    %v61 = vld [vmem:[#allocation2 + $0x78] sm:$0xff]
    %v62 = vld [vmem:[#allocation2 + $0x80] sm:$0xff]
    %v63 = vld [vmem:[#allocation2 + $0x88] sm:$0xff]
    %v64 = vld [vmem:[#allocation2 + $0x90] sm:$0xff]
    %v65 = vld [vmem:[#allocation2 + $0x98] sm:$0xff]
    %v66 = vld [vmem:[#allocation2 + $0xa0] sm:$0xff]
    %v67 = vld [vmem:[#allocation2 + $0xa8] sm:$0xff]
    %v68 = vld [vmem:[#allocation2 + $0xb0] sm:$0xff]
    %v69 = vld [vmem:[#allocation2 + $0xb8] sm:$0xff]
    %v70 = vld [vmem:[#allocation2 + $0xc0] sm:$0xff]
    %v71 = vld [vmem:[#allocation2 + $0xc8] sm:$0xff]
    %v72 = vld [vmem:[#allocation2 + $0xd0] sm:$0xff]
    %v73 = vld [vmem:[#allocation2 + $0xd8] sm:$0xff]
    %v74 = vld [vmem:[#allocation2 + $0xe0] sm:$0xff]
    %v75 = vld [vmem:[#allocation2 + $0xe8] sm:$0xff]
    %v76 = vld [vmem:[#allocation2 + $0xf0] sm:$0xff]
    %v77 = vld [vmem:[#allocation2 + $0xf8] sm:$0xff]
    %v78 = vld [vmem:[%s2] sm:$0xf]
    %v80 = vperm.slane %v78, 0
    %v81 = vperm.slane %v78, 1
    %v82 = vperm.slane %v78, 2
    %v83 = vperm.slane %v78, 3
    %v104 = vunpack.c.l.b16 %v30
    %v105 = vunpack.c.l.b16 %v31
    %v106 = vunpack.c.l.b16 %v32
    %v107 = vunpack.c.l.b16 %v33
    %v108 = vunpack.c.l.b16 %v34
    %v109 = vunpack.c.l.b16 %v35
    %v110 = vunpack.c.l.b16 %v36
    %v111 = vunpack.c.l.b16 %v37
    %v112 = vunpack.c.l.b16 %v38
    %v113 = vunpack.c.l.b16 %v39
    %v114 = vunpack.c.l.b16 %v40
    %v115 = vunpack.c.l.b16 %v41
    %v116 = vunpack.c.l.b16 %v42
    %v117 = vunpack.c.l.b16 %v43
    %v118 = vunpack.c.l.b16 %v44
    %v119 = vunpack.c.l.b16 %v45
    %v120 = vpack.c.b16 %v105, %v104
    %v121 = vpack.c.b16 %v107, %v106
    %v122 = vpack.c.b16 %v109, %v108
    %v123 = vpack.c.b16 %v111, %v110
    %v124 = vpack.c.b16 %v113, %v112
    %v125 = vpack.c.b16 %v115, %v114
    %v126 = vpack.c.b16 %v117, %v116
    %v127 = vpack.c.b16 %v119, %v118
    %v168 = vunpack.c.l.b16 %v46
    %v169 = vunpack.c.h.b16 %v46
    %v170 = vunpack.c.l.b16 %v47
    %v171 = vunpack.c.h.b16 %v47
    %v172 = vunpack.c.l.b16 %v48
    %v173 = vunpack.c.h.b16 %v48
    %v174 = vunpack.c.l.b16 %v49
    %v175 = vunpack.c.h.b16 %v49
    %v176 = vunpack.c.l.b16 %v50
    %v177 = vunpack.c.h.b16 %v50
    %v178 = vunpack.c.l.b16 %v51
    %v179 = vunpack.c.h.b16 %v51
    %v180 = vunpack.c.l.b16 %v52
    %v181 = vunpack.c.h.b16 %v52
    %v182 = vunpack.c.l.b16 %v53
    %v183 = vunpack.c.h.b16 %v53
    %v184 = vunpack.c.l.b16 %v54
    %v185 = vunpack.c.h.b16 %v54
    %v186 = vunpack.c.l.b16 %v55
    %v187 = vunpack.c.h.b16 %v55
    %v188 = vunpack.c.l.b16 %v56
    %v189 = vunpack.c.h.b16 %v56
    %v190 = vunpack.c.l.b16 %v57
    %v191 = vunpack.c.h.b16 %v57
    %v192 = vunpack.c.l.b16 %v58
    %v193 = vunpack.c.h.b16 %v58
    %v194 = vunpack.c.l.b16 %v59
    %v195 = vunpack.c.h.b16 %v59
    %v196 = vunpack.c.l.b16 %v60
    %v197 = vunpack.c.h.b16 %v60
    %v198 = vunpack.c.l.b16 %v61
    %v199 = vunpack.c.h.b16 %v61
    %v200 = vunpack.c.l.b16 %v62
    %v201 = vunpack.c.h.b16 %v62
    %v202 = vunpack.c.l.b16 %v63
    %v203 = vunpack.c.h.b16 %v63
    %v204 = vunpack.c.l.b16 %v64
    %v205 = vunpack.c.h.b16 %v64
    %v206 = vunpack.c.l.b16 %v65
    %v207 = vunpack.c.h.b16 %v65
    %v208 = vunpack.c.l.b16 %v66
    %v209 = vunpack.c.h.b16 %v66
    %v210 = vunpack.c.l.b16 %v67
    %v211 = vunpack.c.h.b16 %v67
    %v212 = vunpack.c.l.b16 %v68
    %v213 = vunpack.c.h.b16 %v68
    %v214 = vunpack.c.l.b16 %v69
    %v215 = vunpack.c.h.b16 %v69
    %v216 = vunpack.c.l.b16 %v70
    %v217 = vunpack.c.h.b16 %v70
    %v218 = vunpack.c.l.b16 %v71
    %v219 = vunpack.c.h.b16 %v71
    %v220 = vunpack.c.l.b16 %v72
    %v221 = vunpack.c.h.b16 %v72
    %v222 = vunpack.c.l.b16 %v73
    %v223 = vunpack.c.h.b16 %v73
    %v224 = vunpack.c.l.b16 %v74
    %v225 = vunpack.c.h.b16 %v74
    %v226 = vunpack.c.l.b16 %v75
    %v227 = vunpack.c.h.b16 %v75
    %v228 = vunpack.c.l.b16 %v76
    %v229 = vunpack.c.h.b16 %v76
    %v230 = vunpack.c.l.b16 %v77
    %v231 = vunpack.c.h.b16 %v77
    %v232 = vpack.c.b16 %v172, %v168
    %v233 = vpack.c.b16 %v173, %v169
    %v234 = vpack.c.b16 %v174, %v170
    %v235 = vpack.c.b16 %v175, %v171
    %v236 = vpack.c.b16 %v180, %v176
    %v237 = vpack.c.b16 %v181, %v177
    %v238 = vpack.c.b16 %v182, %v178
    %v239 = vpack.c.b16 %v183, %v179
    %v240 = vpack.c.b16 %v188, %v184
    %v241 = vpack.c.b16 %v189, %v185
    %v242 = vpack.c.b16 %v190, %v186
    %v243 = vpack.c.b16 %v191, %v187
    %v244 = vpack.c.b16 %v196, %v192
    %v245 = vpack.c.b16 %v197, %v193
    %v246 = vpack.c.b16 %v198, %v194
    %v247 = vpack.c.b16 %v199, %v195
    %v248 = vpack.c.b16 %v204, %v200
    %v249 = vpack.c.b16 %v205, %v201
    %v250 = vpack.c.b16 %v206, %v202
    %v251 = vpack.c.b16 %v207, %v203
    %v252 = vpack.c.b16 %v212, %v208
    %v253 = vpack.c.b16 %v213, %v209
    %v254 = vpack.c.b16 %v214, %v210
    %v255 = vpack.c.b16 %v215, %v211
    %v256 = vpack.c.b16 %v220, %v216
    %v257 = vpack.c.b16 %v221, %v217
    %v258 = vpack.c.b16 %v222, %v218
    %v259 = vpack.c.b16 %v223, %v219
    %v260 = vpack.c.b16 %v228, %v224
    %v261 = vpack.c.b16 %v229, %v225
    %v262 = vpack.c.b16 %v230, %v226
    %v263 = vpack.c.b16 %v231, %v227
    %296 = vmatpush.bf16.msra.mxu0 %v260
    %297 = vmatpush.bf16.msra.mxu0 %v256
    %298 = vmatpush.bf16.msra.mxu0 %v252
    %299 = vmatpush.bf16.msra.mxu0 %v248
    %300 = vmatpush.bf16.msra.mxu0 %v244
    %301 = vmatpush.bf16.msra.mxu0 %v240
    %302 = vmatpush.bf16.msra.mxu0 %v236
    %303 = vmatpush.bf16.msra.mxu0 %v232
    %304 = vmatmul.bf16.gmra.mxu0 %v120
    %v305 = vpop.f32.mrf.mxu0
    %v306 = vadd.f32 %v80, %v305
    %v307 = vpop.f32.mrf.mxu0
    %v308 = vadd.f32 %v80, %v307
    %309 = vmatmul.bf16.gmra.mxu0 %v121
    %v310 = vpop.f32.mrf.mxu0
    %v311 = vadd.f32 %v80, %v310
    %v312 = vpop.f32.mrf.mxu0
    %v313 = vadd.f32 %v80, %v312
    %314 = vmatmul.bf16.gmra.mxu0 %v122
    %v315 = vpop.f32.mrf.mxu0
    %v316 = vadd.f32 %v80, %v315
    %v317 = vpop.f32.mrf.mxu0
    %v318 = vadd.f32 %v80, %v317
    %319 = vmatmul.bf16.gmra.mxu0 %v123
    %v320 = vpop.f32.mrf.mxu0
    %v321 = vadd.f32 %v80, %v320
    %v322 = vpop.f32.mrf.mxu0
    %v323 = vadd.f32 %v80, %v322
    %324 = vmatmul.bf16.gmra.mxu0 %v124
    %v325 = vpop.f32.mrf.mxu0
    %v326 = vadd.f32 %v80, %v325
    %v327 = vpop.f32.mrf.mxu0
    %v328 = vadd.f32 %v80, %v327
    %329 = vmatmul.bf16.gmra.mxu0 %v125
    %v330 = vpop.f32.mrf.mxu0
    %v331 = vadd.f32 %v80, %v330
    %v332 = vpop.f32.mrf.mxu0
    %v333 = vadd.f32 %v80, %v332
    %334 = vmatmul.bf16.gmra.mxu0 %v126
    %v335 = vpop.f32.mrf.mxu0
    %v336 = vadd.f32 %v80, %v335
    %v337 = vpop.f32.mrf.mxu0
    %v338 = vadd.f32 %v80, %v337
    %339 = vmatmul.bf16.gmra.mxu0 %v127
    %v340 = vpop.f32.mrf.mxu0
    %v341 = vadd.f32 %v80, %v340
    %v342 = vpop.f32.mrf.mxu0
    %v343 = vadd.f32 %v80, %v342
    %344 = vdwg.mxu0
    %345 = vmatpush.bf16.msra.mxu0 %v261
    %346 = vmatpush.bf16.msra.mxu0 %v257
    %347 = vmatpush.bf16.msra.mxu0 %v253
    %348 = vmatpush.bf16.msra.mxu0 %v249
    %349 = vmatpush.bf16.msra.mxu0 %v245
    %350 = vmatpush.bf16.msra.mxu0 %v241
    %351 = vmatpush.bf16.msra.mxu0 %v237
    %352 = vmatpush.bf16.msra.mxu0 %v233
    %353 = vmatmul.bf16.gmra.mxu0 %v120
    %v354 = vpop.f32.mrf.mxu0
    %v355 = vadd.f32 %v81, %v354
    %v356 = vpop.f32.mrf.mxu0
    %v357 = vadd.f32 %v81, %v356
    %358 = vmatmul.bf16.gmra.mxu0 %v121
    %v359 = vpop.f32.mrf.mxu0
    %v360 = vadd.f32 %v81, %v359
    %v361 = vpop.f32.mrf.mxu0
    %v362 = vadd.f32 %v81, %v361
    %363 = vmatmul.bf16.gmra.mxu0 %v122
    %v364 = vpop.f32.mrf.mxu0
    %v365 = vadd.f32 %v81, %v364
    %v366 = vpop.f32.mrf.mxu0
    %v367 = vadd.f32 %v81, %v366
    %368 = vmatmul.bf16.gmra.mxu0 %v123
    %v369 = vpop.f32.mrf.mxu0
    %v370 = vadd.f32 %v81, %v369
    %v371 = vpop.f32.mrf.mxu0
    %v372 = vadd.f32 %v81, %v371
    %373 = vmatmul.bf16.gmra.mxu0 %v124
    %v374 = vpop.f32.mrf.mxu0
    %v375 = vadd.f32 %v81, %v374
    %v376 = vpop.f32.mrf.mxu0
    %v377 = vadd.f32 %v81, %v376
    %378 = vmatmul.bf16.gmra.mxu0 %v125
    %v379 = vpop.f32.mrf.mxu0
    %v380 = vadd.f32 %v81, %v379
    %v381 = vpop.f32.mrf.mxu0
    %v382 = vadd.f32 %v81, %v381
    %383 = vmatmul.bf16.gmra.mxu0 %v126
    %v384 = vpop.f32.mrf.mxu0
    %v385 = vadd.f32 %v81, %v384
    %v386 = vpop.f32.mrf.mxu0
    %v387 = vadd.f32 %v81, %v386
    %388 = vmatmul.bf16.gmra.mxu0 %v127
    %v389 = vpop.f32.mrf.mxu0
    %v390 = vadd.f32 %v81, %v389
    %v391 = vpop.f32.mrf.mxu0
    %v392 = vadd.f32 %v81, %v391
    %393 = vdwg.mxu0
    %394 = vmatpush.bf16.msra.mxu0 %v262
    %395 = vmatpush.bf16.msra.mxu0 %v258
    %396 = vmatpush.bf16.msra.mxu0 %v254
    %397 = vmatpush.bf16.msra.mxu0 %v250
    %398 = vmatpush.bf16.msra.mxu0 %v246
    %399 = vmatpush.bf16.msra.mxu0 %v242
    %400 = vmatpush.bf16.msra.mxu0 %v238
    %401 = vmatpush.bf16.msra.mxu0 %v234
    %402 = vmatmul.bf16.gmra.mxu0 %v120
    %v403 = vpop.f32.mrf.mxu0
    %v404 = vadd.f32 %v82, %v403
    %v405 = vpop.f32.mrf.mxu0
    %v406 = vadd.f32 %v82, %v405
    %407 = vmatmul.bf16.gmra.mxu0 %v121
    %v408 = vpop.f32.mrf.mxu0
    %v409 = vadd.f32 %v82, %v408
    %v410 = vpop.f32.mrf.mxu0
    %v411 = vadd.f32 %v82, %v410
    %412 = vmatmul.bf16.gmra.mxu0 %v122
    %v413 = vpop.f32.mrf.mxu0
    %v414 = vadd.f32 %v82, %v413
    %v415 = vpop.f32.mrf.mxu0
    %v416 = vadd.f32 %v82, %v415
    %417 = vmatmul.bf16.gmra.mxu0 %v123
    %v418 = vpop.f32.mrf.mxu0
    %v419 = vadd.f32 %v82, %v418
    %v420 = vpop.f32.mrf.mxu0
    %v421 = vadd.f32 %v82, %v420
    %422 = vmatmul.bf16.gmra.mxu0 %v124
    %v423 = vpop.f32.mrf.mxu0
    %v424 = vadd.f32 %v82, %v423
    %v425 = vpop.f32.mrf.mxu0
    %v426 = vadd.f32 %v82, %v425
    %427 = vmatmul.bf16.gmra.mxu0 %v125
    %v428 = vpop.f32.mrf.mxu0
    %v429 = vadd.f32 %v82, %v428
    %v430 = vpop.f32.mrf.mxu0
    %v431 = vadd.f32 %v82, %v430
    %432 = vmatmul.bf16.gmra.mxu0 %v126
    %v433 = vpop.f32.mrf.mxu0
    %v434 = vadd.f32 %v82, %v433
    %v435 = vpop.f32.mrf.mxu0
    %v436 = vadd.f32 %v82, %v435
    %437 = vmatmul.bf16.gmra.mxu0 %v127
    %v438 = vpop.f32.mrf.mxu0
    %v439 = vadd.f32 %v82, %v438
    %v440 = vpop.f32.mrf.mxu0
    %v441 = vadd.f32 %v82, %v440
    %442 = vdwg.mxu0
    %443 = vmatpush.bf16.msra.mxu0 %v263
    %444 = vmatpush.bf16.msra.mxu0 %v259
    %445 = vmatpush.bf16.msra.mxu0 %v255
    %446 = vmatpush.bf16.msra.mxu0 %v251
    %447 = vmatpush.bf16.msra.mxu0 %v247
    %448 = vmatpush.bf16.msra.mxu0 %v243
    %449 = vmatpush.bf16.msra.mxu0 %v239
    %450 = vmatpush.bf16.msra.mxu0 %v235
    %451 = vmatmul.bf16.gmra.mxu0 %v120
    %v452 = vpop.f32.mrf.mxu0
    %v453 = vadd.f32 %v83, %v452
    %v454 = vpop.f32.mrf.mxu0
    %v455 = vadd.f32 %v83, %v454
    %456 = vmatmul.bf16.gmra.mxu0 %v121
    %v457 = vpop.f32.mrf.mxu0
    %v458 = vadd.f32 %v83, %v457
    %v459 = vpop.f32.mrf.mxu0
    %v460 = vadd.f32 %v83, %v459
    %461 = vmatmul.bf16.gmra.mxu0 %v122
    %v462 = vpop.f32.mrf.mxu0
    %v463 = vadd.f32 %v83, %v462
    %v464 = vpop.f32.mrf.mxu0
    %v465 = vadd.f32 %v83, %v464
    %466 = vmatmul.bf16.gmra.mxu0 %v123
    %v467 = vpop.f32.mrf.mxu0
    %v468 = vadd.f32 %v83, %v467
    %v469 = vpop.f32.mrf.mxu0
    %v470 = vadd.f32 %v83, %v469
    %471 = vmatmul.bf16.gmra.mxu0 %v124
    %v472 = vpop.f32.mrf.mxu0
    %v473 = vadd.f32 %v83, %v472
    %v474 = vpop.f32.mrf.mxu0
    %v475 = vadd.f32 %v83, %v474
    %476 = vmatmul.bf16.gmra.mxu0 %v125
    %v477 = vpop.f32.mrf.mxu0
    %v478 = vadd.f32 %v83, %v477
    %v479 = vpop.f32.mrf.mxu0
    %v480 = vadd.f32 %v83, %v479
    %481 = vmatmul.bf16.gmra.mxu0 %v126
    %v482 = vpop.f32.mrf.mxu0
    %v483 = vadd.f32 %v83, %v482
    %v484 = vpop.f32.mrf.mxu0
    %v485 = vadd.f32 %v83, %v484
    %486 = vmatmul.bf16.gmra.mxu0 %v127
    %v487 = vpop.f32.mrf.mxu0
    %v488 = vadd.f32 %v83, %v487
    %v489 = vpop.f32.mrf.mxu0
    %v490 = vadd.f32 %v83, %v489
    %491 = vdwg.mxu0
    %492 = vst [vmem:[%s3] sm:$0xff] %v306
    %493 = vst [vmem:[%s3 + $0x8] sm:$0xff] %v355
    %494 = vst [vmem:[%s3 + $0x10] sm:$0xff] %v404
    %495 = vst [vmem:[%s3 + $0x18] sm:$0xff] %v453
    %496 = vst [vmem:[%s3 + $0x20] sm:$0xff] %v308
    %497 = vst [vmem:[%s3 + $0x28] sm:$0xff] %v357
    %498 = vst [vmem:[%s3 + $0x30] sm:$0xff] %v406
    %499 = vst [vmem:[%s3 + $0x38] sm:$0xff] %v455
    %500 = vst [vmem:[%s3 + $0x40] sm:$0xff] %v311
    %501 = vst [vmem:[%s3 + $0x48] sm:$0xff] %v360
    %502 = vst [vmem:[%s3 + $0x50] sm:$0xff] %v409
    %503 = vst [vmem:[%s3 + $0x58] sm:$0xff] %v458
    %504 = vst [vmem:[%s3 + $0x60] sm:$0xff] %v313
    %505 = vst [vmem:[%s3 + $0x68] sm:$0xff] %v362
    %506 = vst [vmem:[%s3 + $0x70] sm:$0xff] %v411
    %507 = vst [vmem:[%s3 + $0x78] sm:$0xff] %v460
    %508 = vst [vmem:[%s3 + $0x80] sm:$0xff] %v316
    %509 = vst [vmem:[%s3 + $0x88] sm:$0xff] %v365
    %510 = vst [vmem:[%s3 + $0x90] sm:$0xff] %v414
    %511 = vst [vmem:[%s3 + $0x98] sm:$0xff] %v463
    %512 = vst [vmem:[%s3 + $0xa0] sm:$0xff] %v318
    %513 = vst [vmem:[%s3 + $0xa8] sm:$0xff] %v367
    %514 = vst [vmem:[%s3 + $0xb0] sm:$0xff] %v416
    %515 = vst [vmem:[%s3 + $0xb8] sm:$0xff] %v465
    %516 = vst [vmem:[%s3 + $0xc0] sm:$0xff] %v321
    %517 = vst [vmem:[%s3 + $0xc8] sm:$0xff] %v370
    %518 = vst [vmem:[%s3 + $0xd0] sm:$0xff] %v419
    %519 = vst [vmem:[%s3 + $0xd8] sm:$0xff] %v468
    %520 = vst [vmem:[%s3 + $0xe0] sm:$0xff] %v323
    %521 = vst [vmem:[%s3 + $0xe8] sm:$0xff] %v372
    %522 = vst [vmem:[%s3 + $0xf0] sm:$0xff] %v421
    %523 = vst [vmem:[%s3 + $0xf8] sm:$0xff] %v470
    %524 = vst [vmem:[%s3 + $0x100] sm:$0xff] %v326
    %525 = vst [vmem:[%s3 + $0x108] sm:$0xff] %v375
    %526 = vst [vmem:[%s3 + $0x110] sm:$0xff] %v424
    %527 = vst [vmem:[%s3 + $0x118] sm:$0xff] %v473
    %528 = vst [vmem:[%s3 + $0x120] sm:$0xff] %v328
    %529 = vst [vmem:[%s3 + $0x128] sm:$0xff] %v377
    %530 = vst [vmem:[%s3 + $0x130] sm:$0xff] %v426
    %531 = vst [vmem:[%s3 + $0x138] sm:$0xff] %v475
    %532 = vst [vmem:[%s3 + $0x140] sm:$0xff] %v331
    %533 = vst [vmem:[%s3 + $0x148] sm:$0xff] %v380
    %534 = vst [vmem:[%s3 + $0x150] sm:$0xff] %v429
    %535 = vst [vmem:[%s3 + $0x158] sm:$0xff] %v478
    %536 = vst [vmem:[%s3 + $0x160] sm:$0xff] %v333
    %537 = vst [vmem:[%s3 + $0x168] sm:$0xff] %v382
    %538 = vst [vmem:[%s3 + $0x170] sm:$0xff] %v431
    %539 = vst [vmem:[%s3 + $0x178] sm:$0xff] %v480
    %540 = vst [vmem:[%s3 + $0x180] sm:$0xff] %v336
    %541 = vst [vmem:[%s3 + $0x188] sm:$0xff] %v385
    %542 = vst [vmem:[%s3 + $0x190] sm:$0xff] %v434
    %543 = vst [vmem:[%s3 + $0x198] sm:$0xff] %v483
    %544 = vst [vmem:[%s3 + $0x1a0] sm:$0xff] %v338
    %545 = vst [vmem:[%s3 + $0x1a8] sm:$0xff] %v387
    %546 = vst [vmem:[%s3 + $0x1b0] sm:$0xff] %v436
    %547 = vst [vmem:[%s3 + $0x1b8] sm:$0xff] %v485
    %548 = vst [vmem:[%s3 + $0x1c0] sm:$0xff] %v341
    %549 = vst [vmem:[%s3 + $0x1c8] sm:$0xff] %v390
    %550 = vst [vmem:[%s3 + $0x1d0] sm:$0xff] %v439
    %551 = vst [vmem:[%s3 + $0x1d8] sm:$0xff] %v488
    %552 = vst [vmem:[%s3 + $0x1e0] sm:$0xff] %v343
    %553 = vst [vmem:[%s3 + $0x1e8] sm:$0xff] %v392
    %554 = vst [vmem:[%s3 + $0x1f0] sm:$0xff] %v441
    %555 = vst [vmem:[%s3 + $0x1f8] sm:$0xff] %v490
    // Predicated region
    $region18: #{rnn_forward.7} parent=1 // pred_check
      _
    $region19: #{rnn_forward.7} parent=1 // pred_check_branch
      %557 = sbr.rel (0) target = $region21
    $region20: #{rnn_forward.7} parent=1 // pred_region
      _
    $region21: #{rnn_forward.7} parent=1 // pred_fallthru
      _
    // Predicated region
    $region22: #{rnn_forward.7} parent=1 // pred_check
      _
    $region23: #{rnn_forward.7} parent=1 // pred_check_branch
      %559 = sbr.rel (0) target = $region25
    $region24: #{rnn_forward.7} parent=1 // pred_region
      _
    $region25: #{rnn_forward.7} parent=1 // pred_fallthru
      _
    %560 = vsyncpa [#allocation3], 1

// kernel: rnn_forward.6
$region0: #{rnn_forward.6}
  #allocation0 [shape = 'u32[]', space=smem, size = 0x4, offset = 0x4, fixed_abs, tag = 'smem constant byte address 0x4 - core index']
  #allocation1 [shape = 'u32[72,128]{1,0:T(1,128)}', space=vmem, size = 0x9000, scoped, tag = 'internal scratch']
  #allocation2 [shape = 'f32[16,128]{1,0:T(8,128)}', space=vmem, size = 0x2000, scoped, tag = 'scratch operand']
  #allocation3 [shape = 'f32[16,128]{1,0:T(8,128)}', space=vmem, size = 0x2000, scoped, tag = 'scratch operand']
  %s0 = inlined_call_operand.vmem [shape: bf16[8,16,512], index: 0, kind: input, shape index: {}]
  %s1 = inlined_call_operand.vmem [shape: bf16[128,512], index: 1, kind: input, shape index: {}]
  %s2 = inlined_call_operand.vmem [shape: f32[16,256], index: 2, kind: input, shape index: {}]
  %s3 = inlined_call_operand.vmem [shape: bf16[8,16,128], index: 3, kind: output, shape index: {}]
  %s4 = sld [smem:[#allocation0]]
  $region26: #{rnn_forward.6} parent=0
    _
  %s6 = ssub.s32 1, %s4
  %s7 = scalar_select 0, %s6, %s4
  // Predicated region
  $region2: #{rnn_forward.6} parent=0 // pred_check
    _
  $region3: #{rnn_forward.6} parent=0 // pred_check_branch
    %9 = sbr.rel (0) target = $region5
  $region4: #{rnn_forward.6} parent=0 // pred_region
    _
  $region5: #{rnn_forward.6} parent=0 // pred_fallthru
    _
  // Predicated region
  $region6: #{rnn_forward.6} parent=0 // pred_check
    _
  $region7: #{rnn_forward.6} parent=0 // pred_check_branch
    %11 = sbr.rel (0) target = $region9
  $region8: #{rnn_forward.6} parent=0 // pred_region
    _
  $region9: #{rnn_forward.6} parent=0 // pred_fallthru
    _
  // Predicated region
  $region10: #{rnn_forward.6} parent=0 // pred_check
    _
  $region11: #{rnn_forward.6} parent=0 // pred_check_branch
    %13 = sbr.rel (0) target = $region13
  $region12: #{rnn_forward.6} parent=0 // pred_region
    _
  $region13: #{rnn_forward.6} parent=0 // pred_fallthru
    _
  %p14 = scmp.eq.s32.totalorder 0, 0
  // Predicated region
  $region14: #{rnn_forward.6} parent=0 // pred_check
    %p15 = pneg %p14
  $region15: #{rnn_forward.6} parent=0 // pred_check_branch
    %17 = sbr.rel (%p15) target = $region17
  $region16: #{rnn_forward.6} parent=0 // pred_region
    %v18 = vld [vmem:[%s2] sm:$0xff]
    %v19 = vld [vmem:[%s2 + $0x10] sm:$0xff]
    %20 = vst [vmem:[#allocation2] sm:$0xff] %v18
    %21 = vst [vmem:[#allocation2 + $0x8] sm:$0xff] %v19
    %v22 = vld [vmem:[%s2 + $0x8] sm:$0xff]
    %v23 = vld [vmem:[%s2 + $0x18] sm:$0xff]
    %24 = vst [vmem:[#allocation3] sm:$0xff] %v22
    %25 = vst [vmem:[#allocation3 + $0x8] sm:$0xff] %v23
  $region17: #{rnn_forward.6} parent=0 // pred_fallthru
    _
  %v26 = vld [vmem:[#allocation2] sm:$0xff]
  %v27 = vld [vmem:[#allocation2 + $0x8] sm:$0xff]
  %v28 = vld [vmem:[#allocation3] sm:$0xff]
  %v29 = vld [vmem:[#allocation3 + $0x8] sm:$0xff]
  %v30 = vld [vmem:[%s0] sm:$0xff]
  %v31 = vld [vmem:[%s0 + $0x8] sm:$0xff]
  %v32 = vld [vmem:[%s0 + $0x10] sm:$0xff]
  %v33 = vld [vmem:[%s0 + $0x18] sm:$0xff]
  %v34 = vunpack.c.l.bf16 %v30
  %v35 = vunpack.c.h.bf16 %v30
  %v36 = vunpack.c.l.bf16 %v31
  %v37 = vunpack.c.h.bf16 %v31
  %v38 = vunpack.c.l.bf16 %v32
  %v39 = vunpack.c.h.bf16 %v32
  %v40 = vunpack.c.l.bf16 %v33
  %v41 = vunpack.c.h.bf16 %v33
  %v42 = vpack.c.bf16 %v27, %v26
  %v43 = vld [vmem:[%s1] sm:$0xff]
  %v44 = vld [vmem:[%s1 + $0x8] sm:$0xff]
  %v45 = vld [vmem:[%s1 + $0x10] sm:$0xff]
  %v46 = vld [vmem:[%s1 + $0x18] sm:$0xff]
  %v47 = vld [vmem:[%s1 + $0x20] sm:$0xff]
  %v48 = vld [vmem:[%s1 + $0x28] sm:$0xff]
  %v49 = vld [vmem:[%s1 + $0x30] sm:$0xff]
  %v50 = vld [vmem:[%s1 + $0x38] sm:$0xff]
  %v51 = vld [vmem:[%s1 + $0x40] sm:$0xff]
  %v52 = vld [vmem:[%s1 + $0x48] sm:$0xff]
  %v53 = vld [vmem:[%s1 + $0x50] sm:$0xff]
  %v54 = vld [vmem:[%s1 + $0x58] sm:$0xff]
  %v55 = vld [vmem:[%s1 + $0x60] sm:$0xff]
  %v56 = vld [vmem:[%s1 + $0x68] sm:$0xff]
  %v57 = vld [vmem:[%s1 + $0x70] sm:$0xff]
  %v58 = vld [vmem:[%s1 + $0x78] sm:$0xff]
  %v59 = vld [vmem:[%s1 + $0x80] sm:$0xff]
  %v60 = vld [vmem:[%s1 + $0x88] sm:$0xff]
  %v61 = vld [vmem:[%s1 + $0x90] sm:$0xff]
  %v62 = vld [vmem:[%s1 + $0x98] sm:$0xff]
  %v63 = vld [vmem:[%s1 + $0xa0] sm:$0xff]
  %v64 = vld [vmem:[%s1 + $0xa8] sm:$0xff]
  %v65 = vld [vmem:[%s1 + $0xb0] sm:$0xff]
  %v66 = vld [vmem:[%s1 + $0xb8] sm:$0xff]
  %v67 = vld [vmem:[%s1 + $0xc0] sm:$0xff]
  %v68 = vld [vmem:[%s1 + $0xc8] sm:$0xff]
  %v69 = vld [vmem:[%s1 + $0xd0] sm:$0xff]
  %v70 = vld [vmem:[%s1 + $0xd8] sm:$0xff]
  %v71 = vld [vmem:[%s1 + $0xe0] sm:$0xff]
  %v72 = vld [vmem:[%s1 + $0xe8] sm:$0xff]
  %v73 = vld [vmem:[%s1 + $0xf0] sm:$0xff]
  %v74 = vld [vmem:[%s1 + $0xf8] sm:$0xff]
  %v107 = vunpack.c.l.b16 %v43
  %v108 = vunpack.c.h.b16 %v43
  %v109 = vunpack.c.l.b16 %v44
  %v110 = vunpack.c.h.b16 %v44
  %v111 = vunpack.c.l.b16 %v45
  %v112 = vunpack.c.h.b16 %v45
  %v113 = vunpack.c.l.b16 %v46
  %v114 = vunpack.c.h.b16 %v46
  %v115 = vunpack.c.l.b16 %v47
  %v116 = vunpack.c.h.b16 %v47
  %v117 = vunpack.c.l.b16 %v48
  %v118 = vunpack.c.h.b16 %v48
  %v119 = vunpack.c.l.b16 %v49
  %v120 = vunpack.c.h.b16 %v49
  %v121 = vunpack.c.l.b16 %v50
  %v122 = vunpack.c.h.b16 %v50
  %v123 = vunpack.c.l.b16 %v51
  %v124 = vunpack.c.h.b16 %v51
  %v125 = vunpack.c.l.b16 %v52
  %v126 = vunpack.c.h.b16 %v52
  %v127 = vunpack.c.l.b16 %v53
  %v128 = vunpack.c.h.b16 %v53
  %v129 = vunpack.c.l.b16 %v54
  %v130 = vunpack.c.h.b16 %v54
  %v131 = vunpack.c.l.b16 %v55
  %v132 = vunpack.c.h.b16 %v55
  %v133 = vunpack.c.l.b16 %v56
  %v134 = vunpack.c.h.b16 %v56
  %v135 = vunpack.c.l.b16 %v57
  %v136 = vunpack.c.h.b16 %v57
  %v137 = vunpack.c.l.b16 %v58
  %v138 = vunpack.c.h.b16 %v58
  %v139 = vunpack.c.l.b16 %v59
  %v140 = vunpack.c.h.b16 %v59
  %v141 = vunpack.c.l.b16 %v60
  %v142 = vunpack.c.h.b16 %v60
  %v143 = vunpack.c.l.b16 %v61
  %v144 = vunpack.c.h.b16 %v61
  %v145 = vunpack.c.l.b16 %v62
  %v146 = vunpack.c.h.b16 %v62
  %v147 = vunpack.c.l.b16 %v63
  %v148 = vunpack.c.h.b16 %v63
  %v149 = vunpack.c.l.b16 %v64
  %v150 = vunpack.c.h.b16 %v64
  %v151 = vunpack.c.l.b16 %v65
  %v152 = vunpack.c.h.b16 %v65
  %v153 = vunpack.c.l.b16 %v66
  %v154 = vunpack.c.h.b16 %v66
  %v155 = vunpack.c.l.b16 %v67
  %v156 = vunpack.c.h.b16 %v67
  %v157 = vunpack.c.l.b16 %v68
  %v158 = vunpack.c.h.b16 %v68
  %v159 = vunpack.c.l.b16 %v69
  %v160 = vunpack.c.h.b16 %v69
  %v161 = vunpack.c.l.b16 %v70
  %v162 = vunpack.c.h.b16 %v70
  %v163 = vunpack.c.l.b16 %v71
  %v164 = vunpack.c.h.b16 %v71
  %v165 = vunpack.c.l.b16 %v72
  %v166 = vunpack.c.h.b16 %v72
  %v167 = vunpack.c.l.b16 %v73
  %v168 = vunpack.c.h.b16 %v73
  %v169 = vunpack.c.l.b16 %v74
  %v170 = vunpack.c.h.b16 %v74
  %v171 = vpack.c.b16 %v111, %v107
  %v172 = vpack.c.b16 %v112, %v108
  %v173 = vpack.c.b16 %v113, %v109
  %v174 = vpack.c.b16 %v114, %v110
  %v175 = vpack.c.b16 %v119, %v115
  %v176 = vpack.c.b16 %v120, %v116
  %v177 = vpack.c.b16 %v121, %v117
  %v178 = vpack.c.b16 %v122, %v118
  %v179 = vpack.c.b16 %v127, %v123
  %v180 = vpack.c.b16 %v128, %v124
  %v181 = vpack.c.b16 %v129, %v125
  %v182 = vpack.c.b16 %v130, %v126
  %v183 = vpack.c.b16 %v135, %v131
  %v184 = vpack.c.b16 %v136, %v132
  %v185 = vpack.c.b16 %v137, %v133
  %v186 = vpack.c.b16 %v138, %v134
  %v187 = vpack.c.b16 %v143, %v139
  %v188 = vpack.c.b16 %v144, %v140
  %v189 = vpack.c.b16 %v145, %v141
  %v190 = vpack.c.b16 %v146, %v142
  %v191 = vpack.c.b16 %v151, %v147
  %v192 = vpack.c.b16 %v152, %v148
  %v193 = vpack.c.b16 %v153, %v149
  %v194 = vpack.c.b16 %v154, %v150
  %v195 = vpack.c.b16 %v159, %v155
  %v196 = vpack.c.b16 %v160, %v156
  %v197 = vpack.c.b16 %v161, %v157
  %v198 = vpack.c.b16 %v162, %v158
  %v199 = vpack.c.b16 %v167, %v163
  %v200 = vpack.c.b16 %v168, %v164
  %v201 = vpack.c.b16 %v169, %v165
  %v202 = vpack.c.b16 %v170, %v166
  %235 = vmatpush.bf16.msra.mxu0 %v199
  %236 = vmatpush.bf16.msra.mxu0 %v195
  %237 = vmatpush.bf16.msra.mxu0 %v191
  %238 = vmatpush.bf16.msra.mxu0 %v187
  %239 = vmatpush.bf16.msra.mxu0 %v183
  %240 = vmatpush.bf16.msra.mxu0 %v179
  %241 = vmatpush.bf16.msra.mxu0 %v175
  %242 = vmatpush.bf16.msra.mxu0 %v171
  %243 = vmatmul.bf16.gmra.mxu0 %v42
  %v244 = vpop.f32.mrf.mxu0
  %v245 = vadd.f32 0.0, %v244
  %v246 = vpop.f32.mrf.mxu0
  %v247 = vadd.f32 0.0, %v246
  %248 = vdwg.mxu0
  %249 = vmatpush.bf16.msra.mxu0 %v200
  %250 = vmatpush.bf16.msra.mxu0 %v196
  %251 = vmatpush.bf16.msra.mxu0 %v192
  %252 = vmatpush.bf16.msra.mxu0 %v188
  %253 = vmatpush.bf16.msra.mxu0 %v184
  %254 = vmatpush.bf16.msra.mxu0 %v180
  %255 = vmatpush.bf16.msra.mxu0 %v176
  %256 = vmatpush.bf16.msra.mxu0 %v172
  %257 = vmatmul.bf16.gmra.mxu0 %v42
  %v258 = vpop.f32.mrf.mxu0
  %v259 = vadd.f32 0.0, %v258
  %v260 = vpop.f32.mrf.mxu0
  %v261 = vadd.f32 0.0, %v260
  %262 = vdwg.mxu0
  %263 = vmatpush.bf16.msra.mxu0 %v201
  %264 = vmatpush.bf16.msra.mxu0 %v197
  %265 = vmatpush.bf16.msra.mxu0 %v193
  %266 = vmatpush.bf16.msra.mxu0 %v189
  %267 = vmatpush.bf16.msra.mxu0 %v185
  %268 = vmatpush.bf16.msra.mxu0 %v181
  %269 = vmatpush.bf16.msra.mxu0 %v177
  %270 = vmatpush.bf16.msra.mxu0 %v173
  %271 = vmatmul.bf16.gmra.mxu0 %v42
  %v272 = vpop.f32.mrf.mxu0
  %v273 = vadd.f32 0.0, %v272
  %v274 = vpop.f32.mrf.mxu0
  %v275 = vadd.f32 0.0, %v274
  %276 = vdwg.mxu0
  %277 = vmatpush.bf16.msra.mxu0 %v202
  %278 = vmatpush.bf16.msra.mxu0 %v198
  %279 = vmatpush.bf16.msra.mxu0 %v194
  %280 = vmatpush.bf16.msra.mxu0 %v190
  %281 = vmatpush.bf16.msra.mxu0 %v186
  %282 = vmatpush.bf16.msra.mxu0 %v182
  %283 = vmatpush.bf16.msra.mxu0 %v178
  %284 = vmatpush.bf16.msra.mxu0 %v174
  %285 = vmatmul.bf16.gmra.mxu0 %v42
  %v286 = vpop.f32.mrf.mxu0
  %v287 = vadd.f32 0.0, %v286
  %v288 = vpop.f32.mrf.mxu0
  %v289 = vadd.f32 0.0, %v288
  %290 = vdwg.mxu0
  %v291 = vadd.f32 %v34, %v245
  %v292 = vadd.f32 %v35, %v259
  %v293 = vadd.f32 %v36, %v273
  %v294 = vadd.f32 %v37, %v287
  %v295 = vadd.f32 %v38, %v247
  %v296 = vadd.f32 %v39, %v261
  %v297 = vadd.f32 %v40, %v275
  %v298 = vadd.f32 %v41, %v289
  %v299 = vmul.f32 %v291, 0.5
  %v300 = vmul.f32 %v295, 0.5
  %v301 = vtanh.pop %v299
  %v302 = vtanh.pop %v300
  %v303 = vadd.f32 %v301, 1.0
  %v304 = vadd.f32 %v302, 1.0
  %v305 = vmul.f32 %v303, 0.5
  %v306 = vmul.f32 %v304, 0.5
  %v307 = vmul.f32 %v292, 0.5
  %v308 = vmul.f32 %v296, 0.5
  %v309 = vtanh.pop %v307
  %v310 = vtanh.pop %v308
  %v311 = vadd.f32 %v309, 1.0
  %v312 = vadd.f32 %v310, 1.0
  %v313 = vmul.f32 %v311, 0.5
  %v314 = vmul.f32 %v312, 0.5
  %v315 = vtanh.pop %v293
  %v316 = vtanh.pop %v297
  %v317 = vmul.f32 %v294, 0.5
  %v318 = vmul.f32 %v298, 0.5
  %v319 = vtanh.pop %v317
  %v320 = vtanh.pop %v318
  %v321 = vadd.f32 %v319, 1.0
  %v322 = vadd.f32 %v320, 1.0
  %v323 = vmul.f32 %v321, 0.5
  %v324 = vmul.f32 %v322, 0.5
  %v325 = vmul.f32 %v313, %v28
  %v326 = vmul.f32 %v314, %v29
  %v327 = vmul.f32 %v305, %v315
  %v328 = vmul.f32 %v306, %v316
  %v329 = vadd.f32 %v325, %v327
  %v330 = vadd.f32 %v326, %v328
  %v331 = vtanh.pop %v329
  %v332 = vtanh.pop %v330
  %v333 = vmul.f32 %v323, %v331
  %v334 = vmul.f32 %v324, %v332
  %v335 = vpack.c.bf16 %v333, %v333
  %v336 = vpack.c.bf16 %v334, %v334
  %337 = vst [vmem:[%s3] sm:$0xf] %v335
  %338 = vst [vmem:[%s3 + $0x4] sm:$0xf] %v336
  %s339 = scalar_lea.vmem %s0, 32
  %v340 = vld [vmem:[%s339] sm:$0xff]
  %v341 = vld [vmem:[%s339 + $0x8] sm:$0xff]
  %v342 = vld [vmem:[%s339 + $0x10] sm:$0xff]
  %v343 = vld [vmem:[%s339 + $0x18] sm:$0xff]
  %v344 = vunpack.c.l.bf16 %v340
  %v345 = vunpack.c.h.bf16 %v340
  %v346 = vunpack.c.l.bf16 %v341
  %v347 = vunpack.c.h.bf16 %v341
  %v348 = vunpack.c.l.bf16 %v342
  %v349 = vunpack.c.h.bf16 %v342
  %v350 = vunpack.c.l.bf16 %v343
  %v351 = vunpack.c.h.bf16 %v343
  %v352 = vld [vmem:[%s1] sm:$0xff]
  %v353 = vld [vmem:[%s1 + $0x8] sm:$0xff]
  %v354 = vld [vmem:[%s1 + $0x10] sm:$0xff]
  %v355 = vld [vmem:[%s1 + $0x18] sm:$0xff]
  %v356 = vld [vmem:[%s1 + $0x20] sm:$0xff]
  %v357 = vld [vmem:[%s1 + $0x28] sm:$0xff]
  %v358 = vld [vmem:[%s1 + $0x30] sm:$0xff]
  %v359 = vld [vmem:[%s1 + $0x38] sm:$0xff]
  %v360 = vld [vmem:[%s1 + $0x40] sm:$0xff]
  %v361 = vld [vmem:[%s1 + $0x48] sm:$0xff]
  %v362 = vld [vmem:[%s1 + $0x50] sm:$0xff]
  %v363 = vld [vmem:[%s1 + $0x58] sm:$0xff]
  %v364 = vld [vmem:[%s1 + $0x60] sm:$0xff]
  %v365 = vld [vmem:[%s1 + $0x68] sm:$0xff]
  %v366 = vld [vmem:[%s1 + $0x70] sm:$0xff]
  %v367 = vld [vmem:[%s1 + $0x78] sm:$0xff]
  %v368 = vld [vmem:[%s1 + $0x80] sm:$0xff]
  %v369 = vld [vmem:[%s1 + $0x88] sm:$0xff]
  %v370 = vld [vmem:[%s1 + $0x90] sm:$0xff]
  %v371 = vld [vmem:[%s1 + $0x98] sm:$0xff]
  %v372 = vld [vmem:[%s1 + $0xa0] sm:$0xff]
  %v373 = vld [vmem:[%s1 + $0xa8] sm:$0xff]
  %v374 = vld [vmem:[%s1 + $0xb0] sm:$0xff]
  %v375 = vld [vmem:[%s1 + $0xb8] sm:$0xff]
  %v376 = vld [vmem:[%s1 + $0xc0] sm:$0xff]
  %v377 = vld [vmem:[%s1 + $0xc8] sm:$0xff]
  %v378 = vld [vmem:[%s1 + $0xd0] sm:$0xff]
  %v379 = vld [vmem:[%s1 + $0xd8] sm:$0xff]
  %v380 = vld [vmem:[%s1 + $0xe0] sm:$0xff]
  %v381 = vld [vmem:[%s1 + $0xe8] sm:$0xff]
  %v382 = vld [vmem:[%s1 + $0xf0] sm:$0xff]
  %v383 = vld [vmem:[%s1 + $0xf8] sm:$0xff]
  %v386 = vunpack.c.l.b16 %v335
  %v387 = vunpack.c.l.b16 %v336
  %v388 = vpack.c.b16 %v387, %v386
  %v422 = vunpack.c.l.b16 %v352
  %v423 = vunpack.c.h.b16 %v352
  %v424 = vunpack.c.l.b16 %v353
  %v425 = vunpack.c.h.b16 %v353
  %v426 = vunpack.c.l.b16 %v354
  %v427 = vunpack.c.h.b16 %v354
  %v428 = vunpack.c.l.b16 %v355
  %v429 = vunpack.c.h.b16 %v355
  %v430 = vunpack.c.l.b16 %v356
  %v431 = vunpack.c.h.b16 %v356
  %v432 = vunpack.c.l.b16 %v357
  %v433 = vunpack.c.h.b16 %v357
  %v434 = vunpack.c.l.b16 %v358
  %v435 = vunpack.c.h.b16 %v358
  %v436 = vunpack.c.l.b16 %v359
  %v437 = vunpack.c.h.b16 %v359
  %v438 = vunpack.c.l.b16 %v360
  %v439 = vunpack.c.h.b16 %v360
  %v440 = vunpack.c.l.b16 %v361
  %v441 = vunpack.c.h.b16 %v361
  %v442 = vunpack.c.l.b16 %v362
  %v443 = vunpack.c.h.b16 %v362
  %v444 = vunpack.c.l.b16 %v363
  %v445 = vunpack.c.h.b16 %v363
  %v446 = vunpack.c.l.b16 %v364
  %v447 = vunpack.c.h.b16 %v364
  %v448 = vunpack.c.l.b16 %v365
  %v449 = vunpack.c.h.b16 %v365
  %v450 = vunpack.c.l.b16 %v366
  %v451 = vunpack.c.h.b16 %v366
  %v452 = vunpack.c.l.b16 %v367
  %v453 = vunpack.c.h.b16 %v367
  %v454 = vunpack.c.l.b16 %v368
  %v455 = vunpack.c.h.b16 %v368
  %v456 = vunpack.c.l.b16 %v369
  %v457 = vunpack.c.h.b16 %v369
  %v458 = vunpack.c.l.b16 %v370
  %v459 = vunpack.c.h.b16 %v370
  %v460 = vunpack.c.l.b16 %v371
  %v461 = vunpack.c.h.b16 %v371
  %v462 = vunpack.c.l.b16 %v372
  %v463 = vunpack.c.h.b16 %v372
  %v464 = vunpack.c.l.b16 %v373
  %v465 = vunpack.c.h.b16 %v373
  %v466 = vunpack.c.l.b16 %v374
  %v467 = vunpack.c.h.b16 %v374
  %v468 = vunpack.c.l.b16 %v375
  %v469 = vunpack.c.h.b16 %v375
  %v470 = vunpack.c.l.b16 %v376
  %v471 = vunpack.c.h.b16 %v376
  %v472 = vunpack.c.l.b16 %v377
  %v473 = vunpack.c.h.b16 %v377
  %v474 = vunpack.c.l.b16 %v378
  %v475 = vunpack.c.h.b16 %v378
  %v476 = vunpack.c.l.b16 %v379
  %v477 = vunpack.c.h.b16 %v379
  %v478 = vunpack.c.l.b16 %v380
  %v479 = vunpack.c.h.b16 %v380
  %v480 = vunpack.c.l.b16 %v381
  %v481 = vunpack.c.h.b16 %v381
  %v482 = vunpack.c.l.b16 %v382
  %v483 = vunpack.c.h.b16 %v382
  %v484 = vunpack.c.l.b16 %v383
  %v485 = vunpack.c.h.b16 %v383
  %v486 = vpack.c.b16 %v426, %v422
  %v487 = vpack.c.b16 %v427, %v423
  %v488 = vpack.c.b16 %v428, %v424
  %v489 = vpack.c.b16 %v429, %v425
  %v490 = vpack.c.b16 %v434, %v430
  %v491 = vpack.c.b16 %v435, %v431
  %v492 = vpack.c.b16 %v436, %v432
  %v493 = vpack.c.b16 %v437, %v433
  %v494 = vpack.c.b16 %v442, %v438
  %v495 = vpack.c.b16 %v443, %v439
  %v496 = vpack.c.b16 %v444, %v440
  %v497 = vpack.c.b16 %v445, %v441
  %v498 = vpack.c.b16 %v450, %v446
  %v499 = vpack.c.b16 %v451, %v447
  %v500 = vpack.c.b16 %v452, %v448
  %v501 = vpack.c.b16 %v453, %v449
  %v502 = vpack.c.b16 %v458, %v454
  %v503 = vpack.c.b16 %v459, %v455
  %v504 = vpack.c.b16 %v460, %v456
  %v505 = vpack.c.b16 %v461, %v457
  %v506 = vpack.c.b16 %v466, %v462
  %v507 = vpack.c.b16 %v467, %v463
  %v508 = vpack.c.b16 %v468, %v464
  %v509 = vpack.c.b16 %v469, %v465
  %v510 = vpack.c.b16 %v474, %v470
  %v511 = vpack.c.b16 %v475, %v471
  %v512 = vpack.c.b16 %v476, %v472
  %v513 = vpack.c.b16 %v477, %v473
  %v514 = vpack.c.b16 %v482, %v478
  %v515 = vpack.c.b16 %v483, %v479
  %v516 = vpack.c.b16 %v484, %v480
  %v517 = vpack.c.b16 %v485, %v481
  %550 = vmatpush.bf16.msra.mxu0 %v514
  %551 = vmatpush.bf16.msra.mxu0 %v510
  %552 = vmatpush.bf16.msra.mxu0 %v506
  %553 = vmatpush.bf16.msra.mxu0 %v502
  %554 = vmatpush.bf16.msra.mxu0 %v498
  %555 = vmatpush.bf16.msra.mxu0 %v494
  %556 = vmatpush.bf16.msra.mxu0 %v490
  %557 = vmatpush.bf16.msra.mxu0 %v486
  %558 = vmatmul.bf16.gmra.mxu0 %v388
  %v559 = vpop.f32.mrf.mxu0
  %v560 = vadd.f32 0.0, %v559
  %v561 = vpop.f32.mrf.mxu0
  %v562 = vadd.f32 0.0, %v561
  %563 = vdwg.mxu0
  %564 = vmatpush.bf16.msra.mxu0 %v515
  %565 = vmatpush.bf16.msra.mxu0 %v511
  %566 = vmatpush.bf16.msra.mxu0 %v507
  %567 = vmatpush.bf16.msra.mxu0 %v503
  %568 = vmatpush.bf16.msra.mxu0 %v499
  %569 = vmatpush.bf16.msra.mxu0 %v495
  %570 = vmatpush.bf16.msra.mxu0 %v491
  %571 = vmatpush.bf16.msra.mxu0 %v487
  %572 = vmatmul.bf16.gmra.mxu0 %v388
  %v573 = vpop.f32.mrf.mxu0
  %v574 = vadd.f32 0.0, %v573
  %v575 = vpop.f32.mrf.mxu0
  %v576 = vadd.f32 0.0, %v575
  %577 = vdwg.mxu0
  %578 = vmatpush.bf16.msra.mxu0 %v516
  %579 = vmatpush.bf16.msra.mxu0 %v512
  %580 = vmatpush.bf16.msra.mxu0 %v508
  %581 = vmatpush.bf16.msra.mxu0 %v504
  %582 = vmatpush.bf16.msra.mxu0 %v500
  %583 = vmatpush.bf16.msra.mxu0 %v496
  %584 = vmatpush.bf16.msra.mxu0 %v492
  %585 = vmatpush.bf16.msra.mxu0 %v488
  %586 = vmatmul.bf16.gmra.mxu0 %v388
  %v587 = vpop.f32.mrf.mxu0
  %v588 = vadd.f32 0.0, %v587
  %v589 = vpop.f32.mrf.mxu0
  %v590 = vadd.f32 0.0, %v589
  %591 = vdwg.mxu0
  %592 = vmatpush.bf16.msra.mxu0 %v517
  %593 = vmatpush.bf16.msra.mxu0 %v513
  %594 = vmatpush.bf16.msra.mxu0 %v509
  %595 = vmatpush.bf16.msra.mxu0 %v505
  %596 = vmatpush.bf16.msra.mxu0 %v501
  %597 = vmatpush.bf16.msra.mxu0 %v497
  %598 = vmatpush.bf16.msra.mxu0 %v493
  %599 = vmatpush.bf16.msra.mxu0 %v489
  %600 = vmatmul.bf16.gmra.mxu0 %v388
  %v601 = vpop.f32.mrf.mxu0
  %v602 = vadd.f32 0.0, %v601
  %v603 = vpop.f32.mrf.mxu0
  %v604 = vadd.f32 0.0, %v603
  %605 = vdwg.mxu0
  %v606 = vadd.f32 %v344, %v560
  %v607 = vadd.f32 %v345, %v574
  %v608 = vadd.f32 %v346, %v588
  %v609 = vadd.f32 %v347, %v602
  %v610 = vadd.f32 %v348, %v562
  %v611 = vadd.f32 %v349, %v576
  %v612 = vadd.f32 %v350, %v590
  %v613 = vadd.f32 %v351, %v604
  %v614 = vmul.f32 %v606, 0.5
  %v615 = vmul.f32 %v610, 0.5
  %v616 = vtanh.pop %v614
  %v617 = vtanh.pop %v615
  %v618 = vadd.f32 %v616, 1.0
  %v619 = vadd.f32 %v617, 1.0
  %v620 = vmul.f32 %v618, 0.5
  %v621 = vmul.f32 %v619, 0.5
  %v622 = vmul.f32 %v607, 0.5
  %v623 = vmul.f32 %v611, 0.5
  %v624 = vtanh.pop %v622
  %v625 = vtanh.pop %v623
  %v626 = vadd.f32 %v624, 1.0
  %v627 = vadd.f32 %v625, 1.0
  %v628 = vmul.f32 %v626, 0.5
  %v629 = vmul.f32 %v627, 0.5
  %v630 = vtanh.pop %v608
  %v631 = vtanh.pop %v612
  %v632 = vmul.f32 %v609, 0.5
  %v633 = vmul.f32 %v613, 0.5
  %v634 = vtanh.pop %v632
  %v635 = vtanh.pop %v633
  %v636 = vadd.f32 %v634, 1.0
  %v637 = vadd.f32 %v635, 1.0
  %v638 = vmul.f32 %v636, 0.5
  %v639 = vmul.f32 %v637, 0.5
  %v640 = vmul.f32 %v628, %v329
  %v641 = vmul.f32 %v629, %v330
  %v642 = vmul.f32 %v620, %v630
  %v643 = vmul.f32 %v621, %v631
  %v644 = vadd.f32 %v640, %v642
  %v645 = vadd.f32 %v641, %v643
  %v646 = vtanh.pop %v644
  %v647 = vtanh.pop %v645
  %v648 = vmul.f32 %v638, %v646
  %v649 = vmul.f32 %v639, %v647
  %v650 = vpack.c.bf16 %v648, %v648
  %v651 = vpack.c.bf16 %v649, %v649
  %s652 = scalar_lea.vmem %s3, 8
  %653 = vst [vmem:[%s652] sm:$0xf] %v650
  %654 = vst [vmem:[%s652 + $0x4] sm:$0xf] %v651
  %s655 = scalar_lea.vmem %s0, 64
  %v656 = vld [vmem:[%s655] sm:$0xff]
  %v657 = vld [vmem:[%s655 + $0x8] sm:$0xff]
  %v658 = vld [vmem:[%s655 + $0x10] sm:$0xff]
  %v659 = vld [vmem:[%s655 + $0x18] sm:$0xff]
  %v660 = vunpack.c.l.bf16 %v656
  %v661 = vunpack.c.h.bf16 %v656
  %v662 = vunpack.c.l.bf16 %v657
  %v663 = vunpack.c.h.bf16 %v657
  %v664 = vunpack.c.l.bf16 %v658
  %v665 = vunpack.c.h.bf16 %v658
  %v666 = vunpack.c.l.bf16 %v659
  %v667 = vunpack.c.h.bf16 %v659
  %v668 = vld [vmem:[%s1] sm:$0xff]
  %v669 = vld [vmem:[%s1 + $0x8] sm:$0xff]
  %v670 = vld [vmem:[%s1 + $0x10] sm:$0xff]
  %v671 = vld [vmem:[%s1 + $0x18] sm:$0xff]
  %v672 = vld [vmem:[%s1 + $0x20] sm:$0xff]
  %v673 = vld [vmem:[%s1 + $0x28] sm:$0xff]
  %v674 = vld [vmem:[%s1 + $0x30] sm:$0xff]
  %v675 = vld [vmem:[%s1 + $0x38] sm:$0xff]
  %v676 = vld [vmem:[%s1 + $0x40] sm:$0xff]
  %v677 = vld [vmem:[%s1 + $0x48] sm:$0xff]
  %v678 = vld [vmem:[%s1 + $0x50] sm:$0xff]
  %v679 = vld [vmem:[%s1 + $0x58] sm:$0xff]
  %v680 = vld [vmem:[%s1 + $0x60] sm:$0xff]
  %v681 = vld [vmem:[%s1 + $0x68] sm:$0xff]
  %v682 = vld [vmem:[%s1 + $0x70] sm:$0xff]
  %v683 = vld [vmem:[%s1 + $0x78] sm:$0xff]
  %v684 = vld [vmem:[%s1 + $0x80] sm:$0xff]
  %v685 = vld [vmem:[%s1 + $0x88] sm:$0xff]
  %v686 = vld [vmem:[%s1 + $0x90] sm:$0xff]
  %v687 = vld [vmem:[%s1 + $0x98] sm:$0xff]
  %v688 = vld [vmem:[%s1 + $0xa0] sm:$0xff]
  %v689 = vld [vmem:[%s1 + $0xa8] sm:$0xff]
  %v690 = vld [vmem:[%s1 + $0xb0] sm:$0xff]
  %v691 = vld [vmem:[%s1 + $0xb8] sm:$0xff]
  %v692 = vld [vmem:[%s1 + $0xc0] sm:$0xff]
  %v693 = vld [vmem:[%s1 + $0xc8] sm:$0xff]
  %v694 = vld [vmem:[%s1 + $0xd0] sm:$0xff]
  %v695 = vld [vmem:[%s1 + $0xd8] sm:$0xff]
  %v696 = vld [vmem:[%s1 + $0xe0] sm:$0xff]
  %v697 = vld [vmem:[%s1 + $0xe8] sm:$0xff]
  %v698 = vld [vmem:[%s1 + $0xf0] sm:$0xff]
  %v699 = vld [vmem:[%s1 + $0xf8] sm:$0xff]
  %v702 = vunpack.c.l.b16 %v650
  %v703 = vunpack.c.l.b16 %v651
  %v704 = vpack.c.b16 %v703, %v702
  %v738 = vunpack.c.l.b16 %v668
  %v739 = vunpack.c.h.b16 %v668
  %v740 = vunpack.c.l.b16 %v669
  %v741 = vunpack.c.h.b16 %v669
  %v742 = vunpack.c.l.b16 %v670
  %v743 = vunpack.c.h.b16 %v670
  %v744 = vunpack.c.l.b16 %v671
  %v745 = vunpack.c.h.b16 %v671
  %v746 = vunpack.c.l.b16 %v672
  %v747 = vunpack.c.h.b16 %v672
  %v748 = vunpack.c.l.b16 %v673
  %v749 = vunpack.c.h.b16 %v673
  %v750 = vunpack.c.l.b16 %v674
  %v751 = vunpack.c.h.b16 %v674
  %v752 = vunpack.c.l.b16 %v675
  %v753 = vunpack.c.h.b16 %v675
  %v754 = vunpack.c.l.b16 %v676
  %v755 = vunpack.c.h.b16 %v676
  %v756 = vunpack.c.l.b16 %v677
  %v757 = vunpack.c.h.b16 %v677
  %v758 = vunpack.c.l.b16 %v678
  %v759 = vunpack.c.h.b16 %v678
  %v760 = vunpack.c.l.b16 %v679
  %v761 = vunpack.c.h.b16 %v679
  %v762 = vunpack.c.l.b16 %v680
  %v763 = vunpack.c.h.b16 %v680
  %v764 = vunpack.c.l.b16 %v681
  %v765 = vunpack.c.h.b16 %v681
  %v766 = vunpack.c.l.b16 %v682
  %v767 = vunpack.c.h.b16 %v682
  %v768 = vunpack.c.l.b16 %v683
  %v769 = vunpack.c.h.b16 %v683
  %v770 = vunpack.c.l.b16 %v684
  %v771 = vunpack.c.h.b16 %v684
  %v772 = vunpack.c.l.b16 %v685
  %v773 = vunpack.c.h.b16 %v685
  %v774 = vunpack.c.l.b16 %v686
  %v775 = vunpack.c.h.b16 %v686
  %v776 = vunpack.c.l.b16 %v687
  %v777 = vunpack.c.h.b16 %v687
  %v778 = vunpack.c.l.b16 %v688
  %v779 = vunpack.c.h.b16 %v688
  %v780 = vunpack.c.l.b16 %v689
  %v781 = vunpack.c.h.b16 %v689
  %v782 = vunpack.c.l.b16 %v690
  %v783 = vunpack.c.h.b16 %v690
  %v784 = vunpack.c.l.b16 %v691
  %v785 = vunpack.c.h.b16 %v691
  %v786 = vunpack.c.l.b16 %v692
  %v787 = vunpack.c.h.b16 %v692
  %v788 = vunpack.c.l.b16 %v693
  %v789 = vunpack.c.h.b16 %v693
  %v790 = vunpack.c.l.b16 %v694
  %v791 = vunpack.c.h.b16 %v694
  %v792 = vunpack.c.l.b16 %v695
  %v793 = vunpack.c.h.b16 %v695
  %v794 = vunpack.c.l.b16 %v696
  %v795 = vunpack.c.h.b16 %v696
  %v796 = vunpack.c.l.b16 %v697
  %v797 = vunpack.c.h.b16 %v697
  %v798 = vunpack.c.l.b16 %v698
  %v799 = vunpack.c.h.b16 %v698
  %v800 = vunpack.c.l.b16 %v699
  %v801 = vunpack.c.h.b16 %v699
  %v802 = vpack.c.b16 %v742, %v738
  %v803 = vpack.c.b16 %v743, %v739
  %v804 = vpack.c.b16 %v744, %v740
  %v805 = vpack.c.b16 %v745, %v741
  %v806 = vpack.c.b16 %v750, %v746
  %v807 = vpack.c.b16 %v751, %v747
  %v808 = vpack.c.b16 %v752, %v748
  %v809 = vpack.c.b16 %v753, %v749
  %v810 = vpack.c.b16 %v758, %v754
  %v811 = vpack.c.b16 %v759, %v755
  %v812 = vpack.c.b16 %v760, %v756
  %v813 = vpack.c.b16 %v761, %v757
  %v814 = vpack.c.b16 %v766, %v762
  %v815 = vpack.c.b16 %v767, %v763
  %v816 = vpack.c.b16 %v768, %v764
  %v817 = vpack.c.b16 %v769, %v765
  %v818 = vpack.c.b16 %v774, %v770
  %v819 = vpack.c.b16 %v775, %v771
  %v820 = vpack.c.b16 %v776, %v772
  %v821 = vpack.c.b16 %v777, %v773
  %v822 = vpack.c.b16 %v782, %v778
  %v823 = vpack.c.b16 %v783, %v779
  %v824 = vpack.c.b16 %v784, %v780
  %v825 = vpack.c.b16 %v785, %v781
  %v826 = vpack.c.b16 %v790, %v786
  %v827 = vpack.c.b16 %v791, %v787
  %v828 = vpack.c.b16 %v792, %v788
  %v829 = vpack.c.b16 %v793, %v789
  %v830 = vpack.c.b16 %v798, %v794
  %v831 = vpack.c.b16 %v799, %v795
  %v832 = vpack.c.b16 %v800, %v796
  %v833 = vpack.c.b16 %v801, %v797
  %866 = vmatpush.bf16.msra.mxu0 %v830
  %867 = vmatpush.bf16.msra.mxu0 %v826
  %868 = vmatpush.bf16.msra.mxu0 %v822
  %869 = vmatpush.bf16.msra.mxu0 %v818
  %870 = vmatpush.bf16.msra.mxu0 %v814
  %871 = vmatpush.bf16.msra.mxu0 %v810
  %872 = vmatpush.bf16.msra.mxu0 %v806
  %873 = vmatpush.bf16.msra.mxu0 %v802
  %874 = vmatmul.bf16.gmra.mxu0 %v704
  %v875 = vpop.f32.mrf.mxu0
  %v876 = vadd.f32 0.0, %v875
  %v877 = vpop.f32.mrf.mxu0
  %v878 = vadd.f32 0.0, %v877
  %879 = vdwg.mxu0
  %880 = vmatpush.bf16.msra.mxu0 %v831
  %881 = vmatpush.bf16.msra.mxu0 %v827
  %882 = vmatpush.bf16.msra.mxu0 %v823
  %883 = vmatpush.bf16.msra.mxu0 %v819
  %884 = vmatpush.bf16.msra.mxu0 %v815
  %885 = vmatpush.bf16.msra.mxu0 %v811
  %886 = vmatpush.bf16.msra.mxu0 %v807
  %887 = vmatpush.bf16.msra.mxu0 %v803
  %888 = vmatmul.bf16.gmra.mxu0 %v704
  %v889 = vpop.f32.mrf.mxu0
  %v890 = vadd.f32 0.0, %v889
  %v891 = vpop.f32.mrf.mxu0
  %v892 = vadd.f32 0.0, %v891
  %893 = vdwg.mxu0
  %894 = vmatpush.bf16.msra.mxu0 %v832
  %895 = vmatpush.bf16.msra.mxu0 %v828
  %896 = vmatpush.bf16.msra.mxu0 %v824
  %897 = vmatpush.bf16.msra.mxu0 %v820
  %898 = vmatpush.bf16.msra.mxu0 %v816
  %899 = vmatpush.bf16.msra.mxu0 %v812
  %900 = vmatpush.bf16.msra.mxu0 %v808
  %901 = vmatpush.bf16.msra.mxu0 %v804
  %902 = vmatmul.bf16.gmra.mxu0 %v704
  %v903 = vpop.f32.mrf.mxu0
  %v904 = vadd.f32 0.0, %v903
  %v905 = vpop.f32.mrf.mxu0
  %v906 = vadd.f32 0.0, %v905
  %907 = vdwg.mxu0
  %908 = vmatpush.bf16.msra.mxu0 %v833
  %909 = vmatpush.bf16.msra.mxu0 %v829
  %910 = vmatpush.bf16.msra.mxu0 %v825
  %911 = vmatpush.bf16.msra.mxu0 %v821
  %912 = vmatpush.bf16.msra.mxu0 %v817
  %913 = vmatpush.bf16.msra.mxu0 %v813
  %914 = vmatpush.bf16.msra.mxu0 %v809
  %915 = vmatpush.bf16.msra.mxu0 %v805
  %916 = vmatmul.bf16.gmra.mxu0 %v704
  %v917 = vpop.f32.mrf.mxu0
  %v918 = vadd.f32 0.0, %v917
  %v919 = vpop.f32.mrf.mxu0
  %v920 = vadd.f32 0.0, %v919
  %921 = vdwg.mxu0
  %v922 = vadd.f32 %v660, %v876
  %v923 = vadd.f32 %v661, %v890
  %v924 = vadd.f32 %v662, %v904
  %v925 = vadd.f32 %v663, %v918
  %v926 = vadd.f32 %v664, %v878
  %v927 = vadd.f32 %v665, %v892
  %v928 = vadd.f32 %v666, %v906
  %v929 = vadd.f32 %v667, %v920
  %v930 = vmul.f32 %v922, 0.5
  %v931 = vmul.f32 %v926, 0.5
  %v932 = vtanh.pop %v930
  %v933 = vtanh.pop %v931
  %v934 = vadd.f32 %v932, 1.0
  %v935 = vadd.f32 %v933, 1.0
  %v936 = vmul.f32 %v934, 0.5
  %v937 = vmul.f32 %v935, 0.5
  %v938 = vmul.f32 %v923, 0.5
  %v939 = vmul.f32 %v927, 0.5
  %v940 = vtanh.pop %v938
  %v941 = vtanh.pop %v939
  %v942 = vadd.f32 %v940, 1.0
  %v943 = vadd.f32 %v941, 1.0
  %v944 = vmul.f32 %v942, 0.5
  %v945 = vmul.f32 %v943, 0.5
  %v946 = vtanh.pop %v924
  %v947 = vtanh.pop %v928
  %v948 = vmul.f32 %v925, 0.5
  %v949 = vmul.f32 %v929, 0.5
  %v950 = vtanh.pop %v948
  %v951 = vtanh.pop %v949
  %v952 = vadd.f32 %v950, 1.0
  %v953 = vadd.f32 %v951, 1.0
  %v954 = vmul.f32 %v952, 0.5
  %v955 = vmul.f32 %v953, 0.5
  %v956 = vmul.f32 %v944, %v644
  %v957 = vmul.f32 %v945, %v645
  %v958 = vmul.f32 %v936, %v946
  %v959 = vmul.f32 %v937, %v947
  %v960 = vadd.f32 %v956, %v958
  %v961 = vadd.f32 %v957, %v959
  %v962 = vtanh.pop %v960
  %v963 = vtanh.pop %v961
  %v964 = vmul.f32 %v954, %v962
  %v965 = vmul.f32 %v955, %v963
  %v966 = vpack.c.bf16 %v964, %v964
  %v967 = vpack.c.bf16 %v965, %v965
  %s968 = scalar_lea.vmem %s3, 16
  %969 = vst [vmem:[%s968] sm:$0xf] %v966
  %970 = vst [vmem:[%s968 + $0x4] sm:$0xf] %v967
  %s971 = scalar_lea.vmem %s0, 96
  %v972 = vld [vmem:[%s971] sm:$0xff]
  %v973 = vld [vmem:[%s971 + $0x8] sm:$0xff]
  %v974 = vld [vmem:[%s971 + $0x10] sm:$0xff]
  %v975 = vld [vmem:[%s971 + $0x18] sm:$0xff]
  %v976 = vunpack.c.l.bf16 %v972
  %v977 = vunpack.c.h.bf16 %v972
  %v978 = vunpack.c.l.bf16 %v973
  %v979 = vunpack.c.h.bf16 %v973
  %v980 = vunpack.c.l.bf16 %v974
  %v981 = vunpack.c.h.bf16 %v974
  %v982 = vunpack.c.l.bf16 %v975
  %v983 = vunpack.c.h.bf16 %v975
  %v984 = vld [vmem:[%s1] sm:$0xff]
  %v985 = vld [vmem:[%s1 + $0x8] sm:$0xff]
  %v986 = vld [vmem:[%s1 + $0x10] sm:$0xff]
  %v987 = vld [vmem:[%s1 + $0x18] sm:$0xff]
  %v988 = vld [vmem:[%s1 + $0x20] sm:$0xff]
  %v989 = vld [vmem:[%s1 + $0x28] sm:$0xff]
  %v990 = vld [vmem:[%s1 + $0x30] sm:$0xff]
  %v991 = vld [vmem:[%s1 + $0x38] sm:$0xff]
  %v992 = vld [vmem:[%s1 + $0x40] sm:$0xff]
  %v993 = vld [vmem:[%s1 + $0x48] sm:$0xff]
  %v994 = vld [vmem:[%s1 + $0x50] sm:$0xff]
  %v995 = vld [vmem:[%s1 + $0x58] sm:$0xff]
  %v996 = vld [vmem:[%s1 + $0x60] sm:$0xff]
  %v997 = vld [vmem:[%s1 + $0x68] sm:$0xff]
  %v998 = vld [vmem:[%s1 + $0x70] sm:$0xff]
  %v999 = vld [vmem:[%s1 + $0x78] sm:$0xff]
  %v1000 = vld [vmem:[%s1 + $0x80] sm:$0xff]
  %v1001 = vld [vmem:[%s1 + $0x88] sm:$0xff]
  %v1002 = vld [vmem:[%s1 + $0x90] sm:$0xff]
  %v1003 = vld [vmem:[%s1 + $0x98] sm:$0xff]
  %v1004 = vld [vmem:[%s1 + $0xa0] sm:$0xff]
  %v1005 = vld [vmem:[%s1 + $0xa8] sm:$0xff]
  %v1006 = vld [vmem:[%s1 + $0xb0] sm:$0xff]
  %v1007 = vld [vmem:[%s1 + $0xb8] sm:$0xff]
  %v1008 = vld [vmem:[%s1 + $0xc0] sm:$0xff]
  %v1009 = vld [vmem:[%s1 + $0xc8] sm:$0xff]
  %v1010 = vld [vmem:[%s1 + $0xd0] sm:$0xff]
  %v1011 = vld [vmem:[%s1 + $0xd8] sm:$0xff]
  %v1012 = vld [vmem:[%s1 + $0xe0] sm:$0xff]
  %v1013 = vld [vmem:[%s1 + $0xe8] sm:$0xff]
  %v1014 = vld [vmem:[%s1 + $0xf0] sm:$0xff]
  %v1015 = vld [vmem:[%s1 + $0xf8] sm:$0xff]
  %v1018 = vunpack.c.l.b16 %v966
  %v1019 = vunpack.c.l.b16 %v967
  %v1020 = vpack.c.b16 %v1019, %v1018
  %v1054 = vunpack.c.l.b16 %v984
  %v1055 = vunpack.c.h.b16 %v984
  %v1056 = vunpack.c.l.b16 %v985
  %v1057 = vunpack.c.h.b16 %v985
  %v1058 = vunpack.c.l.b16 %v986
  %v1059 = vunpack.c.h.b16 %v986
  %v1060 = vunpack.c.l.b16 %v987
  %v1061 = vunpack.c.h.b16 %v987
  %v1062 = vunpack.c.l.b16 %v988
  %v1063 = vunpack.c.h.b16 %v988
  %v1064 = vunpack.c.l.b16 %v989
  %v1065 = vunpack.c.h.b16 %v989
  %v1066 = vunpack.c.l.b16 %v990
  %v1067 = vunpack.c.h.b16 %v990
  %v1068 = vunpack.c.l.b16 %v991
  %v1069 = vunpack.c.h.b16 %v991
  %v1070 = vunpack.c.l.b16 %v992
  %v1071 = vunpack.c.h.b16 %v992
  %v1072 = vunpack.c.l.b16 %v993
  %v1073 = vunpack.c.h.b16 %v993
  %v1074 = vunpack.c.l.b16 %v994
  %v1075 = vunpack.c.h.b16 %v994
  %v1076 = vunpack.c.l.b16 %v995
  %v1077 = vunpack.c.h.b16 %v995
  %v1078 = vunpack.c.l.b16 %v996
  %v1079 = vunpack.c.h.b16 %v996
  %v1080 = vunpack.c.l.b16 %v997
  %v1081 = vunpack.c.h.b16 %v997
  %v1082 = vunpack.c.l.b16 %v998
  %v1083 = vunpack.c.h.b16 %v998
  %v1084 = vunpack.c.l.b16 %v999
  %v1085 = vunpack.c.h.b16 %v999
  %v1086 = vunpack.c.l.b16 %v1000
  %v1087 = vunpack.c.h.b16 %v1000
  %v1088 = vunpack.c.l.b16 %v1001
  %v1089 = vunpack.c.h.b16 %v1001
  %v1090 = vunpack.c.l.b16 %v1002
  %v1091 = vunpack.c.h.b16 %v1002
  %v1092 = vunpack.c.l.b16 %v1003
  %v1093 = vunpack.c.h.b16 %v1003
  %v1094 = vunpack.c.l.b16 %v1004
  %v1095 = vunpack.c.h.b16 %v1004
  %v1096 = vunpack.c.l.b16 %v1005
  %v1097 = vunpack.c.h.b16 %v1005
  %v1098 = vunpack.c.l.b16 %v1006
  %v1099 = vunpack.c.h.b16 %v1006
  %v1100 = vunpack.c.l.b16 %v1007
  %v1101 = vunpack.c.h.b16 %v1007
  %v1102 = vunpack.c.l.b16 %v1008
  %v1103 = vunpack.c.h.b16 %v1008
  %v1104 = vunpack.c.l.b16 %v1009
  %v1105 = vunpack.c.h.b16 %v1009
  %v1106 = vunpack.c.l.b16 %v1010
  %v1107 = vunpack.c.h.b16 %v1010
  %v1108 = vunpack.c.l.b16 %v1011
  %v1109 = vunpack.c.h.b16 %v1011
  %v1110 = vunpack.c.l.b16 %v1012
  %v1111 = vunpack.c.h.b16 %v1012
  %v1112 = vunpack.c.l.b16 %v1013
  %v1113 = vunpack.c.h.b16 %v1013
  %v1114 = vunpack.c.l.b16 %v1014
  %v1115 = vunpack.c.h.b16 %v1014
  %v1116 = vunpack.c.l.b16 %v1015
  %v1117 = vunpack.c.h.b16 %v1015
  %v1118 = vpack.c.b16 %v1058, %v1054
  %v1119 = vpack.c.b16 %v1059, %v1055
  %v1120 = vpack.c.b16 %v1060, %v1056
  %v1121 = vpack.c.b16 %v1061, %v1057
  %v1122 = vpack.c.b16 %v1066, %v1062
  %v1123 = vpack.c.b16 %v1067, %v1063
  %v1124 = vpack.c.b16 %v1068, %v1064
  %v1125 = vpack.c.b16 %v1069, %v1065
  %v1126 = vpack.c.b16 %v1074, %v1070
  %v1127 = vpack.c.b16 %v1075, %v1071
  %v1128 = vpack.c.b16 %v1076, %v1072
  %v1129 = vpack.c.b16 %v1077, %v1073
  %v1130 = vpack.c.b16 %v1082, %v1078
  %v1131 = vpack.c.b16 %v1083, %v1079
  %v1132 = vpack.c.b16 %v1084, %v1080
  %v1133 = vpack.c.b16 %v1085, %v1081
  %v1134 = vpack.c.b16 %v1090, %v1086
  %v1135 = vpack.c.b16 %v1091, %v1087
  %v1136 = vpack.c.b16 %v1092, %v1088
  %v1137 = vpack.c.b16 %v1093, %v1089
  %v1138 = vpack.c.b16 %v1098, %v1094
  %v1139 = vpack.c.b16 %v1099, %v1095
  %v1140 = vpack.c.b16 %v1100, %v1096
  %v1141 = vpack.c.b16 %v1101, %v1097
  %v1142 = vpack.c.b16 %v1106, %v1102
  %v1143 = vpack.c.b16 %v1107, %v1103
  %v1144 = vpack.c.b16 %v1108, %v1104
  %v1145 = vpack.c.b16 %v1109, %v1105
  %v1146 = vpack.c.b16 %v1114, %v1110
  %v1147 = vpack.c.b16 %v1115, %v1111
  %v1148 = vpack.c.b16 %v1116, %v1112
  %v1149 = vpack.c.b16 %v1117, %v1113
  %1182 = vmatpush.bf16.msra.mxu0 %v1146
  %1183 = vmatpush.bf16.msra.mxu0 %v1142
  %1184 = vmatpush.bf16.msra.mxu0 %v1138
  %1185 = vmatpush.bf16.msra.mxu0 %v1134
  %1186 = vmatpush.bf16.msra.mxu0 %v1130
  %1187 = vmatpush.bf16.msra.mxu0 %v1126
  %1188 = vmatpush.bf16.msra.mxu0 %v1122
  %1189 = vmatpush.bf16.msra.mxu0 %v1118
  %1190 = vmatmul.bf16.gmra.mxu0 %v1020
  %v1191 = vpop.f32.mrf.mxu0
  %v1192 = vadd.f32 0.0, %v1191
  %v1193 = vpop.f32.mrf.mxu0
  %v1194 = vadd.f32 0.0, %v1193
  %1195 = vdwg.mxu0
  %1196 = vmatpush.bf16.msra.mxu0 %v1147
  %1197 = vmatpush.bf16.msra.mxu0 %v1143
  %1198 = vmatpush.bf16.msra.mxu0 %v1139
  %1199 = vmatpush.bf16.msra.mxu0 %v1135
  %1200 = vmatpush.bf16.msra.mxu0 %v1131
  %1201 = vmatpush.bf16.msra.mxu0 %v1127
  %1202 = vmatpush.bf16.msra.mxu0 %v1123
  %1203 = vmatpush.bf16.msra.mxu0 %v1119
  %1204 = vmatmul.bf16.gmra.mxu0 %v1020
  %v1205 = vpop.f32.mrf.mxu0
  %v1206 = vadd.f32 0.0, %v1205
  %v1207 = vpop.f32.mrf.mxu0
  %v1208 = vadd.f32 0.0, %v1207
  %1209 = vdwg.mxu0
  %1210 = vmatpush.bf16.msra.mxu0 %v1148
  %1211 = vmatpush.bf16.msra.mxu0 %v1144
  %1212 = vmatpush.bf16.msra.mxu0 %v1140
  %1213 = vmatpush.bf16.msra.mxu0 %v1136
  %1214 = vmatpush.bf16.msra.mxu0 %v1132
  %1215 = vmatpush.bf16.msra.mxu0 %v1128
  %1216 = vmatpush.bf16.msra.mxu0 %v1124
  %1217 = vmatpush.bf16.msra.mxu0 %v1120
  %1218 = vmatmul.bf16.gmra.mxu0 %v1020
  %v1219 = vpop.f32.mrf.mxu0
  %v1220 = vadd.f32 0.0, %v1219
  %v1221 = vpop.f32.mrf.mxu0
  %v1222 = vadd.f32 0.0, %v1221
  %1223 = vdwg.mxu0
  %1224 = vmatpush.bf16.msra.mxu0 %v1149
  %1225 = vmatpush.bf16.msra.mxu0 %v1145
  %1226 = vmatpush.bf16.msra.mxu0 %v1141
  %1227 = vmatpush.bf16.msra.mxu0 %v1137
  %1228 = vmatpush.bf16.msra.mxu0 %v1133
  %1229 = vmatpush.bf16.msra.mxu0 %v1129
  %1230 = vmatpush.bf16.msra.mxu0 %v1125
  %1231 = vmatpush.bf16.msra.mxu0 %v1121
  %1232 = vmatmul.bf16.gmra.mxu0 %v1020
  %v1233 = vpop.f32.mrf.mxu0
  %v1234 = vadd.f32 0.0, %v1233
  %v1235 = vpop.f32.mrf.mxu0
  %v1236 = vadd.f32 0.0, %v1235
  %1237 = vdwg.mxu0
  %v1238 = vadd.f32 %v976, %v1192
  %v1239 = vadd.f32 %v977, %v1206
  %v1240 = vadd.f32 %v978, %v1220
  %v1241 = vadd.f32 %v979, %v1234
  %v1242 = vadd.f32 %v980, %v1194
  %v1243 = vadd.f32 %v981, %v1208
  %v1244 = vadd.f32 %v982, %v1222
  %v1245 = vadd.f32 %v983, %v1236
  %v1246 = vmul.f32 %v1238, 0.5
  %v1247 = vmul.f32 %v1242, 0.5
  %v1248 = vtanh.pop %v1246
  %v1249 = vtanh.pop %v1247
  %v1250 = vadd.f32 %v1248, 1.0
  %v1251 = vadd.f32 %v1249, 1.0
  %v1252 = vmul.f32 %v1250, 0.5
  %v1253 = vmul.f32 %v1251, 0.5
  %v1254 = vmul.f32 %v1239, 0.5
  %v1255 = vmul.f32 %v1243, 0.5
  %v1256 = vtanh.pop %v1254
  %v1257 = vtanh.pop %v1255
  %v1258 = vadd.f32 %v1256, 1.0
  %v1259 = vadd.f32 %v1257, 1.0
  %v1260 = vmul.f32 %v1258, 0.5
  %v1261 = vmul.f32 %v1259, 0.5
  %v1262 = vtanh.pop %v1240
  %v1263 = vtanh.pop %v1244
  %v1264 = vmul.f32 %v1241, 0.5
  %v1265 = vmul.f32 %v1245, 0.5
  %v1266 = vtanh.pop %v1264
  %v1267 = vtanh.pop %v1265
  %v1268 = vadd.f32 %v1266, 1.0
  %v1269 = vadd.f32 %v1267, 1.0
  %v1270 = vmul.f32 %v1268, 0.5
  %v1271 = vmul.f32 %v1269, 0.5
  %v1272 = vmul.f32 %v1260, %v960
  %v1273 = vmul.f32 %v1261, %v961
  %v1274 = vmul.f32 %v1252, %v1262
  %v1275 = vmul.f32 %v1253, %v1263
  %v1276 = vadd.f32 %v1272, %v1274
  %v1277 = vadd.f32 %v1273, %v1275
  %v1278 = vtanh.pop %v1276
  %v1279 = vtanh.pop %v1277
  %v1280 = vmul.f32 %v1270, %v1278
  %v1281 = vmul.f32 %v1271, %v1279
  %v1282 = vpack.c.bf16 %v1280, %v1280
  %v1283 = vpack.c.bf16 %v1281, %v1281
  %s1284 = scalar_lea.vmem %s3, 24
  %1285 = vst [vmem:[%s1284] sm:$0xf] %v1282
  %1286 = vst [vmem:[%s1284 + $0x4] sm:$0xf] %v1283
  %s1287 = scalar_lea.vmem %s0, 128
  %v1288 = vld [vmem:[%s1287] sm:$0xff]
  %v1289 = vld [vmem:[%s1287 + $0x8] sm:$0xff]
  %v1290 = vld [vmem:[%s1287 + $0x10] sm:$0xff]
  %v1291 = vld [vmem:[%s1287 + $0x18] sm:$0xff]
  %v1292 = vunpack.c.l.bf16 %v1288
  %v1293 = vunpack.c.h.bf16 %v1288
  %v1294 = vunpack.c.l.bf16 %v1289
  %v1295 = vunpack.c.h.bf16 %v1289
  %v1296 = vunpack.c.l.bf16 %v1290
  %v1297 = vunpack.c.h.bf16 %v1290
  %v1298 = vunpack.c.l.bf16 %v1291
  %v1299 = vunpack.c.h.bf16 %v1291
  %v1300 = vld [vmem:[%s1] sm:$0xff]
  %v1301 = vld [vmem:[%s1 + $0x8] sm:$0xff]
  %v1302 = vld [vmem:[%s1 + $0x10] sm:$0xff]
  %v1303 = vld [vmem:[%s1 + $0x18] sm:$0xff]
  %v1304 = vld [vmem:[%s1 + $0x20] sm:$0xff]
  %v1305 = vld [vmem:[%s1 + $0x28] sm:$0xff]
  %v1306 = vld [vmem:[%s1 + $0x30] sm:$0xff]
  %v1307 = vld [vmem:[%s1 + $0x38] sm:$0xff]
  %v1308 = vld [vmem:[%s1 + $0x40] sm:$0xff]
  %v1309 = vld [vmem:[%s1 + $0x48] sm:$0xff]
  %v1310 = vld [vmem:[%s1 + $0x50] sm:$0xff]
  %v1311 = vld [vmem:[%s1 + $0x58] sm:$0xff]
  %v1312 = vld [vmem:[%s1 + $0x60] sm:$0xff]
  %v1313 = vld [vmem:[%s1 + $0x68] sm:$0xff]
  %v1314 = vld [vmem:[%s1 + $0x70] sm:$0xff]
  %v1315 = vld [vmem:[%s1 + $0x78] sm:$0xff]
  %v1316 = vld [vmem:[%s1 + $0x80] sm:$0xff]
  %v1317 = vld [vmem:[%s1 + $0x88] sm:$0xff]
  %v1318 = vld [vmem:[%s1 + $0x90] sm:$0xff]
  %v1319 = vld [vmem:[%s1 + $0x98] sm:$0xff]
  %v1320 = vld [vmem:[%s1 + $0xa0] sm:$0xff]
  %v1321 = vld [vmem:[%s1 + $0xa8] sm:$0xff]
  %v1322 = vld [vmem:[%s1 + $0xb0] sm:$0xff]
  %v1323 = vld [vmem:[%s1 + $0xb8] sm:$0xff]
  %v1324 = vld [vmem:[%s1 + $0xc0] sm:$0xff]
  %v1325 = vld [vmem:[%s1 + $0xc8] sm:$0xff]
  %v1326 = vld [vmem:[%s1 + $0xd0] sm:$0xff]
  %v1327 = vld [vmem:[%s1 + $0xd8] sm:$0xff]
  %v1328 = vld [vmem:[%s1 + $0xe0] sm:$0xff]
  %v1329 = vld [vmem:[%s1 + $0xe8] sm:$0xff]
  %v1330 = vld [vmem:[%s1 + $0xf0] sm:$0xff]
  %v1331 = vld [vmem:[%s1 + $0xf8] sm:$0xff]
  %v1334 = vunpack.c.l.b16 %v1282
  %v1335 = vunpack.c.l.b16 %v1283
  %v1336 = vpack.c.b16 %v1335, %v1334
  %v1370 = vunpack.c.l.b16 %v1300
  %v1371 = vunpack.c.h.b16 %v1300
  %v1372 = vunpack.c.l.b16 %v1301
  %v1373 = vunpack.c.h.b16 %v1301
  %v1374 = vunpack.c.l.b16 %v1302
  %v1375 = vunpack.c.h.b16 %v1302
  %v1376 = vunpack.c.l.b16 %v1303
  %v1377 = vunpack.c.h.b16 %v1303
  %v1378 = vunpack.c.l.b16 %v1304
  %v1379 = vunpack.c.h.b16 %v1304
  %v1380 = vunpack.c.l.b16 %v1305
  %v1381 = vunpack.c.h.b16 %v1305
  %v1382 = vunpack.c.l.b16 %v1306
  %v1383 = vunpack.c.h.b16 %v1306
  %v1384 = vunpack.c.l.b16 %v1307
  %v1385 = vunpack.c.h.b16 %v1307
  %v1386 = vunpack.c.l.b16 %v1308
  %v1387 = vunpack.c.h.b16 %v1308
  %v1388 = vunpack.c.l.b16 %v1309
  %v1389 = vunpack.c.h.b16 %v1309
  %v1390 = vunpack.c.l.b16 %v1310
  %v1391 = vunpack.c.h.b16 %v1310
  %v1392 = vunpack.c.l.b16 %v1311
  %v1393 = vunpack.c.h.b16 %v1311
  %v1394 = vunpack.c.l.b16 %v1312
  %v1395 = vunpack.c.h.b16 %v1312
  %v1396 = vunpack.c.l.b16 %v1313
  %v1397 = vunpack.c.h.b16 %v1313
  %v1398 = vunpack.c.l.b16 %v1314
  %v1399 = vunpack.c.h.b16 %v1314
  %v1400 = vunpack.c.l.b16 %v1315
  %v1401 = vunpack.c.h.b16 %v1315
  %v1402 = vunpack.c.l.b16 %v1316
  %v1403 = vunpack.c.h.b16 %v1316
  %v1404 = vunpack.c.l.b16 %v1317
  %v1405 = vunpack.c.h.b16 %v1317
  %v1406 = vunpack.c.l.b16 %v1318
  %v1407 = vunpack.c.h.b16 %v1318
  %v1408 = vunpack.c.l.b16 %v1319
  %v1409 = vunpack.c.h.b16 %v1319
  %v1410 = vunpack.c.l.b16 %v1320
  %v1411 = vunpack.c.h.b16 %v1320
  %v1412 = vunpack.c.l.b16 %v1321
  %v1413 = vunpack.c.h.b16 %v1321
  %v1414 = vunpack.c.l.b16 %v1322
  %v1415 = vunpack.c.h.b16 %v1322
  %v1416 = vunpack.c.l.b16 %v1323
  %v1417 = vunpack.c.h.b16 %v1323
  %v1418 = vunpack.c.l.b16 %v1324
  %v1419 = vunpack.c.h.b16 %v1324
  %v1420 = vunpack.c.l.b16 %v1325
  %v1421 = vunpack.c.h.b16 %v1325
  %v1422 = vunpack.c.l.b16 %v1326
  %v1423 = vunpack.c.h.b16 %v1326
  %v1424 = vunpack.c.l.b16 %v1327
  %v1425 = vunpack.c.h.b16 %v1327
  %v1426 = vunpack.c.l.b16 %v1328
  %v1427 = vunpack.c.h.b16 %v1328
  %v1428 = vunpack.c.l.b16 %v1329
  %v1429 = vunpack.c.h.b16 %v1329
  %v1430 = vunpack.c.l.b16 %v1330
  %v1431 = vunpack.c.h.b16 %v1330
  %v1432 = vunpack.c.l.b16 %v1331
  %v1433 = vunpack.c.h.b16 %v1331
  %v1434 = vpack.c.b16 %v1374, %v1370
  %v1435 = vpack.c.b16 %v1375, %v1371
  %v1436 = vpack.c.b16 %v1376, %v1372
  %v1437 = vpack.c.b16 %v1377, %v1373
  %v1438 = vpack.c.b16 %v1382, %v1378
  %v1439 = vpack.c.b16 %v1383, %v1379
  %v1440 = vpack.c.b16 %v1384, %v1380
  %v1441 = vpack.c.b16 %v1385, %v1381
  %v1442 = vpack.c.b16 %v1390, %v1386
  %v1443 = vpack.c.b16 %v1391, %v1387
  %v1444 = vpack.c.b16 %v1392, %v1388
  %v1445 = vpack.c.b16 %v1393, %v1389
  %v1446 = vpack.c.b16 %v1398, %v1394
  %v1447 = vpack.c.b16 %v1399, %v1395
  %v1448 = vpack.c.b16 %v1400, %v1396
  %v1449 = vpack.c.b16 %v1401, %v1397
  %v1450 = vpack.c.b16 %v1406, %v1402
  %v1451 = vpack.c.b16 %v1407, %v1403
  %v1452 = vpack.c.b16 %v1408, %v1404
  %v1453 = vpack.c.b16 %v1409, %v1405
  %v1454 = vpack.c.b16 %v1414, %v1410
  %v1455 = vpack.c.b16 %v1415, %v1411
  %v1456 = vpack.c.b16 %v1416, %v1412
  %v1457 = vpack.c.b16 %v1417, %v1413
  %v1458 = vpack.c.b16 %v1422, %v1418
  %v1459 = vpack.c.b16 %v1423, %v1419
  %v1460 = vpack.c.b16 %v1424, %v1420
  %v1461 = vpack.c.b16 %v1425, %v1421
  %v1462 = vpack.c.b16 %v1430, %v1426
  %v1463 = vpack.c.b16 %v1431, %v1427
  %v1464 = vpack.c.b16 %v1432, %v1428
  %v1465 = vpack.c.b16 %v1433, %v1429
  %1498 = vmatpush.bf16.msra.mxu0 %v1462
  %1499 = vmatpush.bf16.msra.mxu0 %v1458
  %1500 = vmatpush.bf16.msra.mxu0 %v1454
  %1501 = vmatpush.bf16.msra.mxu0 %v1450
  %1502 = vmatpush.bf16.msra.mxu0 %v1446
  %1503 = vmatpush.bf16.msra.mxu0 %v1442
  %1504 = vmatpush.bf16.msra.mxu0 %v1438
  %1505 = vmatpush.bf16.msra.mxu0 %v1434
  %1506 = vmatmul.bf16.gmra.mxu0 %v1336
  %v1507 = vpop.f32.mrf.mxu0
  %v1508 = vadd.f32 0.0, %v1507
  %v1509 = vpop.f32.mrf.mxu0
  %v1510 = vadd.f32 0.0, %v1509
  %1511 = vdwg.mxu0
  %1512 = vmatpush.bf16.msra.mxu0 %v1463
  %1513 = vmatpush.bf16.msra.mxu0 %v1459
  %1514 = vmatpush.bf16.msra.mxu0 %v1455
  %1515 = vmatpush.bf16.msra.mxu0 %v1451
  %1516 = vmatpush.bf16.msra.mxu0 %v1447
  %1517 = vmatpush.bf16.msra.mxu0 %v1443
  %1518 = vmatpush.bf16.msra.mxu0 %v1439
  %1519 = vmatpush.bf16.msra.mxu0 %v1435
  %1520 = vmatmul.bf16.gmra.mxu0 %v1336
  %v1521 = vpop.f32.mrf.mxu0
  %v1522 = vadd.f32 0.0, %v1521
  %v1523 = vpop.f32.mrf.mxu0
  %v1524 = vadd.f32 0.0, %v1523
  %1525 = vdwg.mxu0
  %1526 = vmatpush.bf16.msra.mxu0 %v1464
  %1527 = vmatpush.bf16.msra.mxu0 %v1460
  %1528 = vmatpush.bf16.msra.mxu0 %v1456
  %1529 = vmatpush.bf16.msra.mxu0 %v1452
  %1530 = vmatpush.bf16.msra.mxu0 %v1448
  %1531 = vmatpush.bf16.msra.mxu0 %v1444
  %1532 = vmatpush.bf16.msra.mxu0 %v1440
  %1533 = vmatpush.bf16.msra.mxu0 %v1436
  %1534 = vmatmul.bf16.gmra.mxu0 %v1336
  %v1535 = vpop.f32.mrf.mxu0
  %v1536 = vadd.f32 0.0, %v1535
  %v1537 = vpop.f32.mrf.mxu0
  %v1538 = vadd.f32 0.0, %v1537
  %1539 = vdwg.mxu0
  %1540 = vmatpush.bf16.msra.mxu0 %v1465
  %1541 = vmatpush.bf16.msra.mxu0 %v1461
  %1542 = vmatpush.bf16.msra.mxu0 %v1457
  %1543 = vmatpush.bf16.msra.mxu0 %v1453
  %1544 = vmatpush.bf16.msra.mxu0 %v1449
  %1545 = vmatpush.bf16.msra.mxu0 %v1445
  %1546 = vmatpush.bf16.msra.mxu0 %v1441
  %1547 = vmatpush.bf16.msra.mxu0 %v1437
  %1548 = vmatmul.bf16.gmra.mxu0 %v1336
  %v1549 = vpop.f32.mrf.mxu0
  %v1550 = vadd.f32 0.0, %v1549
  %v1551 = vpop.f32.mrf.mxu0
  %v1552 = vadd.f32 0.0, %v1551
  %1553 = vdwg.mxu0
  %v1554 = vadd.f32 %v1292, %v1508
  %v1555 = vadd.f32 %v1293, %v1522
  %v1556 = vadd.f32 %v1294, %v1536
  %v1557 = vadd.f32 %v1295, %v1550
  %v1558 = vadd.f32 %v1296, %v1510
  %v1559 = vadd.f32 %v1297, %v1524
  %v1560 = vadd.f32 %v1298, %v1538
  %v1561 = vadd.f32 %v1299, %v1552
  %v1562 = vmul.f32 %v1554, 0.5
  %v1563 = vmul.f32 %v1558, 0.5
  %v1564 = vtanh.pop %v1562
  %v1565 = vtanh.pop %v1563
  %v1566 = vadd.f32 %v1564, 1.0
  %v1567 = vadd.f32 %v1565, 1.0
  %v1568 = vmul.f32 %v1566, 0.5
  %v1569 = vmul.f32 %v1567, 0.5
  %v1570 = vmul.f32 %v1555, 0.5
  %v1571 = vmul.f32 %v1559, 0.5
  %v1572 = vtanh.pop %v1570
  %v1573 = vtanh.pop %v1571
  %v1574 = vadd.f32 %v1572, 1.0
  %v1575 = vadd.f32 %v1573, 1.0
  %v1576 = vmul.f32 %v1574, 0.5
  %v1577 = vmul.f32 %v1575, 0.5
  %v1578 = vtanh.pop %v1556
  %v1579 = vtanh.pop %v1560
  %v1580 = vmul.f32 %v1557, 0.5
  %v1581 = vmul.f32 %v1561, 0.5
  %v1582 = vtanh.pop %v1580
  %v1583 = vtanh.pop %v1581
  %v1584 = vadd.f32 %v1582, 1.0
  %v1585 = vadd.f32 %v1583, 1.0
  %v1586 = vmul.f32 %v1584, 0.5
  %v1587 = vmul.f32 %v1585, 0.5
  %v1588 = vmul.f32 %v1576, %v1276
  %v1589 = vmul.f32 %v1577, %v1277
  %v1590 = vmul.f32 %v1568, %v1578
  %v1591 = vmul.f32 %v1569, %v1579
  %v1592 = vadd.f32 %v1588, %v1590
  %v1593 = vadd.f32 %v1589, %v1591
  %v1594 = vtanh.pop %v1592
  %v1595 = vtanh.pop %v1593
  %v1596 = vmul.f32 %v1586, %v1594
  %v1597 = vmul.f32 %v1587, %v1595
  %v1598 = vpack.c.bf16 %v1596, %v1596
  %v1599 = vpack.c.bf16 %v1597, %v1597
  %s1600 = scalar_lea.vmem %s3, 32
  %1601 = vst [vmem:[%s1600] sm:$0xf] %v1598
  %1602 = vst [vmem:[%s1600 + $0x4] sm:$0xf] %v1599
  %s1603 = scalar_lea.vmem %s0, 160
  %v1604 = vld [vmem:[%s1603] sm:$0xff]
  %v1605 = vld [vmem:[%s1603 + $0x8] sm:$0xff]
  %v1606 = vld [vmem:[%s1603 + $0x10] sm:$0xff]
  %v1607 = vld [vmem:[%s1603 + $0x18] sm:$0xff]
  %v1608 = vunpack.c.l.bf16 %v1604
  %v1609 = vunpack.c.h.bf16 %v1604
  %v1610 = vunpack.c.l.bf16 %v1605
  %v1611 = vunpack.c.h.bf16 %v1605
  %v1612 = vunpack.c.l.bf16 %v1606
  %v1613 = vunpack.c.h.bf16 %v1606
  %v1614 = vunpack.c.l.bf16 %v1607
  %v1615 = vunpack.c.h.bf16 %v1607
  %v1616 = vld [vmem:[%s1] sm:$0xff]
  %v1617 = vld [vmem:[%s1 + $0x8] sm:$0xff]
  %v1618 = vld [vmem:[%s1 + $0x10] sm:$0xff]
  %v1619 = vld [vmem:[%s1 + $0x18] sm:$0xff]
  %v1620 = vld [vmem:[%s1 + $0x20] sm:$0xff]
  %v1621 = vld [vmem:[%s1 + $0x28] sm:$0xff]
  %v1622 = vld [vmem:[%s1 + $0x30] sm:$0xff]
  %v1623 = vld [vmem:[%s1 + $0x38] sm:$0xff]
  %v1624 = vld [vmem:[%s1 + $0x40] sm:$0xff]
  %v1625 = vld [vmem:[%s1 + $0x48] sm:$0xff]
  %v1626 = vld [vmem:[%s1 + $0x50] sm:$0xff]
  %v1627 = vld [vmem:[%s1 + $0x58] sm:$0xff]
  %v1628 = vld [vmem:[%s1 + $0x60] sm:$0xff]
  %v1629 = vld [vmem:[%s1 + $0x68] sm:$0xff]
  %v1630 = vld [vmem:[%s1 + $0x70] sm:$0xff]
  %v1631 = vld [vmem:[%s1 + $0x78] sm:$0xff]
  %v1632 = vld [vmem:[%s1 + $0x80] sm:$0xff]
  %v1633 = vld [vmem:[%s1 + $0x88] sm:$0xff]
  %v1634 = vld [vmem:[%s1 + $0x90] sm:$0xff]
  %v1635 = vld [vmem:[%s1 + $0x98] sm:$0xff]
  %v1636 = vld [vmem:[%s1 + $0xa0] sm:$0xff]
  %v1637 = vld [vmem:[%s1 + $0xa8] sm:$0xff]
  %v1638 = vld [vmem:[%s1 + $0xb0] sm:$0xff]
  %v1639 = vld [vmem:[%s1 + $0xb8] sm:$0xff]
  %v1640 = vld [vmem:[%s1 + $0xc0] sm:$0xff]
  %v1641 = vld [vmem:[%s1 + $0xc8] sm:$0xff]
  %v1642 = vld [vmem:[%s1 + $0xd0] sm:$0xff]
  %v1643 = vld [vmem:[%s1 + $0xd8] sm:$0xff]
  %v1644 = vld [vmem:[%s1 + $0xe0] sm:$0xff]
  %v1645 = vld [vmem:[%s1 + $0xe8] sm:$0xff]
  %v1646 = vld [vmem:[%s1 + $0xf0] sm:$0xff]
  %v1647 = vld [vmem:[%s1 + $0xf8] sm:$0xff]
  %v1650 = vunpack.c.l.b16 %v1598
  %v1651 = vunpack.c.l.b16 %v1599
  %v1652 = vpack.c.b16 %v1651, %v1650
  %v1686 = vunpack.c.l.b16 %v1616
  %v1687 = vunpack.c.h.b16 %v1616
  %v1688 = vunpack.c.l.b16 %v1617
  %v1689 = vunpack.c.h.b16 %v1617
  %v1690 = vunpack.c.l.b16 %v1618
  %v1691 = vunpack.c.h.b16 %v1618
  %v1692 = vunpack.c.l.b16 %v1619
  %v1693 = vunpack.c.h.b16 %v1619
  %v1694 = vunpack.c.l.b16 %v1620
  %v1695 = vunpack.c.h.b16 %v1620
  %v1696 = vunpack.c.l.b16 %v1621
  %v1697 = vunpack.c.h.b16 %v1621
  %v1698 = vunpack.c.l.b16 %v1622
  %v1699 = vunpack.c.h.b16 %v1622
  %v1700 = vunpack.c.l.b16 %v1623
  %v1701 = vunpack.c.h.b16 %v1623
  %v1702 = vunpack.c.l.b16 %v1624
  %v1703 = vunpack.c.h.b16 %v1624
  %v1704 = vunpack.c.l.b16 %v1625
  %v1705 = vunpack.c.h.b16 %v1625
  %v1706 = vunpack.c.l.b16 %v1626
  %v1707 = vunpack.c.h.b16 %v1626
  %v1708 = vunpack.c.l.b16 %v1627
  %v1709 = vunpack.c.h.b16 %v1627
  %v1710 = vunpack.c.l.b16 %v1628
  %v1711 = vunpack.c.h.b16 %v1628
  %v1712 = vunpack.c.l.b16 %v1629
  %v1713 = vunpack.c.h.b16 %v1629
  %v1714 = vunpack.c.l.b16 %v1630
  %v1715 = vunpack.c.h.b16 %v1630
  %v1716 = vunpack.c.l.b16 %v1631
  %v1717 = vunpack.c.h.b16 %v1631
  %v1718 = vunpack.c.l.b16 %v1632
  %v1719 = vunpack.c.h.b16 %v1632
  %v1720 = vunpack.c.l.b16 %v1633
  %v1721 = vunpack.c.h.b16 %v1633
  %v1722 = vunpack.c.l.b16 %v1634
  %v1723 = vunpack.c.h.b16 %v1634
  %v1724 = vunpack.c.l.b16 %v1635
  %v1725 = vunpack.c.h.b16 %v1635
  %v1726 = vunpack.c.l.b16 %v1636
  %v1727 = vunpack.c.h.b16 %v1636
  %v1728 = vunpack.c.l.b16 %v1637
  %v1729 = vunpack.c.h.b16 %v1637
  %v1730 = vunpack.c.l.b16 %v1638
  %v1731 = vunpack.c.h.b16 %v1638
  %v1732 = vunpack.c.l.b16 %v1639
  %v1733 = vunpack.c.h.b16 %v1639
  %v1734 = vunpack.c.l.b16 %v1640
  %v1735 = vunpack.c.h.b16 %v1640
  %v1736 = vunpack.c.l.b16 %v1641
  %v1737 = vunpack.c.h.b16 %v1641
  %v1738 = vunpack.c.l.b16 %v1642
  %v1739 = vunpack.c.h.b16 %v1642
  %v1740 = vunpack.c.l.b16 %v1643
  %v1741 = vunpack.c.h.b16 %v1643
  %v1742 = vunpack.c.l.b16 %v1644
  %v1743 = vunpack.c.h.b16 %v1644
  %v1744 = vunpack.c.l.b16 %v1645
  %v1745 = vunpack.c.h.b16 %v1645
  %v1746 = vunpack.c.l.b16 %v1646
  %v1747 = vunpack.c.h.b16 %v1646
  %v1748 = vunpack.c.l.b16 %v1647
  %v1749 = vunpack.c.h.b16 %v1647
  %v1750 = vpack.c.b16 %v1690, %v1686
  %v1751 = vpack.c.b16 %v1691, %v1687
  %v1752 = vpack.c.b16 %v1692, %v1688
  %v1753 = vpack.c.b16 %v1693, %v1689
  %v1754 = vpack.c.b16 %v1698, %v1694
  %v1755 = vpack.c.b16 %v1699, %v1695
  %v1756 = vpack.c.b16 %v1700, %v1696
  %v1757 = vpack.c.b16 %v1701, %v1697
  %v1758 = vpack.c.b16 %v1706, %v1702
  %v1759 = vpack.c.b16 %v1707, %v1703
  %v1760 = vpack.c.b16 %v1708, %v1704
  %v1761 = vpack.c.b16 %v1709, %v1705
  %v1762 = vpack.c.b16 %v1714, %v1710
  %v1763 = vpack.c.b16 %v1715, %v1711
  %v1764 = vpack.c.b16 %v1716, %v1712
  %v1765 = vpack.c.b16 %v1717, %v1713
  %v1766 = vpack.c.b16 %v1722, %v1718
  %v1767 = vpack.c.b16 %v1723, %v1719
  %v1768 = vpack.c.b16 %v1724, %v1720
  %v1769 = vpack.c.b16 %v1725, %v1721
  %v1770 = vpack.c.b16 %v1730, %v1726
  %v1771 = vpack.c.b16 %v1731, %v1727
  %v1772 = vpack.c.b16 %v1732, %v1728
  %v1773 = vpack.c.b16 %v1733, %v1729
  %v1774 = vpack.c.b16 %v1738, %v1734
  %v1775 = vpack.c.b16 %v1739, %v1735
  %v1776 = vpack.c.b16 %v1740, %v1736
  %v1777 = vpack.c.b16 %v1741, %v1737
  %v1778 = vpack.c.b16 %v1746, %v1742
  %v1779 = vpack.c.b16 %v1747, %v1743
  %v1780 = vpack.c.b16 %v1748, %v1744
  %v1781 = vpack.c.b16 %v1749, %v1745
  %1814 = vmatpush.bf16.msra.mxu0 %v1778
  %1815 = vmatpush.bf16.msra.mxu0 %v1774
  %1816 = vmatpush.bf16.msra.mxu0 %v1770
  %1817 = vmatpush.bf16.msra.mxu0 %v1766
  %1818 = vmatpush.bf16.msra.mxu0 %v1762
  %1819 = vmatpush.bf16.msra.mxu0 %v1758
  %1820 = vmatpush.bf16.msra.mxu0 %v1754
  %1821 = vmatpush.bf16.msra.mxu0 %v1750
  %1822 = vmatmul.bf16.gmra.mxu0 %v1652
  %v1823 = vpop.f32.mrf.mxu0
  %v1824 = vadd.f32 0.0, %v1823
  %v1825 = vpop.f32.mrf.mxu0
  %v1826 = vadd.f32 0.0, %v1825
  %1827 = vdwg.mxu0
  %1828 = vmatpush.bf16.msra.mxu0 %v1779
  %1829 = vmatpush.bf16.msra.mxu0 %v1775
  %1830 = vmatpush.bf16.msra.mxu0 %v1771
  %1831 = vmatpush.bf16.msra.mxu0 %v1767
  %1832 = vmatpush.bf16.msra.mxu0 %v1763
  %1833 = vmatpush.bf16.msra.mxu0 %v1759
  %1834 = vmatpush.bf16.msra.mxu0 %v1755
  %1835 = vmatpush.bf16.msra.mxu0 %v1751
  %1836 = vmatmul.bf16.gmra.mxu0 %v1652
  %v1837 = vpop.f32.mrf.mxu0
  %v1838 = vadd.f32 0.0, %v1837
  %v1839 = vpop.f32.mrf.mxu0
  %v1840 = vadd.f32 0.0, %v1839
  %1841 = vdwg.mxu0
  %1842 = vmatpush.bf16.msra.mxu0 %v1780
  %1843 = vmatpush.bf16.msra.mxu0 %v1776
  %1844 = vmatpush.bf16.msra.mxu0 %v1772
  %1845 = vmatpush.bf16.msra.mxu0 %v1768
  %1846 = vmatpush.bf16.msra.mxu0 %v1764
  %1847 = vmatpush.bf16.msra.mxu0 %v1760
  %1848 = vmatpush.bf16.msra.mxu0 %v1756
  %1849 = vmatpush.bf16.msra.mxu0 %v1752
  %1850 = vmatmul.bf16.gmra.mxu0 %v1652
  %v1851 = vpop.f32.mrf.mxu0
  %v1852 = vadd.f32 0.0, %v1851
  %v1853 = vpop.f32.mrf.mxu0
  %v1854 = vadd.f32 0.0, %v1853
  %1855 = vdwg.mxu0
  %1856 = vmatpush.bf16.msra.mxu0 %v1781
  %1857 = vmatpush.bf16.msra.mxu0 %v1777
  %1858 = vmatpush.bf16.msra.mxu0 %v1773
  %1859 = vmatpush.bf16.msra.mxu0 %v1769
  %1860 = vmatpush.bf16.msra.mxu0 %v1765
  %1861 = vmatpush.bf16.msra.mxu0 %v1761
  %1862 = vmatpush.bf16.msra.mxu0 %v1757
  %1863 = vmatpush.bf16.msra.mxu0 %v1753
  %1864 = vmatmul.bf16.gmra.mxu0 %v1652
  %v1865 = vpop.f32.mrf.mxu0
  %v1866 = vadd.f32 0.0, %v1865
  %v1867 = vpop.f32.mrf.mxu0
  %v1868 = vadd.f32 0.0, %v1867
  %1869 = vdwg.mxu0
  %v1870 = vadd.f32 %v1608, %v1824
  %v1871 = vadd.f32 %v1609, %v1838
  %v1872 = vadd.f32 %v1610, %v1852
  %v1873 = vadd.f32 %v1611, %v1866
  %v1874 = vadd.f32 %v1612, %v1826
  %v1875 = vadd.f32 %v1613, %v1840
  %v1876 = vadd.f32 %v1614, %v1854
  %v1877 = vadd.f32 %v1615, %v1868
  %v1878 = vmul.f32 %v1870, 0.5
  %v1879 = vmul.f32 %v1874, 0.5
  %v1880 = vtanh.pop %v1878
  %v1881 = vtanh.pop %v1879
  %v1882 = vadd.f32 %v1880, 1.0
  %v1883 = vadd.f32 %v1881, 1.0
  %v1884 = vmul.f32 %v1882, 0.5
  %v1885 = vmul.f32 %v1883, 0.5
  %v1886 = vmul.f32 %v1871, 0.5
  %v1887 = vmul.f32 %v1875, 0.5
  %v1888 = vtanh.pop %v1886
  %v1889 = vtanh.pop %v1887
  %v1890 = vadd.f32 %v1888, 1.0
  %v1891 = vadd.f32 %v1889, 1.0
  %v1892 = vmul.f32 %v1890, 0.5
  %v1893 = vmul.f32 %v1891, 0.5
  %v1894 = vtanh.pop %v1872
  %v1895 = vtanh.pop %v1876
  %v1896 = vmul.f32 %v1873, 0.5
  %v1897 = vmul.f32 %v1877, 0.5
  %v1898 = vtanh.pop %v1896
  %v1899 = vtanh.pop %v1897
  %v1900 = vadd.f32 %v1898, 1.0
  %v1901 = vadd.f32 %v1899, 1.0
  %v1902 = vmul.f32 %v1900, 0.5
  %v1903 = vmul.f32 %v1901, 0.5
  %v1904 = vmul.f32 %v1892, %v1592
  %v1905 = vmul.f32 %v1893, %v1593
  %v1906 = vmul.f32 %v1884, %v1894
  %v1907 = vmul.f32 %v1885, %v1895
  %v1908 = vadd.f32 %v1904, %v1906
  %v1909 = vadd.f32 %v1905, %v1907
  %v1910 = vtanh.pop %v1908
  %v1911 = vtanh.pop %v1909
  %v1912 = vmul.f32 %v1902, %v1910
  %v1913 = vmul.f32 %v1903, %v1911
  %v1914 = vpack.c.bf16 %v1912, %v1912
  %v1915 = vpack.c.bf16 %v1913, %v1913
  %s1916 = scalar_lea.vmem %s3, 40
  %1917 = vst [vmem:[%s1916] sm:$0xf] %v1914
  %1918 = vst [vmem:[%s1916 + $0x4] sm:$0xf] %v1915
  %s1919 = scalar_lea.vmem %s0, 192
  %v1920 = vld [vmem:[%s1919] sm:$0xff]
  %v1921 = vld [vmem:[%s1919 + $0x8] sm:$0xff]
  %v1922 = vld [vmem:[%s1919 + $0x10] sm:$0xff]
  %v1923 = vld [vmem:[%s1919 + $0x18] sm:$0xff]
  %v1924 = vunpack.c.l.bf16 %v1920
  %v1925 = vunpack.c.h.bf16 %v1920
  %v1926 = vunpack.c.l.bf16 %v1921
  %v1927 = vunpack.c.h.bf16 %v1921
  %v1928 = vunpack.c.l.bf16 %v1922
  %v1929 = vunpack.c.h.bf16 %v1922
  %v1930 = vunpack.c.l.bf16 %v1923
  %v1931 = vunpack.c.h.bf16 %v1923
  %v1932 = vld [vmem:[%s1] sm:$0xff]
  %v1933 = vld [vmem:[%s1 + $0x8] sm:$0xff]
  %v1934 = vld [vmem:[%s1 + $0x10] sm:$0xff]
  %v1935 = vld [vmem:[%s1 + $0x18] sm:$0xff]
  %v1936 = vld [vmem:[%s1 + $0x20] sm:$0xff]
  %v1937 = vld [vmem:[%s1 + $0x28] sm:$0xff]
  %v1938 = vld [vmem:[%s1 + $0x30] sm:$0xff]
  %v1939 = vld [vmem:[%s1 + $0x38] sm:$0xff]
  %v1940 = vld [vmem:[%s1 + $0x40] sm:$0xff]
  %v1941 = vld [vmem:[%s1 + $0x48] sm:$0xff]
  %v1942 = vld [vmem:[%s1 + $0x50] sm:$0xff]
  %v1943 = vld [vmem:[%s1 + $0x58] sm:$0xff]
  %v1944 = vld [vmem:[%s1 + $0x60] sm:$0xff]
  %v1945 = vld [vmem:[%s1 + $0x68] sm:$0xff]
  %v1946 = vld [vmem:[%s1 + $0x70] sm:$0xff]
  %v1947 = vld [vmem:[%s1 + $0x78] sm:$0xff]
  %v1948 = vld [vmem:[%s1 + $0x80] sm:$0xff]
  %v1949 = vld [vmem:[%s1 + $0x88] sm:$0xff]
  %v1950 = vld [vmem:[%s1 + $0x90] sm:$0xff]
  %v1951 = vld [vmem:[%s1 + $0x98] sm:$0xff]
  %v1952 = vld [vmem:[%s1 + $0xa0] sm:$0xff]
  %v1953 = vld [vmem:[%s1 + $0xa8] sm:$0xff]
  %v1954 = vld [vmem:[%s1 + $0xb0] sm:$0xff]
  %v1955 = vld [vmem:[%s1 + $0xb8] sm:$0xff]
  %v1956 = vld [vmem:[%s1 + $0xc0] sm:$0xff]
  %v1957 = vld [vmem:[%s1 + $0xc8] sm:$0xff]
  %v1958 = vld [vmem:[%s1 + $0xd0] sm:$0xff]
  %v1959 = vld [vmem:[%s1 + $0xd8] sm:$0xff]
  %v1960 = vld [vmem:[%s1 + $0xe0] sm:$0xff]
  %v1961 = vld [vmem:[%s1 + $0xe8] sm:$0xff]
  %v1962 = vld [vmem:[%s1 + $0xf0] sm:$0xff]
  %v1963 = vld [vmem:[%s1 + $0xf8] sm:$0xff]
  %v1966 = vunpack.c.l.b16 %v1914
  %v1967 = vunpack.c.l.b16 %v1915
  %v1968 = vpack.c.b16 %v1967, %v1966
  %v2002 = vunpack.c.l.b16 %v1932
  %v2003 = vunpack.c.h.b16 %v1932
  %v2004 = vunpack.c.l.b16 %v1933
  %v2005 = vunpack.c.h.b16 %v1933
  %v2006 = vunpack.c.l.b16 %v1934
  %v2007 = vunpack.c.h.b16 %v1934
  %v2008 = vunpack.c.l.b16 %v1935
  %v2009 = vunpack.c.h.b16 %v1935
  %v2010 = vunpack.c.l.b16 %v1936
  %v2011 = vunpack.c.h.b16 %v1936
  %v2012 = vunpack.c.l.b16 %v1937
  %v2013 = vunpack.c.h.b16 %v1937
  %v2014 = vunpack.c.l.b16 %v1938
  %v2015 = vunpack.c.h.b16 %v1938
  %v2016 = vunpack.c.l.b16 %v1939
  %v2017 = vunpack.c.h.b16 %v1939
  %v2018 = vunpack.c.l.b16 %v1940
  %v2019 = vunpack.c.h.b16 %v1940
  %v2020 = vunpack.c.l.b16 %v1941
  %v2021 = vunpack.c.h.b16 %v1941
  %v2022 = vunpack.c.l.b16 %v1942
  %v2023 = vunpack.c.h.b16 %v1942
  %v2024 = vunpack.c.l.b16 %v1943
  %v2025 = vunpack.c.h.b16 %v1943
  %v2026 = vunpack.c.l.b16 %v1944
  %v2027 = vunpack.c.h.b16 %v1944
  %v2028 = vunpack.c.l.b16 %v1945
  %v2029 = vunpack.c.h.b16 %v1945
  %v2030 = vunpack.c.l.b16 %v1946
  %v2031 = vunpack.c.h.b16 %v1946
  %v2032 = vunpack.c.l.b16 %v1947
  %v2033 = vunpack.c.h.b16 %v1947
  %v2034 = vunpack.c.l.b16 %v1948
  %v2035 = vunpack.c.h.b16 %v1948
  %v2036 = vunpack.c.l.b16 %v1949
  %v2037 = vunpack.c.h.b16 %v1949
  %v2038 = vunpack.c.l.b16 %v1950
  %v2039 = vunpack.c.h.b16 %v1950
  %v2040 = vunpack.c.l.b16 %v1951
  %v2041 = vunpack.c.h.b16 %v1951
  %v2042 = vunpack.c.l.b16 %v1952
  %v2043 = vunpack.c.h.b16 %v1952
  %v2044 = vunpack.c.l.b16 %v1953
  %v2045 = vunpack.c.h.b16 %v1953
  %v2046 = vunpack.c.l.b16 %v1954
  %v2047 = vunpack.c.h.b16 %v1954
  %v2048 = vunpack.c.l.b16 %v1955
  %v2049 = vunpack.c.h.b16 %v1955
  %v2050 = vunpack.c.l.b16 %v1956
  %v2051 = vunpack.c.h.b16 %v1956
  %v2052 = vunpack.c.l.b16 %v1957
  %v2053 = vunpack.c.h.b16 %v1957
  %v2054 = vunpack.c.l.b16 %v1958
  %v2055 = vunpack.c.h.b16 %v1958
  %v2056 = vunpack.c.l.b16 %v1959
  %v2057 = vunpack.c.h.b16 %v1959
  %v2058 = vunpack.c.l.b16 %v1960
  %v2059 = vunpack.c.h.b16 %v1960
  %v2060 = vunpack.c.l.b16 %v1961
  %v2061 = vunpack.c.h.b16 %v1961
  %v2062 = vunpack.c.l.b16 %v1962
  %v2063 = vunpack.c.h.b16 %v1962
  %v2064 = vunpack.c.l.b16 %v1963
  %v2065 = vunpack.c.h.b16 %v1963
  %v2066 = vpack.c.b16 %v2006, %v2002
  %v2067 = vpack.c.b16 %v2007, %v2003
  %v2068 = vpack.c.b16 %v2008, %v2004
  %v2069 = vpack.c.b16 %v2009, %v2005
  %v2070 = vpack.c.b16 %v2014, %v2010
  %v2071 = vpack.c.b16 %v2015, %v2011
  %v2072 = vpack.c.b16 %v2016, %v2012
  %v2073 = vpack.c.b16 %v2017, %v2013
  %v2074 = vpack.c.b16 %v2022, %v2018
  %v2075 = vpack.c.b16 %v2023, %v2019
  %v2076 = vpack.c.b16 %v2024, %v2020
  %v2077 = vpack.c.b16 %v2025, %v2021
  %v2078 = vpack.c.b16 %v2030, %v2026
  %v2079 = vpack.c.b16 %v2031, %v2027
  %v2080 = vpack.c.b16 %v2032, %v2028
  %v2081 = vpack.c.b16 %v2033, %v2029
  %v2082 = vpack.c.b16 %v2038, %v2034
  %v2083 = vpack.c.b16 %v2039, %v2035
  %v2084 = vpack.c.b16 %v2040, %v2036
  %v2085 = vpack.c.b16 %v2041, %v2037
  %v2086 = vpack.c.b16 %v2046, %v2042
  %v2087 = vpack.c.b16 %v2047, %v2043
  %v2088 = vpack.c.b16 %v2048, %v2044
  %v2089 = vpack.c.b16 %v2049, %v2045
  %v2090 = vpack.c.b16 %v2054, %v2050
  %v2091 = vpack.c.b16 %v2055, %v2051
  %v2092 = vpack.c.b16 %v2056, %v2052
  %v2093 = vpack.c.b16 %v2057, %v2053
  %v2094 = vpack.c.b16 %v2062, %v2058
  %v2095 = vpack.c.b16 %v2063, %v2059
  %v2096 = vpack.c.b16 %v2064, %v2060
  %v2097 = vpack.c.b16 %v2065, %v2061
  %2130 = vmatpush.bf16.msra.mxu0 %v2094
  %2131 = vmatpush.bf16.msra.mxu0 %v2090
  %2132 = vmatpush.bf16.msra.mxu0 %v2086
  %2133 = vmatpush.bf16.msra.mxu0 %v2082
  %2134 = vmatpush.bf16.msra.mxu0 %v2078
  %2135 = vmatpush.bf16.msra.mxu0 %v2074
  %2136 = vmatpush.bf16.msra.mxu0 %v2070
  %2137 = vmatpush.bf16.msra.mxu0 %v2066
  %2138 = vmatmul.bf16.gmra.mxu0 %v1968
  %v2139 = vpop.f32.mrf.mxu0
  %v2140 = vadd.f32 0.0, %v2139
  %v2141 = vpop.f32.mrf.mxu0
  %v2142 = vadd.f32 0.0, %v2141
  %2143 = vdwg.mxu0
  %2144 = vmatpush.bf16.msra.mxu0 %v2095
  %2145 = vmatpush.bf16.msra.mxu0 %v2091
  %2146 = vmatpush.bf16.msra.mxu0 %v2087
  %2147 = vmatpush.bf16.msra.mxu0 %v2083
  %2148 = vmatpush.bf16.msra.mxu0 %v2079
  %2149 = vmatpush.bf16.msra.mxu0 %v2075
  %2150 = vmatpush.bf16.msra.mxu0 %v2071
  %2151 = vmatpush.bf16.msra.mxu0 %v2067
  %2152 = vmatmul.bf16.gmra.mxu0 %v1968
  %v2153 = vpop.f32.mrf.mxu0
  %v2154 = vadd.f32 0.0, %v2153
  %v2155 = vpop.f32.mrf.mxu0
  %v2156 = vadd.f32 0.0, %v2155
  %2157 = vdwg.mxu0
  %2158 = vmatpush.bf16.msra.mxu0 %v2096
  %2159 = vmatpush.bf16.msra.mxu0 %v2092
  %2160 = vmatpush.bf16.msra.mxu0 %v2088
  %2161 = vmatpush.bf16.msra.mxu0 %v2084
  %2162 = vmatpush.bf16.msra.mxu0 %v2080
  %2163 = vmatpush.bf16.msra.mxu0 %v2076
  %2164 = vmatpush.bf16.msra.mxu0 %v2072
  %2165 = vmatpush.bf16.msra.mxu0 %v2068
  %2166 = vmatmul.bf16.gmra.mxu0 %v1968
  %v2167 = vpop.f32.mrf.mxu0
  %v2168 = vadd.f32 0.0, %v2167
  %v2169 = vpop.f32.mrf.mxu0
  %v2170 = vadd.f32 0.0, %v2169
  %2171 = vdwg.mxu0
  %2172 = vmatpush.bf16.msra.mxu0 %v2097
  %2173 = vmatpush.bf16.msra.mxu0 %v2093
  %2174 = vmatpush.bf16.msra.mxu0 %v2089
  %2175 = vmatpush.bf16.msra.mxu0 %v2085
  %2176 = vmatpush.bf16.msra.mxu0 %v2081
  %2177 = vmatpush.bf16.msra.mxu0 %v2077
  %2178 = vmatpush.bf16.msra.mxu0 %v2073
  %2179 = vmatpush.bf16.msra.mxu0 %v2069
  %2180 = vmatmul.bf16.gmra.mxu0 %v1968
  %v2181 = vpop.f32.mrf.mxu0
  %v2182 = vadd.f32 0.0, %v2181
  %v2183 = vpop.f32.mrf.mxu0
  %v2184 = vadd.f32 0.0, %v2183
  %2185 = vdwg.mxu0
  %v2186 = vadd.f32 %v1924, %v2140
  %v2187 = vadd.f32 %v1925, %v2154
  %v2188 = vadd.f32 %v1926, %v2168
  %v2189 = vadd.f32 %v1927, %v2182
  %v2190 = vadd.f32 %v1928, %v2142
  %v2191 = vadd.f32 %v1929, %v2156
  %v2192 = vadd.f32 %v1930, %v2170
  %v2193 = vadd.f32 %v1931, %v2184
  %v2194 = vmul.f32 %v2186, 0.5
  %v2195 = vmul.f32 %v2190, 0.5
  %v2196 = vtanh.pop %v2194
  %v2197 = vtanh.pop %v2195
  %v2198 = vadd.f32 %v2196, 1.0
  %v2199 = vadd.f32 %v2197, 1.0
  %v2200 = vmul.f32 %v2198, 0.5
  %v2201 = vmul.f32 %v2199, 0.5
  %v2202 = vmul.f32 %v2187, 0.5
  %v2203 = vmul.f32 %v2191, 0.5
  %v2204 = vtanh.pop %v2202
  %v2205 = vtanh.pop %v2203
  %v2206 = vadd.f32 %v2204, 1.0
  %v2207 = vadd.f32 %v2205, 1.0
  %v2208 = vmul.f32 %v2206, 0.5
  %v2209 = vmul.f32 %v2207, 0.5
  %v2210 = vtanh.pop %v2188
  %v2211 = vtanh.pop %v2192
  %v2212 = vmul.f32 %v2189, 0.5
  %v2213 = vmul.f32 %v2193, 0.5
  %v2214 = vtanh.pop %v2212
  %v2215 = vtanh.pop %v2213
  %v2216 = vadd.f32 %v2214, 1.0
  %v2217 = vadd.f32 %v2215, 1.0
  %v2218 = vmul.f32 %v2216, 0.5
  %v2219 = vmul.f32 %v2217, 0.5
  %v2220 = vmul.f32 %v2208, %v1908
  %v2221 = vmul.f32 %v2209, %v1909
  %v2222 = vmul.f32 %v2200, %v2210
  %v2223 = vmul.f32 %v2201, %v2211
  %v2224 = vadd.f32 %v2220, %v2222
  %v2225 = vadd.f32 %v2221, %v2223
  %v2226 = vtanh.pop %v2224
  %v2227 = vtanh.pop %v2225
  %v2228 = vmul.f32 %v2218, %v2226
  %v2229 = vmul.f32 %v2219, %v2227
  %v2230 = vpack.c.bf16 %v2228, %v2228
  %v2231 = vpack.c.bf16 %v2229, %v2229
  %s2232 = scalar_lea.vmem %s3, 48
  %2233 = vst [vmem:[%s2232] sm:$0xf] %v2230
  %2234 = vst [vmem:[%s2232 + $0x4] sm:$0xf] %v2231
  %s2235 = scalar_lea.vmem %s0, 224
  %v2236 = vld [vmem:[%s2235] sm:$0xff]
  %v2237 = vld [vmem:[%s2235 + $0x8] sm:$0xff]
  %v2238 = vld [vmem:[%s2235 + $0x10] sm:$0xff]
  %v2239 = vld [vmem:[%s2235 + $0x18] sm:$0xff]
  %v2240 = vunpack.c.l.bf16 %v2236
  %v2241 = vunpack.c.h.bf16 %v2236
  %v2242 = vunpack.c.l.bf16 %v2237
  %v2243 = vunpack.c.h.bf16 %v2237
  %v2244 = vunpack.c.l.bf16 %v2238
  %v2245 = vunpack.c.h.bf16 %v2238
  %v2246 = vunpack.c.l.bf16 %v2239
  %v2247 = vunpack.c.h.bf16 %v2239
  %v2248 = vld [vmem:[%s1] sm:$0xff]
  %v2249 = vld [vmem:[%s1 + $0x8] sm:$0xff]
  %v2250 = vld [vmem:[%s1 + $0x10] sm:$0xff]
  %v2251 = vld [vmem:[%s1 + $0x18] sm:$0xff]
  %v2252 = vld [vmem:[%s1 + $0x20] sm:$0xff]
  %v2253 = vld [vmem:[%s1 + $0x28] sm:$0xff]
  %v2254 = vld [vmem:[%s1 + $0x30] sm:$0xff]
  %v2255 = vld [vmem:[%s1 + $0x38] sm:$0xff]
  %v2256 = vld [vmem:[%s1 + $0x40] sm:$0xff]
  %v2257 = vld [vmem:[%s1 + $0x48] sm:$0xff]
  %v2258 = vld [vmem:[%s1 + $0x50] sm:$0xff]
  %v2259 = vld [vmem:[%s1 + $0x58] sm:$0xff]
  %v2260 = vld [vmem:[%s1 + $0x60] sm:$0xff]
  %v2261 = vld [vmem:[%s1 + $0x68] sm:$0xff]
  %v2262 = vld [vmem:[%s1 + $0x70] sm:$0xff]
  %v2263 = vld [vmem:[%s1 + $0x78] sm:$0xff]
  %v2264 = vld [vmem:[%s1 + $0x80] sm:$0xff]
  %v2265 = vld [vmem:[%s1 + $0x88] sm:$0xff]
  %v2266 = vld [vmem:[%s1 + $0x90] sm:$0xff]
  %v2267 = vld [vmem:[%s1 + $0x98] sm:$0xff]
  %v2268 = vld [vmem:[%s1 + $0xa0] sm:$0xff]
  %v2269 = vld [vmem:[%s1 + $0xa8] sm:$0xff]
  %v2270 = vld [vmem:[%s1 + $0xb0] sm:$0xff]
  %v2271 = vld [vmem:[%s1 + $0xb8] sm:$0xff]
  %v2272 = vld [vmem:[%s1 + $0xc0] sm:$0xff]
  %v2273 = vld [vmem:[%s1 + $0xc8] sm:$0xff]
  %v2274 = vld [vmem:[%s1 + $0xd0] sm:$0xff]
  %v2275 = vld [vmem:[%s1 + $0xd8] sm:$0xff]
  %v2276 = vld [vmem:[%s1 + $0xe0] sm:$0xff]
  %v2277 = vld [vmem:[%s1 + $0xe8] sm:$0xff]
  %v2278 = vld [vmem:[%s1 + $0xf0] sm:$0xff]
  %v2279 = vld [vmem:[%s1 + $0xf8] sm:$0xff]
  %v2282 = vunpack.c.l.b16 %v2230
  %v2283 = vunpack.c.l.b16 %v2231
  %v2284 = vpack.c.b16 %v2283, %v2282
  %v2318 = vunpack.c.l.b16 %v2248
  %v2319 = vunpack.c.h.b16 %v2248
  %v2320 = vunpack.c.l.b16 %v2249
  %v2321 = vunpack.c.h.b16 %v2249
  %v2322 = vunpack.c.l.b16 %v2250
  %v2323 = vunpack.c.h.b16 %v2250
  %v2324 = vunpack.c.l.b16 %v2251
  %v2325 = vunpack.c.h.b16 %v2251
  %v2326 = vunpack.c.l.b16 %v2252
  %v2327 = vunpack.c.h.b16 %v2252
  %v2328 = vunpack.c.l.b16 %v2253
  %v2329 = vunpack.c.h.b16 %v2253
  %v2330 = vunpack.c.l.b16 %v2254
  %v2331 = vunpack.c.h.b16 %v2254
  %v2332 = vunpack.c.l.b16 %v2255
  %v2333 = vunpack.c.h.b16 %v2255
  %v2334 = vunpack.c.l.b16 %v2256
  %v2335 = vunpack.c.h.b16 %v2256
  %v2336 = vunpack.c.l.b16 %v2257
  %v2337 = vunpack.c.h.b16 %v2257
  %v2338 = vunpack.c.l.b16 %v2258
  %v2339 = vunpack.c.h.b16 %v2258
  %v2340 = vunpack.c.l.b16 %v2259
  %v2341 = vunpack.c.h.b16 %v2259
  %v2342 = vunpack.c.l.b16 %v2260
  %v2343 = vunpack.c.h.b16 %v2260
  %v2344 = vunpack.c.l.b16 %v2261
  %v2345 = vunpack.c.h.b16 %v2261
  %v2346 = vunpack.c.l.b16 %v2262
  %v2347 = vunpack.c.h.b16 %v2262
  %v2348 = vunpack.c.l.b16 %v2263
  %v2349 = vunpack.c.h.b16 %v2263
  %v2350 = vunpack.c.l.b16 %v2264
  %v2351 = vunpack.c.h.b16 %v2264
  %v2352 = vunpack.c.l.b16 %v2265
  %v2353 = vunpack.c.h.b16 %v2265
  %v2354 = vunpack.c.l.b16 %v2266
  %v2355 = vunpack.c.h.b16 %v2266
  %v2356 = vunpack.c.l.b16 %v2267
  %v2357 = vunpack.c.h.b16 %v2267
  %v2358 = vunpack.c.l.b16 %v2268
  %v2359 = vunpack.c.h.b16 %v2268
  %v2360 = vunpack.c.l.b16 %v2269
  %v2361 = vunpack.c.h.b16 %v2269
  %v2362 = vunpack.c.l.b16 %v2270
  %v2363 = vunpack.c.h.b16 %v2270
  %v2364 = vunpack.c.l.b16 %v2271
  %v2365 = vunpack.c.h.b16 %v2271
  %v2366 = vunpack.c.l.b16 %v2272
  %v2367 = vunpack.c.h.b16 %v2272
  %v2368 = vunpack.c.l.b16 %v2273
  %v2369 = vunpack.c.h.b16 %v2273
  %v2370 = vunpack.c.l.b16 %v2274
  %v2371 = vunpack.c.h.b16 %v2274
  %v2372 = vunpack.c.l.b16 %v2275
  %v2373 = vunpack.c.h.b16 %v2275
  %v2374 = vunpack.c.l.b16 %v2276
  %v2375 = vunpack.c.h.b16 %v2276
  %v2376 = vunpack.c.l.b16 %v2277
  %v2377 = vunpack.c.h.b16 %v2277
  %v2378 = vunpack.c.l.b16 %v2278
  %v2379 = vunpack.c.h.b16 %v2278
  %v2380 = vunpack.c.l.b16 %v2279
  %v2381 = vunpack.c.h.b16 %v2279
  %v2382 = vpack.c.b16 %v2322, %v2318
  %v2383 = vpack.c.b16 %v2323, %v2319
  %v2384 = vpack.c.b16 %v2324, %v2320
  %v2385 = vpack.c.b16 %v2325, %v2321
  %v2386 = vpack.c.b16 %v2330, %v2326
  %v2387 = vpack.c.b16 %v2331, %v2327
  %v2388 = vpack.c.b16 %v2332, %v2328
  %v2389 = vpack.c.b16 %v2333, %v2329
  %v2390 = vpack.c.b16 %v2338, %v2334
  %v2391 = vpack.c.b16 %v2339, %v2335
  %v2392 = vpack.c.b16 %v2340, %v2336
  %v2393 = vpack.c.b16 %v2341, %v2337
  %v2394 = vpack.c.b16 %v2346, %v2342
  %v2395 = vpack.c.b16 %v2347, %v2343
  %v2396 = vpack.c.b16 %v2348, %v2344
  %v2397 = vpack.c.b16 %v2349, %v2345
  %v2398 = vpack.c.b16 %v2354, %v2350
  %v2399 = vpack.c.b16 %v2355, %v2351
  %v2400 = vpack.c.b16 %v2356, %v2352
  %v2401 = vpack.c.b16 %v2357, %v2353
  %v2402 = vpack.c.b16 %v2362, %v2358
  %v2403 = vpack.c.b16 %v2363, %v2359
  %v2404 = vpack.c.b16 %v2364, %v2360
  %v2405 = vpack.c.b16 %v2365, %v2361
  %v2406 = vpack.c.b16 %v2370, %v2366
  %v2407 = vpack.c.b16 %v2371, %v2367
  %v2408 = vpack.c.b16 %v2372, %v2368
  %v2409 = vpack.c.b16 %v2373, %v2369
  %v2410 = vpack.c.b16 %v2378, %v2374
  %v2411 = vpack.c.b16 %v2379, %v2375
  %v2412 = vpack.c.b16 %v2380, %v2376
  %v2413 = vpack.c.b16 %v2381, %v2377
  %2446 = vmatpush.bf16.msra.mxu0 %v2410
  %2447 = vmatpush.bf16.msra.mxu0 %v2406
  %2448 = vmatpush.bf16.msra.mxu0 %v2402
  %2449 = vmatpush.bf16.msra.mxu0 %v2398
  %2450 = vmatpush.bf16.msra.mxu0 %v2394
  %2451 = vmatpush.bf16.msra.mxu0 %v2390
  %2452 = vmatpush.bf16.msra.mxu0 %v2386
  %2453 = vmatpush.bf16.msra.mxu0 %v2382
  %2454 = vmatmul.bf16.gmra.mxu0 %v2284
  %v2455 = vpop.f32.mrf.mxu0
  %v2456 = vadd.f32 0.0, %v2455
  %v2457 = vpop.f32.mrf.mxu0
  %v2458 = vadd.f32 0.0, %v2457
  %2459 = vdwg.mxu0
  %2460 = vmatpush.bf16.msra.mxu0 %v2411
  %2461 = vmatpush.bf16.msra.mxu0 %v2407
  %2462 = vmatpush.bf16.msra.mxu0 %v2403
  %2463 = vmatpush.bf16.msra.mxu0 %v2399
  %2464 = vmatpush.bf16.msra.mxu0 %v2395
  %2465 = vmatpush.bf16.msra.mxu0 %v2391
  %2466 = vmatpush.bf16.msra.mxu0 %v2387
  %2467 = vmatpush.bf16.msra.mxu0 %v2383
  %2468 = vmatmul.bf16.gmra.mxu0 %v2284
  %v2469 = vpop.f32.mrf.mxu0
  %v2470 = vadd.f32 0.0, %v2469
  %v2471 = vpop.f32.mrf.mxu0
  %v2472 = vadd.f32 0.0, %v2471
  %2473 = vdwg.mxu0
  %2474 = vmatpush.bf16.msra.mxu0 %v2412
  %2475 = vmatpush.bf16.msra.mxu0 %v2408
  %2476 = vmatpush.bf16.msra.mxu0 %v2404
  %2477 = vmatpush.bf16.msra.mxu0 %v2400
  %2478 = vmatpush.bf16.msra.mxu0 %v2396
  %2479 = vmatpush.bf16.msra.mxu0 %v2392
  %2480 = vmatpush.bf16.msra.mxu0 %v2388
  %2481 = vmatpush.bf16.msra.mxu0 %v2384
  %2482 = vmatmul.bf16.gmra.mxu0 %v2284
  %v2483 = vpop.f32.mrf.mxu0
  %v2484 = vadd.f32 0.0, %v2483
  %v2485 = vpop.f32.mrf.mxu0
  %v2486 = vadd.f32 0.0, %v2485
  %2487 = vdwg.mxu0
  %2488 = vmatpush.bf16.msra.mxu0 %v2413
  %2489 = vmatpush.bf16.msra.mxu0 %v2409
  %2490 = vmatpush.bf16.msra.mxu0 %v2405
  %2491 = vmatpush.bf16.msra.mxu0 %v2401
  %2492 = vmatpush.bf16.msra.mxu0 %v2397
  %2493 = vmatpush.bf16.msra.mxu0 %v2393
  %2494 = vmatpush.bf16.msra.mxu0 %v2389
  %2495 = vmatpush.bf16.msra.mxu0 %v2385
  %2496 = vmatmul.bf16.gmra.mxu0 %v2284
  %v2497 = vpop.f32.mrf.mxu0
  %v2498 = vadd.f32 0.0, %v2497
  %v2499 = vpop.f32.mrf.mxu0
  %v2500 = vadd.f32 0.0, %v2499
  %2501 = vdwg.mxu0
  %v2502 = vadd.f32 %v2240, %v2456
  %v2503 = vadd.f32 %v2241, %v2470
  %v2504 = vadd.f32 %v2242, %v2484
  %v2505 = vadd.f32 %v2243, %v2498
  %v2506 = vadd.f32 %v2244, %v2458
  %v2507 = vadd.f32 %v2245, %v2472
  %v2508 = vadd.f32 %v2246, %v2486
  %v2509 = vadd.f32 %v2247, %v2500
  %v2510 = vmul.f32 %v2502, 0.5
  %v2511 = vmul.f32 %v2506, 0.5
  %v2512 = vtanh.pop %v2510
  %v2513 = vtanh.pop %v2511
  %v2514 = vadd.f32 %v2512, 1.0
  %v2515 = vadd.f32 %v2513, 1.0
  %v2516 = vmul.f32 %v2514, 0.5
  %v2517 = vmul.f32 %v2515, 0.5
  %v2518 = vmul.f32 %v2503, 0.5
  %v2519 = vmul.f32 %v2507, 0.5
  %v2520 = vtanh.pop %v2518
  %v2521 = vtanh.pop %v2519
  %v2522 = vadd.f32 %v2520, 1.0
  %v2523 = vadd.f32 %v2521, 1.0
  %v2524 = vmul.f32 %v2522, 0.5
  %v2525 = vmul.f32 %v2523, 0.5
  %v2526 = vtanh.pop %v2504
  %v2527 = vtanh.pop %v2508
  %v2528 = vmul.f32 %v2505, 0.5
  %v2529 = vmul.f32 %v2509, 0.5
  %v2530 = vtanh.pop %v2528
  %v2531 = vtanh.pop %v2529
  %v2532 = vadd.f32 %v2530, 1.0
  %v2533 = vadd.f32 %v2531, 1.0
  %v2534 = vmul.f32 %v2532, 0.5
  %v2535 = vmul.f32 %v2533, 0.5
  %v2536 = vmul.f32 %v2524, %v2224
  %v2537 = vmul.f32 %v2525, %v2225
  %v2538 = vmul.f32 %v2516, %v2526
  %v2539 = vmul.f32 %v2517, %v2527
  %v2540 = vadd.f32 %v2536, %v2538
  %v2541 = vadd.f32 %v2537, %v2539
  %v2542 = vtanh.pop %v2540
  %v2543 = vtanh.pop %v2541
  %v2544 = vmul.f32 %v2534, %v2542
  %v2545 = vmul.f32 %v2535, %v2543
  %v2546 = vpack.c.bf16 %v2544, %v2544
  %v2547 = vpack.c.bf16 %v2545, %v2545
  %s2548 = scalar_lea.vmem %s3, 56
  %2549 = vst [vmem:[%s2548] sm:$0xf] %v2546
  %2550 = vst [vmem:[%s2548 + $0x4] sm:$0xf] %v2547
  %2551 = vst [vmem:[#allocation2] sm:$0xff] %v2544
  %2552 = vst [vmem:[#allocation2 + $0x8] sm:$0xff] %v2545
  %2553 = vst [vmem:[#allocation3] sm:$0xff] %v2540
  %2554 = vst [vmem:[#allocation3 + $0x8] sm:$0xff] %v2541
  // Predicated region
  $region18: #{rnn_forward.6} parent=0 // pred_check
    _
  $region19: #{rnn_forward.6} parent=0 // pred_check_branch
    %2556 = sbr.rel (0) target = $region21
  $region20: #{rnn_forward.6} parent=0 // pred_region
    _
  $region21: #{rnn_forward.6} parent=0 // pred_fallthru
    _
  // Predicated region
  $region22: #{rnn_forward.6} parent=0 // pred_check
    _
  $region23: #{rnn_forward.6} parent=0 // pred_check_branch
    %2558 = sbr.rel (0) target = $region25
  $region24: #{rnn_forward.6} parent=0 // pred_region
    _
  $region25: #{rnn_forward.6} parent=0 // pred_fallthru
    _

</llo_original>
